<compile_context>
chip_gen: v7x
topology: tpu7x:2x2x1
jax: 0.10.0
libtpu: 0.0.40
codegen_flags: <defaults>
</compile_context>

<pallas_src>
import functools

import jax
import jax.numpy as jnp
from jax import lax
from jax.experimental import pallas as pl
from jax.experimental.pallas import tpu as pltpu


def _round_up(x, m):
    return (x + m - 1) // m * m


def _multi_lstm_kernel(x_ref,       # (Tc, Bt, D)    bf16, time-major slab
                       wih1_ref,    # (D, 4Hp)       bf16
                       whh1_ref,    # (Hp, 4Hp)      bf16
                       b1_ref,      # (1, 4Hp)       f32   (b_ih + b_hh, layer 1)
                       wih2_ref,    # (Hp, 4Hp)      bf16
                       whh2_ref,    # (Hp, 4Hp)      bf16
                       b2_ref,      # (1, 4Hp)       f32
                       wfc_ref,     # (1, Hp)        f32   (padded cols are zero)
                       bfc_ref,     # (1, 1)         f32
                       out_ref,     # (Bt, 1)        f32
                       xproj_ref,   # (Tc, Bt, 4Hp)  f32 scratch (hoisted x projection)
                       h1_ref, c1_ref, h2_ref, c2_ref):   # (Bt, Hp) f32 scratch
    t_chunk_idx = pl.program_id(1)
    n_chunks = pl.num_programs(1)
    Tc, Bt, D = x_ref.shape
    Hp = h1_ref.shape[-1]

    # ---- init recurrent state once per batch tile --------------------------------
    @pl.when(t_chunk_idx == 0)
    def _init():
        z = jnp.zeros_like(h1_ref)
        h1_ref[...] = z
        c1_ref[...] = z
        h2_ref[...] = z
        c2_ref[...] = z

    # ---- hoisted per-chunk layer-1 input projection (off the recurrent chain) ----
    x_flat = x_ref[...].reshape(Tc * Bt, D)                      # bf16
    xproj = jnp.dot(x_flat, wih1_ref[...], preferred_element_type=jnp.float32)
    xproj_ref[...] = (xproj + b1_ref[...]).reshape(Tc, Bt, 4 * Hp)

    # ---- hoist loop-invariant operands out of the time loop ----------------------
    whh1 = whh1_ref[...]
    wih2 = wih2_ref[...]
    whh2 = whh2_ref[...]
    b2 = b2_ref[...]                                             # (1, 4Hp), sublane-bcast add

    def sig(v):                      # sigmoid via tanh: one EUP push instead of exp+recip
        return 0.5 * jnp.tanh(0.5 * v) + 0.5

    def gates(g):                    # lane-aligned 128-wide slices (Hp multiple of 128)
        i = sig(g[:, 0:Hp])
        f = sig(g[:, Hp:2 * Hp])
        gg = jnp.tanh(g[:, 2 * Hp:3 * Hp])
        o = sig(g[:, 3 * Hp:4 * Hp])
        return i, f, gg, o

    def step(t, carry):
        h1, c1, h2, c2 = carry
        # layer 1: precomputed input projection + recurrent matmul
        g1 = xproj_ref[t] + jnp.dot(h1.astype(whh1.dtype), whh1,
                                    preferred_element_type=jnp.float32)
        i1, f1, gg1, o1 = gates(g1)
        c1 = f1 * c1 + i1 * gg1
        h1 = o1 * jnp.tanh(c1)
        # layer 2: two dots (no per-step lane-axis concat)
        g2 = (jnp.dot(h1.astype(wih2.dtype), wih2, preferred_element_type=jnp.float32)
              + jnp.dot(h2.astype(whh2.dtype), whh2, preferred_element_type=jnp.float32)
              + b2)
        i2, f2, gg2, o2 = gates(g2)
        c2 = f2 * c2 + i2 * gg2
        h2 = o2 * jnp.tanh(c2)
        return (h1, c1, h2, c2)

    carry0 = (h1_ref[...], c1_ref[...], h2_ref[...], c2_ref[...])
    h1, c1, h2, c2 = lax.fori_loop(0, Tc, step, carry0, unroll=min(Tc, 4))
    h1_ref[...] = h1
    c1_ref[...] = c1
    h2_ref[...] = h2
    c2_ref[...] = c2

    # ---- fc head on the last timestep of the top layer (last chunk only) ---------
    @pl.when(t_chunk_idx == n_chunks - 1)
    def _finalize():
        # lane reduction instead of a degenerate (Hp -> 1) MXU matmul
        w = wfc_ref[...]                                          # (1, Hp) f32
        out_ref[...] = (jnp.sum(h2 * w, axis=-1, keepdims=True)
                        + bfc_ref[...]).astype(out_ref.dtype)


def _vmem_bytes_estimate(t_chunk, b_tile, D, Hp):
    bf16, f32 = 2, 4
    x_slab = t_chunk * b_tile * D * bf16 * 2                       # double-buffered
    weights = (D * 4 * Hp + 3 * Hp * 4 * Hp) * bf16 * 2            # whh1, wih2, whh2, wih1
    biases = (2 * 4 * Hp + Hp + 1) * f32 * 2
    xproj = t_chunk * b_tile * 4 * Hp * f32                        # scratch, single copy
    state = 4 * b_tile * Hp * f32
    out = b_tile * f32 * 2
    return x_slab + weights + biases + xproj + state + out


def _largest_divisor_le(n, cap):
    cap = max(1, min(cap, n))
    while n % cap != 0:
        cap -= 1
    return cap


@functools.partial(jax.jit, static_argnames=("t_chunk", "b_tile"))
def multi_lstm_forward(x_btd, params, *, t_chunk=32, b_tile=128):
    """x_btd: (B, T, D) batch_first (same as the PyTorch module). Returns (B, 1) f32."""
    B, T, D = x_btd.shape
    Hp = params["whh1T"].shape[0]                  # padded hidden size (multiple of 128)

    # Clamp the tile sizes to the actual problem (static at trace time).
    t_chunk = _largest_divisor_le(T, t_chunk)
    b_tile = min(b_tile, _round_up(B, 8))

    B_pad = _round_up(B, b_tile)
    x = x_btd
    if B_pad != B:
        x = jnp.pad(x, ((0, B_pad - B), (0, 0), (0, 0)))
    # Time-major for cheap leading-dim indexing in-kernel; fold the bf16 cast into the
    # transpose so the rewritten tensor is half-size.
    # TODO(synk): produce x time-major (T, B, D) upstream to remove this pass entirely.
    x_tbd = jnp.transpose(x, (1, 0, 2)).astype(jnp.bfloat16)

    grid = (B_pad // b_tile, T // t_chunk)
    const = lambda b, t: (0, 0)

    grid_spec = pltpu.PrefetchScalarGridSpec(
        num_scalar_prefetch=0,
        grid=grid,
        in_specs=[
            pl.BlockSpec((t_chunk, b_tile, D), lambda b, t: (t, b, 0)),   # x slab
            pl.BlockSpec((D, 4 * Hp), const),                             # W_ih1^T
            pl.BlockSpec((Hp, 4 * Hp), const),                            # W_hh1^T
            pl.BlockSpec((1, 4 * Hp), const),                             # b1
            pl.BlockSpec((Hp, 4 * Hp), const),                            # W_ih2^T
            pl.BlockSpec((Hp, 4 * Hp), const),                            # W_hh2^T
            pl.BlockSpec((1, 4 * Hp), const),                             # b2
            pl.BlockSpec((1, Hp), const),                                 # W_fc^T (padded)
            pl.BlockSpec((1, 1), const),                                  # b_fc
        ],
        out_specs=pl.BlockSpec((b_tile, 1), lambda b, t: (b, 0)),
        scratch_shapes=[pltpu.VMEM((t_chunk, b_tile, 4 * Hp), jnp.float32)]   # x_proj
                       + [pltpu.VMEM((b_tile, Hp), jnp.float32)] * 4,         # h1,c1,h2,c2
    )

    # Cap at 48 MiB so large-H configs still fit v7x's 64 MiB physical VMEM.
    # NOTE: for Hp >= 512 the constant weight specs could additionally be single-buffered
    # (pipeline_mode=pl.Buffered(1)); at Hp=128 double-buffering them is negligible.
    est = _vmem_bytes_estimate(t_chunk, b_tile, D, Hp)
    vmem_limit = int(min(48 * 1024 * 1024, max(16 * 1024 * 1024, 2 * est)))

    out_pad = pl.pallas_call(
        _multi_lstm_kernel,
        out_shape=jax.ShapeDtypeStruct((B_pad, 1), jnp.float32),
        grid_spec=grid_spec,
        compiler_params=pltpu.CompilerParams(
            dimension_semantics=("parallel", "arbitrary"),
            vmem_limit_bytes=vmem_limit),
    )(x_tbd,
      params["wih1T"], params["whh1T"], params["b1"],
      params["wih2T"], params["whh2T"], params["b2"],
      params["wfc"], params["bfc"])
    return out_pad[:B]


def init_params(key, input_size, hidden_size):
    """Returns (kernel_params, ref_params).

    kernel_params: gate-padded (H -> Hp multiple of 128), matmul weights in bf16,
    biases / fc head in f32.  ref_params: plain f32 PyTorch-equivalent weights for the
    correctness reference.  Init mimics nn.LSTM / nn.Linear uniform(-1/sqrt(H), 1/sqrt(H)).
    """
    H = hidden_size
    Hp = _round_up(H, 128)
    k = 1.0 / jnp.sqrt(jnp.float32(H))
    keys = jax.random.split(key, 10)

    def u(kk, shape):
        return jax.random.uniform(kk, shape, jnp.float32, -k, k)

    # PyTorch layout: W_ih (4H, in), W_hh (4H, H), gate order [i, f, g, o].
    w_ih1 = u(keys[0], (4 * H, input_size))
    w_hh1 = u(keys[1], (4 * H, H))
    b_ih1 = u(keys[2], (4 * H,))
    b_hh1 = u(keys[3], (4 * H,))
    w_ih2 = u(keys[4], (4 * H, H))
    w_hh2 = u(keys[5], (4 * H, H))
    b_ih2 = u(keys[6], (4 * H,))
    b_hh2 = u(keys[7], (4 * H,))
    w_fc = u(keys[8], (1, H))
    b_fc = u(keys[9], (1,))

    ref_params = {
        "wih1T": w_ih1.T, "whh1T": w_hh1.T, "b1": (b_ih1 + b_hh1)[None, :],
        "wih2T": w_ih2.T, "whh2T": w_hh2.T, "b2": (b_ih2 + b_hh2)[None, :],
        "wfcT": w_fc.T, "bfc": b_fc[None, :],
    }

    def pad_gate_cols(wT):                      # (in, 4H) -> (in, 4Hp), per-gate zero pad
        in_dim = wT.shape[0]
        w4 = wT.reshape(in_dim, 4, H)
        w4 = jnp.pad(w4, ((0, 0), (0, 0), (0, Hp - H)))
        return w4.reshape(in_dim, 4 * Hp)

    def pad_rows(w, rows):                      # zero-pad leading dim up to `rows`
        return jnp.pad(w, ((0, rows - w.shape[0]), (0, 0)))

    def pad_gate_bias(b):                       # (4H,) -> (1, 4Hp)
        return jnp.pad(b.reshape(4, H), ((0, 0), (0, Hp - H))).reshape(1, 4 * Hp)

    wih1T = pad_gate_cols(w_ih1.T)                                   # (D, 4Hp)
    whh1T = pad_rows(pad_gate_cols(w_hh1.T), Hp)                     # (Hp, 4Hp)
    wih2T = pad_rows(pad_gate_cols(w_ih2.T), Hp)                     # (Hp, 4Hp)
    whh2T = pad_rows(pad_gate_cols(w_hh2.T), Hp)                     # (Hp, 4Hp)

    # bf16 recurrent weights: rounding error grows with T; validated at these shapes.
    # Keep whh1T/whh2T in f32 here if bit-closeness to the f32 PyTorch module matters.
    kernel_params = {
        "wih1T": wih1T.astype(jnp.bfloat16),
        "whh1T": whh1T.astype(jnp.bfloat16),
        "b1": pad_gate_bias(b_ih1 + b_hh1),
        "wih2T": wih2T.astype(jnp.bfloat16),
        "whh2T": whh2T.astype(jnp.bfloat16),
        "b2": pad_gate_bias(b_ih2 + b_hh2),
        "wfc": jnp.pad(w_fc, ((0, 0), (0, Hp - H))),                 # (1, Hp) f32
        "bfc": b_fc.reshape(1, 1),
    }
    return kernel_params, ref_params


def _reference_forward(x_btd, ref_params):
    """Pure-JAX f32 reference (PyTorch nn.LSTM semantics)."""
    H = ref_params["whh1T"].shape[0]
    B, T, _ = x_btd.shape

    def cell(x_t, h, c, wihT, whhT, b):
        g = x_t @ wihT + h @ whhT + b
        i = jax.nn.sigmoid(g[:, 0:H])
        f = jax.nn.sigmoid(g[:, H:2 * H])
        gg = jnp.tanh(g[:, 2 * H:3 * H])
        o = jax.nn.sigmoid(g[:, 3 * H:4 * H])
        c = f * c + i * gg
        h = o * jnp.tanh(c)
        return h, c

    h1 = c1 = h2 = c2 = jnp.zeros((B, H), jnp.float32)
    for t in range(T):
        x_t = x_btd[:, t, :].astype(jnp.float32)
        h1, c1 = cell(x_t, h1, c1, ref_params["wih1T"], ref_params["whh1T"], ref_params["b1"])
        h2, c2 = cell(h1, h2, c2, ref_params["wih2T"], ref_params["whh2T"], ref_params["b2"])
    return h2 @ ref_params["wfcT"] + ref_params["bfc"]


if __name__ == "__main__":
    B, T, D, H = 2, 8, 4, 64     # batch, seq, input_size, hidden_size (module default H=64)

    key = jax.random.PRNGKey(0)
    kx, kp = jax.random.split(key)
    x = jax.random.normal(kx, (B, T, D), jnp.float32)
    kernel_params, ref_params = init_params(kp, input_size=D, hidden_size=H)

    # t_chunk=4 -> two time chunks, so the state-carry / pl.when init+finalize path
    # is actually exercised at this small size.
    out = multi_lstm_forward(x, kernel_params, t_chunk=4, b_tile=8)
    out = jax.block_until_ready(out)

    ref = _reference_forward(x, ref_params)
    assert out.shape == (B, 1)
    # bf16 inputs/weights in the kernel vs f32 reference -> allow small deviation.
    assert jnp.allclose(out, ref, atol=5e-2, rtol=5e-2), (out, ref, jnp.abs(out - ref).max())

    print("KERNEL_OK")
</pallas_src>

<mosaic_0001>
module attributes {stable_mosaic.version = 11 : i64} {
  func.func @_multi_lstm_kernel(%arg0: i32, %arg1: i32, %arg2: memref<4x8x4xbf16, #tpu.memory_space<vmem>>, %arg3: memref<4x512xbf16, #tpu.memory_space<vmem>>, %arg4: memref<128x512xbf16, #tpu.memory_space<vmem>>, %arg5: memref<1x512xf32, #tpu.memory_space<vmem>>, %arg6: memref<128x512xbf16, #tpu.memory_space<vmem>>, %arg7: memref<128x512xbf16, #tpu.memory_space<vmem>>, %arg8: memref<1x512xf32, #tpu.memory_space<vmem>>, %arg9: memref<1x128xf32, #tpu.memory_space<vmem>>, %arg10: memref<1x1xf32, #tpu.memory_space<vmem>>, %arg11: memref<8x1xf32, #tpu.memory_space<vmem>>, %arg12: memref<4x8x512xf32, #tpu.memory_space<vmem>>, %arg13: memref<8x128xf32, #tpu.memory_space<vmem>>, %arg14: memref<8x128xf32, #tpu.memory_space<vmem>>, %arg15: memref<8x128xf32, #tpu.memory_space<vmem>>, %arg16: memref<8x128xf32, #tpu.memory_space<vmem>>) attributes {dimension_semantics = [#tpu.dimension_semantics<parallel>, #tpu.dimension_semantics<arbitrary>], iteration_bounds = array<i64: 1, 2>, scalar_prefetch = 0 : i64, scratch_operands = 5 : i64, tpu.core_type = #tpu.core_type<tc>, window_params = [{transform_indices = @transform_0, window_bounds = array<i64: 4, 8, 4>}, {pipeline_mode = #tpu.pipeline_mode<synchronous>, transform_indices = @transform_1, window_bounds = array<i64: 4, 512>}, {pipeline_mode = #tpu.pipeline_mode<synchronous>, transform_indices = @transform_2, window_bounds = array<i64: 128, 512>}, {pipeline_mode = #tpu.pipeline_mode<synchronous>, transform_indices = @transform_3, window_bounds = array<i64: 1, 512>}, {pipeline_mode = #tpu.pipeline_mode<synchronous>, transform_indices = @transform_4, window_bounds = array<i64: 128, 512>}, {pipeline_mode = #tpu.pipeline_mode<synchronous>, transform_indices = @transform_5, window_bounds = array<i64: 128, 512>}, {pipeline_mode = #tpu.pipeline_mode<synchronous>, transform_indices = @transform_6, window_bounds = array<i64: 1, 512>}, {pipeline_mode = #tpu.pipeline_mode<synchronous>, transform_indices = @transform_7, window_bounds = array<i64: 1, 128>}, {pipeline_mode = #tpu.pipeline_mode<synchronous>, transform_indices = @transform_8, window_bounds = array<i64: 1, 1>}, {transform_indices = @transform_9, window_bounds = array<i64: 8, 1>}]} {
    %c0_i32 = arith.constant 0 : i32
    %0 = arith.cmpi eq, %arg1, %c0_i32 : i32
    %1 = arith.extui %0 : i1 to i32
    %c0_i32_0 = arith.constant 0 : i32
    %2 = arith.cmpi ne, %1, %c0_i32_0 : i32
    scf.if %2 {
      %cst_129 = arith.constant 0.000000e+00 : f32
      %327 = vector.broadcast %cst_129 : f32 to vector<8x128xf32>
      %c0_130 = arith.constant 0 : index
      %c0_131 = arith.constant 0 : index
      %328 = vector.load %arg13[%c0_130, %c0_131] : memref<8x128xf32, #tpu.memory_space<vmem>>, vector<8x128xf32>
      tpu.vector_store %arg13[%c0_130, %c0_131], %327 {strides = array<i32>} : memref<8x128xf32, #tpu.memory_space<vmem>>, vector<8x128xf32>,
      %c0_132 = arith.constant 0 : index
      %c0_133 = arith.constant 0 : index
      %329 = vector.load %arg14[%c0_132, %c0_133] : memref<8x128xf32, #tpu.memory_space<vmem>>, vector<8x128xf32>
      tpu.vector_store %arg14[%c0_132, %c0_133], %327 {strides = array<i32>} : memref<8x128xf32, #tpu.memory_space<vmem>>, vector<8x128xf32>,
      %c0_134 = arith.constant 0 : index
      %c0_135 = arith.constant 0 : index
      %330 = vector.load %arg15[%c0_134, %c0_135] : memref<8x128xf32, #tpu.memory_space<vmem>>, vector<8x128xf32>
      tpu.vector_store %arg15[%c0_134, %c0_135], %327 {strides = array<i32>} : memref<8x128xf32, #tpu.memory_space<vmem>>, vector<8x128xf32>,
      %c0_136 = arith.constant 0 : index
      %c0_137 = arith.constant 0 : index
      %331 = vector.load %arg16[%c0_136, %c0_137] : memref<8x128xf32, #tpu.memory_space<vmem>>, vector<8x128xf32>
      tpu.vector_store %arg16[%c0_136, %c0_137], %327 {strides = array<i32>} : memref<8x128xf32, #tpu.memory_space<vmem>>, vector<8x128xf32>,
    } else {
    }
    %c0 = arith.constant 0 : index
    %c0_1 = arith.constant 0 : index
    %c0_2 = arith.constant 0 : index
    %3 = vector.load %arg2[%c0, %c0_1, %c0_2] : memref<4x8x4xbf16, #tpu.memory_space<vmem>>, vector<4x8x4xbf16>
    %4 = vector.shape_cast %3 : vector<4x8x4xbf16> to vector<32x4xbf16>
    %c0_3 = arith.constant 0 : index
    %c0_4 = arith.constant 0 : index
    %5 = vector.load %arg3[%c0_3, %c0_4] : memref<4x512xbf16, #tpu.memory_space<vmem>>, vector<4x512xbf16>
    %cst = arith.constant dense<0.000000e+00> : vector<32x512xf32>
    %6 = tpu.matmul %4, %5, %cst {dimension_numbers = #tpu.dot_dimension_numbers<[1], [0], [0], [1], [0, 0, 1, 1], [], []>} : vector<32x4xbf16>, vector<4x512xbf16>, vector<32x512xf32> -> vector<32x512xf32>
    %c0_5 = arith.constant 0 : index
    %c0_6 = arith.constant 0 : index
    %7 = vector.load %arg5[%c0_5, %c0_6] : memref<1x512xf32, #tpu.memory_space<vmem>>, vector<1x512xf32>
    %8 = vector.broadcast %7 : vector<1x512xf32> to vector<32x512xf32>
    %9 = arith.addf %6, %8 : vector<32x512xf32>
    %10 = vector.shape_cast %9 : vector<32x512xf32> to vector<4x8x512xf32>
    %c0_7 = arith.constant 0 : index
    %c0_8 = arith.constant 0 : index
    %c0_9 = arith.constant 0 : index
    %11 = vector.load %arg12[%c0_7, %c0_8, %c0_9] : memref<4x8x512xf32, #tpu.memory_space<vmem>>, vector<4x8x512xf32>
    tpu.vector_store %arg12[%c0_7, %c0_8, %c0_9], %10 {strides = array<i32>} : memref<4x8x512xf32, #tpu.memory_space<vmem>>, vector<4x8x512xf32>,
    %c0_10 = arith.constant 0 : index
    %c0_11 = arith.constant 0 : index
    %12 = vector.load %arg4[%c0_10, %c0_11] : memref<128x512xbf16, #tpu.memory_space<vmem>>, vector<128x512xbf16>
    %c0_12 = arith.constant 0 : index
    %c0_13 = arith.constant 0 : index
    %13 = vector.load %arg6[%c0_12, %c0_13] : memref<128x512xbf16, #tpu.memory_space<vmem>>, vector<128x512xbf16>
    %c0_14 = arith.constant 0 : index
    %c0_15 = arith.constant 0 : index
    %14 = vector.load %arg7[%c0_14, %c0_15] : memref<128x512xbf16, #tpu.memory_space<vmem>>, vector<128x512xbf16>
    %c0_16 = arith.constant 0 : index
    %c0_17 = arith.constant 0 : index
    %15 = vector.load %arg8[%c0_16, %c0_17] : memref<1x512xf32, #tpu.memory_space<vmem>>, vector<1x512xf32>
    %c0_18 = arith.constant 0 : index
    %c0_19 = arith.constant 0 : index
    %16 = vector.load %arg13[%c0_18, %c0_19] : memref<8x128xf32, #tpu.memory_space<vmem>>, vector<8x128xf32>
    %c0_20 = arith.constant 0 : index
    %c0_21 = arith.constant 0 : index
    %17 = vector.load %arg14[%c0_20, %c0_21] : memref<8x128xf32, #tpu.memory_space<vmem>>, vector<8x128xf32>
    %c0_22 = arith.constant 0 : index
    %c0_23 = arith.constant 0 : index
    %18 = vector.load %arg15[%c0_22, %c0_23] : memref<8x128xf32, #tpu.memory_space<vmem>>, vector<8x128xf32>
    %c0_24 = arith.constant 0 : index
    %c0_25 = arith.constant 0 : index
    %19 = vector.load %arg16[%c0_24, %c0_25] : memref<8x128xf32, #tpu.memory_space<vmem>>, vector<8x128xf32>
    %c0_i32_26 = arith.constant 0 : i32
    %20 = arith.index_cast %c0_i32_26 : i32 to index
    %c0_27 = arith.constant 0 : index
    %c0_28 = arith.constant 0 : index
    %21 = vector.load %arg12[%20, %c0_27, %c0_28] : memref<4x8x512xf32, #tpu.memory_space<vmem>>, vector<1x8x512xf32>
    %22 = vector.shape_cast %21 : vector<1x8x512xf32> to vector<8x512xf32>
    %23 = arith.truncf %16 : vector<8x128xf32> to vector<8x128xbf16>
    %cst_29 = arith.constant dense<0.000000e+00> : vector<8x512xf32>
    %24 = tpu.matmul %23, %12, %cst_29 {dimension_numbers = #tpu.dot_dimension_numbers<[1], [0], [0], [1], [0, 0, 1, 1], [], []>} : vector<8x128xbf16>, vector<128x512xbf16>, vector<8x512xf32> -> vector<8x512xf32>
    %25 = arith.addf %22, %24 : vector<8x512xf32>
    %26 = vector.extract_strided_slice %25 {offsets = [0, 0], sizes = [8, 128], strides = [1, 1]} : vector<8x512xf32> to vector<8x128xf32>
    %cst_30 = arith.constant 5.000000e-01 : f32
    %27 = vector.broadcast %cst_30 : f32 to vector<8x128xf32>
    %28 = arith.mulf %27, %26 : vector<8x128xf32>
    %29 = math.tanh %28 : vector<8x128xf32>
    %cst_31 = arith.constant 5.000000e-01 : f32
    %30 = vector.broadcast %cst_31 : f32 to vector<8x128xf32>
    %31 = arith.mulf %30, %29 : vector<8x128xf32>
    %cst_32 = arith.constant 5.000000e-01 : f32
    %32 = vector.broadcast %cst_32 : f32 to vector<8x128xf32>
    %33 = arith.addf %31, %32 : vector<8x128xf32>
    %34 = vector.extract_strided_slice %25 {offsets = [0, 128], sizes = [8, 128], strides = [1, 1]} : vector<8x512xf32> to vector<8x128xf32>
    %cst_33 = arith.constant 5.000000e-01 : f32
    %35 = vector.broadcast %cst_33 : f32 to vector<8x128xf32>
    %36 = arith.mulf %35, %34 : vector<8x128xf32>
    %37 = math.tanh %36 : vector<8x128xf32>
    %cst_34 = arith.constant 5.000000e-01 : f32
    %38 = vector.broadcast %cst_34 : f32 to vector<8x128xf32>
    %39 = arith.mulf %38, %37 : vector<8x128xf32>
    %cst_35 = arith.constant 5.000000e-01 : f32
    %40 = vector.broadcast %cst_35 : f32 to vector<8x128xf32>
    %41 = arith.addf %39, %40 : vector<8x128xf32>
    %42 = vector.extract_strided_slice %25 {offsets = [0, 256], sizes = [8, 128], strides = [1, 1]} : vector<8x512xf32> to vector<8x128xf32>
    %43 = math.tanh %42 : vector<8x128xf32>
    %44 = vector.extract_strided_slice %25 {offsets = [0, 384], sizes = [8, 128], strides = [1, 1]} : vector<8x512xf32> to vector<8x128xf32>
    %cst_36 = arith.constant 5.000000e-01 : f32
    %45 = vector.broadcast %cst_36 : f32 to vector<8x128xf32>
    %46 = arith.mulf %45, %44 : vector<8x128xf32>
    %47 = math.tanh %46 : vector<8x128xf32>
    %cst_37 = arith.constant 5.000000e-01 : f32
    %48 = vector.broadcast %cst_37 : f32 to vector<8x128xf32>
    %49 = arith.mulf %48, %47 : vector<8x128xf32>
    %cst_38 = arith.constant 5.000000e-01 : f32
    %50 = vector.broadcast %cst_38 : f32 to vector<8x128xf32>
    %51 = arith.addf %49, %50 : vector<8x128xf32>
    %52 = arith.mulf %41, %17 : vector<8x128xf32>
    %53 = arith.mulf %33, %43 : vector<8x128xf32>
    %54 = arith.addf %52, %53 : vector<8x128xf32>
    %55 = math.tanh %54 : vector<8x128xf32>
    %56 = arith.mulf %51, %55 : vector<8x128xf32>
    %57 = arith.truncf %56 : vector<8x128xf32> to vector<8x128xbf16>
    %cst_39 = arith.constant dense<0.000000e+00> : vector<8x512xf32>
    %58 = tpu.matmul %57, %13, %cst_39 {dimension_numbers = #tpu.dot_dimension_numbers<[1], [0], [0], [1], [0, 0, 1, 1], [], []>} : vector<8x128xbf16>, vector<128x512xbf16>, vector<8x512xf32> -> vector<8x512xf32>
    %59 = arith.truncf %18 : vector<8x128xf32> to vector<8x128xbf16>
    %cst_40 = arith.constant dense<0.000000e+00> : vector<8x512xf32>
    %60 = tpu.matmul %59, %14, %cst_40 {dimension_numbers = #tpu.dot_dimension_numbers<[1], [0], [0], [1], [0, 0, 1, 1], [], []>} : vector<8x128xbf16>, vector<128x512xbf16>, vector<8x512xf32> -> vector<8x512xf32>
    %61 = arith.addf %58, %60 : vector<8x512xf32>
    %62 = vector.broadcast %15 : vector<1x512xf32> to vector<8x512xf32>
    %63 = arith.addf %61, %62 : vector<8x512xf32>
    %64 = vector.extract_strided_slice %63 {offsets = [0, 0], sizes = [8, 128], strides = [1, 1]} : vector<8x512xf32> to vector<8x128xf32>
    %cst_41 = arith.constant 5.000000e-01 : f32
    %65 = vector.broadcast %cst_41 : f32 to vector<8x128xf32>
    %66 = arith.mulf %65, %64 : vector<8x128xf32>
    %67 = math.tanh %66 : vector<8x128xf32>
    %cst_42 = arith.constant 5.000000e-01 : f32
    %68 = vector.broadcast %cst_42 : f32 to vector<8x128xf32>
    %69 = arith.mulf %68, %67 : vector<8x128xf32>
    %cst_43 = arith.constant 5.000000e-01 : f32
    %70 = vector.broadcast %cst_43 : f32 to vector<8x128xf32>
    %71 = arith.addf %69, %70 : vector<8x128xf32>
    %72 = vector.extract_strided_slice %63 {offsets = [0, 128], sizes = [8, 128], strides = [1, 1]} : vector<8x512xf32> to vector<8x128xf32>
    %cst_44 = arith.constant 5.000000e-01 : f32
    %73 = vector.broadcast %cst_44 : f32 to vector<8x128xf32>
    %74 = arith.mulf %73, %72 : vector<8x128xf32>
    %75 = math.tanh %74 : vector<8x128xf32>
    %cst_45 = arith.constant 5.000000e-01 : f32
    %76 = vector.broadcast %cst_45 : f32 to vector<8x128xf32>
    %77 = arith.mulf %76, %75 : vector<8x128xf32>
    %cst_46 = arith.constant 5.000000e-01 : f32
    %78 = vector.broadcast %cst_46 : f32 to vector<8x128xf32>
    %79 = arith.addf %77, %78 : vector<8x128xf32>
    %80 = vector.extract_strided_slice %63 {offsets = [0, 256], sizes = [8, 128], strides = [1, 1]} : vector<8x512xf32> to vector<8x128xf32>
    %81 = math.tanh %80 : vector<8x128xf32>
    %82 = vector.extract_strided_slice %63 {offsets = [0, 384], sizes = [8, 128], strides = [1, 1]} : vector<8x512xf32> to vector<8x128xf32>
    %cst_47 = arith.constant 5.000000e-01 : f32
    %83 = vector.broadcast %cst_47 : f32 to vector<8x128xf32>
    %84 = arith.mulf %83, %82 : vector<8x128xf32>
    %85 = math.tanh %84 : vector<8x128xf32>
    %cst_48 = arith.constant 5.000000e-01 : f32
    %86 = vector.broadcast %cst_48 : f32 to vector<8x128xf32>
    %87 = arith.mulf %86, %85 : vector<8x128xf32>
    %cst_49 = arith.constant 5.000000e-01 : f32
    %88 = vector.broadcast %cst_49 : f32 to vector<8x128xf32>
    %89 = arith.addf %87, %88 : vector<8x128xf32>
    %90 = arith.mulf %79, %19 : vector<8x128xf32>
    %91 = arith.mulf %71, %81 : vector<8x128xf32>
    %92 = arith.addf %90, %91 : vector<8x128xf32>
    %93 = math.tanh %92 : vector<8x128xf32>
    %94 = arith.mulf %89, %93 : vector<8x128xf32>
    %c1_i32 = arith.constant 1 : i32
    %95 = arith.index_cast %c1_i32 : i32 to index
    %c0_50 = arith.constant 0 : index
    %c0_51 = arith.constant 0 : index
    %96 = vector.load %arg12[%95, %c0_50, %c0_51] : memref<4x8x512xf32, #tpu.memory_space<vmem>>, vector<1x8x512xf32>
    %97 = vector.shape_cast %96 : vector<1x8x512xf32> to vector<8x512xf32>
    %98 = arith.truncf %56 : vector<8x128xf32> to vector<8x128xbf16>
    %cst_52 = arith.constant dense<0.000000e+00> : vector<8x512xf32>
    %99 = tpu.matmul %98, %12, %cst_52 {dimension_numbers = #tpu.dot_dimension_numbers<[1], [0], [0], [1], [0, 0, 1, 1], [], []>} : vector<8x128xbf16>, vector<128x512xbf16>, vector<8x512xf32> -> vector<8x512xf32>
    %100 = arith.addf %97, %99 : vector<8x512xf32>
    %101 = vector.extract_strided_slice %100 {offsets = [0, 0], sizes = [8, 128], strides = [1, 1]} : vector<8x512xf32> to vector<8x128xf32>
    %cst_53 = arith.constant 5.000000e-01 : f32
    %102 = vector.broadcast %cst_53 : f32 to vector<8x128xf32>
    %103 = arith.mulf %102, %101 : vector<8x128xf32>
    %104 = math.tanh %103 : vector<8x128xf32>
    %cst_54 = arith.constant 5.000000e-01 : f32
    %105 = vector.broadcast %cst_54 : f32 to vector<8x128xf32>
    %106 = arith.mulf %105, %104 : vector<8x128xf32>
    %cst_55 = arith.constant 5.000000e-01 : f32
    %107 = vector.broadcast %cst_55 : f32 to vector<8x128xf32>
    %108 = arith.addf %106, %107 : vector<8x128xf32>
    %109 = vector.extract_strided_slice %100 {offsets = [0, 128], sizes = [8, 128], strides = [1, 1]} : vector<8x512xf32> to vector<8x128xf32>
    %cst_56 = arith.constant 5.000000e-01 : f32
    %110 = vector.broadcast %cst_56 : f32 to vector<8x128xf32>
    %111 = arith.mulf %110, %109 : vector<8x128xf32>
    %112 = math.tanh %111 : vector<8x128xf32>
    %cst_57 = arith.constant 5.000000e-01 : f32
    %113 = vector.broadcast %cst_57 : f32 to vector<8x128xf32>
    %114 = arith.mulf %113, %112 : vector<8x128xf32>
    %cst_58 = arith.constant 5.000000e-01 : f32
    %115 = vector.broadcast %cst_58 : f32 to vector<8x128xf32>
    %116 = arith.addf %114, %115 : vector<8x128xf32>
    %117 = vector.extract_strided_slice %100 {offsets = [0, 256], sizes = [8, 128], strides = [1, 1]} : vector<8x512xf32> to vector<8x128xf32>
    %118 = math.tanh %117 : vector<8x128xf32>
    %119 = vector.extract_strided_slice %100 {offsets = [0, 384], sizes = [8, 128], strides = [1, 1]} : vector<8x512xf32> to vector<8x128xf32>
    %cst_59 = arith.constant 5.000000e-01 : f32
    %120 = vector.broadcast %cst_59 : f32 to vector<8x128xf32>
    %121 = arith.mulf %120, %119 : vector<8x128xf32>
    %122 = math.tanh %121 : vector<8x128xf32>
    %cst_60 = arith.constant 5.000000e-01 : f32
    %123 = vector.broadcast %cst_60 : f32 to vector<8x128xf32>
    %124 = arith.mulf %123, %122 : vector<8x128xf32>
    %cst_61 = arith.constant 5.000000e-01 : f32
    %125 = vector.broadcast %cst_61 : f32 to vector<8x128xf32>
    %126 = arith.addf %124, %125 : vector<8x128xf32>
    %127 = arith.mulf %116, %54 : vector<8x128xf32>
    %128 = arith.mulf %108, %118 : vector<8x128xf32>
    %129 = arith.addf %127, %128 : vector<8x128xf32>
    %130 = math.tanh %129 : vector<8x128xf32>
    %131 = arith.mulf %126, %130 : vector<8x128xf32>
    %132 = arith.truncf %131 : vector<8x128xf32> to vector<8x128xbf16>
    %cst_62 = arith.constant dense<0.000000e+00> : vector<8x512xf32>
    %133 = tpu.matmul %132, %13, %cst_62 {dimension_numbers = #tpu.dot_dimension_numbers<[1], [0], [0], [1], [0, 0, 1, 1], [], []>} : vector<8x128xbf16>, vector<128x512xbf16>, vector<8x512xf32> -> vector<8x512xf32>
    %134 = arith.truncf %94 : vector<8x128xf32> to vector<8x128xbf16>
    %cst_63 = arith.constant dense<0.000000e+00> : vector<8x512xf32>
    %135 = tpu.matmul %134, %14, %cst_63 {dimension_numbers = #tpu.dot_dimension_numbers<[1], [0], [0], [1], [0, 0, 1, 1], [], []>} : vector<8x128xbf16>, vector<128x512xbf16>, vector<8x512xf32> -> vector<8x512xf32>
    %136 = arith.addf %133, %135 : vector<8x512xf32>
    %137 = vector.broadcast %15 : vector<1x512xf32> to vector<8x512xf32>
    %138 = arith.addf %136, %137 : vector<8x512xf32>
    %139 = vector.extract_strided_slice %138 {offsets = [0, 0], sizes = [8, 128], strides = [1, 1]} : vector<8x512xf32> to vector<8x128xf32>
    %cst_64 = arith.constant 5.000000e-01 : f32
    %140 = vector.broadcast %cst_64 : f32 to vector<8x128xf32>
    %141 = arith.mulf %140, %139 : vector<8x128xf32>
    %142 = math.tanh %141 : vector<8x128xf32>
    %cst_65 = arith.constant 5.000000e-01 : f32
    %143 = vector.broadcast %cst_65 : f32 to vector<8x128xf32>
    %144 = arith.mulf %143, %142 : vector<8x128xf32>
    %cst_66 = arith.constant 5.000000e-01 : f32
    %145 = vector.broadcast %cst_66 : f32 to vector<8x128xf32>
    %146 = arith.addf %144, %145 : vector<8x128xf32>
    %147 = vector.extract_strided_slice %138 {offsets = [0, 128], sizes = [8, 128], strides = [1, 1]} : vector<8x512xf32> to vector<8x128xf32>
    %cst_67 = arith.constant 5.000000e-01 : f32
    %148 = vector.broadcast %cst_67 : f32 to vector<8x128xf32>
    %149 = arith.mulf %148, %147 : vector<8x128xf32>
    %150 = math.tanh %149 : vector<8x128xf32>
    %cst_68 = arith.constant 5.000000e-01 : f32
    %151 = vector.broadcast %cst_68 : f32 to vector<8x128xf32>
    %152 = arith.mulf %151, %150 : vector<8x128xf32>
    %cst_69 = arith.constant 5.000000e-01 : f32
    %153 = vector.broadcast %cst_69 : f32 to vector<8x128xf32>
    %154 = arith.addf %152, %153 : vector<8x128xf32>
    %155 = vector.extract_strided_slice %138 {offsets = [0, 256], sizes = [8, 128], strides = [1, 1]} : vector<8x512xf32> to vector<8x128xf32>
    %156 = math.tanh %155 : vector<8x128xf32>
    %157 = vector.extract_strided_slice %138 {offsets = [0, 384], sizes = [8, 128], strides = [1, 1]} : vector<8x512xf32> to vector<8x128xf32>
    %cst_70 = arith.constant 5.000000e-01 : f32
    %158 = vector.broadcast %cst_70 : f32 to vector<8x128xf32>
    %159 = arith.mulf %158, %157 : vector<8x128xf32>
    %160 = math.tanh %159 : vector<8x128xf32>
    %cst_71 = arith.constant 5.000000e-01 : f32
    %161 = vector.broadcast %cst_71 : f32 to vector<8x128xf32>
    %162 = arith.mulf %161, %160 : vector<8x128xf32>
    %cst_72 = arith.constant 5.000000e-01 : f32
    %163 = vector.broadcast %cst_72 : f32 to vector<8x128xf32>
    %164 = arith.addf %162, %163 : vector<8x128xf32>
    %165 = arith.mulf %154, %92 : vector<8x128xf32>
    %166 = arith.mulf %146, %156 : vector<8x128xf32>
    %167 = arith.addf %165, %166 : vector<8x128xf32>
    %168 = math.tanh %167 : vector<8x128xf32>
    %169 = arith.mulf %164, %168 : vector<8x128xf32>
    %c2_i32 = arith.constant 2 : i32
    %170 = arith.index_cast %c2_i32 : i32 to index
    %c0_73 = arith.constant 0 : index
    %c0_74 = arith.constant 0 : index
    %171 = vector.load %arg12[%170, %c0_73, %c0_74] : memref<4x8x512xf32, #tpu.memory_space<vmem>>, vector<1x8x512xf32>
    %172 = vector.shape_cast %171 : vector<1x8x512xf32> to vector<8x512xf32>
    %173 = arith.truncf %131 : vector<8x128xf32> to vector<8x128xbf16>
    %cst_75 = arith.constant dense<0.000000e+00> : vector<8x512xf32>
    %174 = tpu.matmul %173, %12, %cst_75 {dimension_numbers = #tpu.dot_dimension_numbers<[1], [0], [0], [1], [0, 0, 1, 1], [], []>} : vector<8x128xbf16>, vector<128x512xbf16>, vector<8x512xf32> -> vector<8x512xf32>
    %175 = arith.addf %172, %174 : vector<8x512xf32>
    %176 = vector.extract_strided_slice %175 {offsets = [0, 0], sizes = [8, 128], strides = [1, 1]} : vector<8x512xf32> to vector<8x128xf32>
    %cst_76 = arith.constant 5.000000e-01 : f32
    %177 = vector.broadcast %cst_76 : f32 to vector<8x128xf32>
    %178 = arith.mulf %177, %176 : vector<8x128xf32>
    %179 = math.tanh %178 : vector<8x128xf32>
    %cst_77 = arith.constant 5.000000e-01 : f32
    %180 = vector.broadcast %cst_77 : f32 to vector<8x128xf32>
    %181 = arith.mulf %180, %179 : vector<8x128xf32>
    %cst_78 = arith.constant 5.000000e-01 : f32
    %182 = vector.broadcast %cst_78 : f32 to vector<8x128xf32>
    %183 = arith.addf %181, %182 : vector<8x128xf32>
    %184 = vector.extract_strided_slice %175 {offsets = [0, 128], sizes = [8, 128], strides = [1, 1]} : vector<8x512xf32> to vector<8x128xf32>
    %cst_79 = arith.constant 5.000000e-01 : f32
    %185 = vector.broadcast %cst_79 : f32 to vector<8x128xf32>
    %186 = arith.mulf %185, %184 : vector<8x128xf32>
    %187 = math.tanh %186 : vector<8x128xf32>
    %cst_80 = arith.constant 5.000000e-01 : f32
    %188 = vector.broadcast %cst_80 : f32 to vector<8x128xf32>
    %189 = arith.mulf %188, %187 : vector<8x128xf32>
    %cst_81 = arith.constant 5.000000e-01 : f32
    %190 = vector.broadcast %cst_81 : f32 to vector<8x128xf32>
    %191 = arith.addf %189, %190 : vector<8x128xf32>
    %192 = vector.extract_strided_slice %175 {offsets = [0, 256], sizes = [8, 128], strides = [1, 1]} : vector<8x512xf32> to vector<8x128xf32>
    %193 = math.tanh %192 : vector<8x128xf32>
    %194 = vector.extract_strided_slice %175 {offsets = [0, 384], sizes = [8, 128], strides = [1, 1]} : vector<8x512xf32> to vector<8x128xf32>
    %cst_82 = arith.constant 5.000000e-01 : f32
    %195 = vector.broadcast %cst_82 : f32 to vector<8x128xf32>
    %196 = arith.mulf %195, %194 : vector<8x128xf32>
    %197 = math.tanh %196 : vector<8x128xf32>
    %cst_83 = arith.constant 5.000000e-01 : f32
    %198 = vector.broadcast %cst_83 : f32 to vector<8x128xf32>
    %199 = arith.mulf %198, %197 : vector<8x128xf32>
    %cst_84 = arith.constant 5.000000e-01 : f32
    %200 = vector.broadcast %cst_84 : f32 to vector<8x128xf32>
    %201 = arith.addf %199, %200 : vector<8x128xf32>
    %202 = arith.mulf %191, %129 : vector<8x128xf32>
    %203 = arith.mulf %183, %193 : vector<8x128xf32>
    %204 = arith.addf %202, %203 : vector<8x128xf32>
    %205 = math.tanh %204 : vector<8x128xf32>
    %206 = arith.mulf %201, %205 : vector<8x128xf32>
    %207 = arith.truncf %206 : vector<8x128xf32> to vector<8x128xbf16>
    %cst_85 = arith.constant dense<0.000000e+00> : vector<8x512xf32>
    %208 = tpu.matmul %207, %13, %cst_85 {dimension_numbers = #tpu.dot_dimension_numbers<[1], [0], [0], [1], [0, 0, 1, 1], [], []>} : vector<8x128xbf16>, vector<128x512xbf16>, vector<8x512xf32> -> vector<8x512xf32>
    %209 = arith.truncf %169 : vector<8x128xf32> to vector<8x128xbf16>
    %cst_86 = arith.constant dense<0.000000e+00> : vector<8x512xf32>
    %210 = tpu.matmul %209, %14, %cst_86 {dimension_numbers = #tpu.dot_dimension_numbers<[1], [0], [0], [1], [0, 0, 1, 1], [], []>} : vector<8x128xbf16>, vector<128x512xbf16>, vector<8x512xf32> -> vector<8x512xf32>
    %211 = arith.addf %208, %210 : vector<8x512xf32>
    %212 = vector.broadcast %15 : vector<1x512xf32> to vector<8x512xf32>
    %213 = arith.addf %211, %212 : vector<8x512xf32>
    %214 = vector.extract_strided_slice %213 {offsets = [0, 0], sizes = [8, 128], strides = [1, 1]} : vector<8x512xf32> to vector<8x128xf32>
    %cst_87 = arith.constant 5.000000e-01 : f32
    %215 = vector.broadcast %cst_87 : f32 to vector<8x128xf32>
    %216 = arith.mulf %215, %214 : vector<8x128xf32>
    %217 = math.tanh %216 : vector<8x128xf32>
    %cst_88 = arith.constant 5.000000e-01 : f32
    %218 = vector.broadcast %cst_88 : f32 to vector<8x128xf32>
    %219 = arith.mulf %218, %217 : vector<8x128xf32>
    %cst_89 = arith.constant 5.000000e-01 : f32
    %220 = vector.broadcast %cst_89 : f32 to vector<8x128xf32>
    %221 = arith.addf %219, %220 : vector<8x128xf32>
    %222 = vector.extract_strided_slice %213 {offsets = [0, 128], sizes = [8, 128], strides = [1, 1]} : vector<8x512xf32> to vector<8x128xf32>
    %cst_90 = arith.constant 5.000000e-01 : f32
    %223 = vector.broadcast %cst_90 : f32 to vector<8x128xf32>
    %224 = arith.mulf %223, %222 : vector<8x128xf32>
    %225 = math.tanh %224 : vector<8x128xf32>
    %cst_91 = arith.constant 5.000000e-01 : f32
    %226 = vector.broadcast %cst_91 : f32 to vector<8x128xf32>
    %227 = arith.mulf %226, %225 : vector<8x128xf32>
    %cst_92 = arith.constant 5.000000e-01 : f32
    %228 = vector.broadcast %cst_92 : f32 to vector<8x128xf32>
    %229 = arith.addf %227, %228 : vector<8x128xf32>
    %230 = vector.extract_strided_slice %213 {offsets = [0, 256], sizes = [8, 128], strides = [1, 1]} : vector<8x512xf32> to vector<8x128xf32>
    %231 = math.tanh %230 : vector<8x128xf32>
    %232 = vector.extract_strided_slice %213 {offsets = [0, 384], sizes = [8, 128], strides = [1, 1]} : vector<8x512xf32> to vector<8x128xf32>
    %cst_93 = arith.constant 5.000000e-01 : f32
    %233 = vector.broadcast %cst_93 : f32 to vector<8x128xf32>
    %234 = arith.mulf %233, %232 : vector<8x128xf32>
    %235 = math.tanh %234 : vector<8x128xf32>
    %cst_94 = arith.constant 5.000000e-01 : f32
    %236 = vector.broadcast %cst_94 : f32 to vector<8x128xf32>
    %237 = arith.mulf %236, %235 : vector<8x128xf32>
    %cst_95 = arith.constant 5.000000e-01 : f32
    %238 = vector.broadcast %cst_95 : f32 to vector<8x128xf32>
    %239 = arith.addf %237, %238 : vector<8x128xf32>
    %240 = arith.mulf %229, %167 : vector<8x128xf32>
    %241 = arith.mulf %221, %231 : vector<8x128xf32>
    %242 = arith.addf %240, %241 : vector<8x128xf32>
    %243 = math.tanh %242 : vector<8x128xf32>
    %244 = arith.mulf %239, %243 : vector<8x128xf32>
    %c3_i32 = arith.constant 3 : i32
    %245 = arith.index_cast %c3_i32 : i32 to index
    %c0_96 = arith.constant 0 : index
    %c0_97 = arith.constant 0 : index
    %246 = vector.load %arg12[%245, %c0_96, %c0_97] : memref<4x8x512xf32, #tpu.memory_space<vmem>>, vector<1x8x512xf32>
    %247 = vector.shape_cast %246 : vector<1x8x512xf32> to vector<8x512xf32>
    %248 = arith.truncf %206 : vector<8x128xf32> to vector<8x128xbf16>
    %cst_98 = arith.constant dense<0.000000e+00> : vector<8x512xf32>
    %249 = tpu.matmul %248, %12, %cst_98 {dimension_numbers = #tpu.dot_dimension_numbers<[1], [0], [0], [1], [0, 0, 1, 1], [], []>} : vector<8x128xbf16>, vector<128x512xbf16>, vector<8x512xf32> -> vector<8x512xf32>
    %250 = arith.addf %247, %249 : vector<8x512xf32>
    %251 = vector.extract_strided_slice %250 {offsets = [0, 0], sizes = [8, 128], strides = [1, 1]} : vector<8x512xf32> to vector<8x128xf32>
    %cst_99 = arith.constant 5.000000e-01 : f32
    %252 = vector.broadcast %cst_99 : f32 to vector<8x128xf32>
    %253 = arith.mulf %252, %251 : vector<8x128xf32>
    %254 = math.tanh %253 : vector<8x128xf32>
    %cst_100 = arith.constant 5.000000e-01 : f32
    %255 = vector.broadcast %cst_100 : f32 to vector<8x128xf32>
    %256 = arith.mulf %255, %254 : vector<8x128xf32>
    %cst_101 = arith.constant 5.000000e-01 : f32
    %257 = vector.broadcast %cst_101 : f32 to vector<8x128xf32>
    %258 = arith.addf %256, %257 : vector<8x128xf32>
    %259 = vector.extract_strided_slice %250 {offsets = [0, 128], sizes = [8, 128], strides = [1, 1]} : vector<8x512xf32> to vector<8x128xf32>
    %cst_102 = arith.constant 5.000000e-01 : f32
    %260 = vector.broadcast %cst_102 : f32 to vector<8x128xf32>
    %261 = arith.mulf %260, %259 : vector<8x128xf32>
    %262 = math.tanh %261 : vector<8x128xf32>
    %cst_103 = arith.constant 5.000000e-01 : f32
    %263 = vector.broadcast %cst_103 : f32 to vector<8x128xf32>
    %264 = arith.mulf %263, %262 : vector<8x128xf32>
    %cst_104 = arith.constant 5.000000e-01 : f32
    %265 = vector.broadcast %cst_104 : f32 to vector<8x128xf32>
    %266 = arith.addf %264, %265 : vector<8x128xf32>
    %267 = vector.extract_strided_slice %250 {offsets = [0, 256], sizes = [8, 128], strides = [1, 1]} : vector<8x512xf32> to vector<8x128xf32>
    %268 = math.tanh %267 : vector<8x128xf32>
    %269 = vector.extract_strided_slice %250 {offsets = [0, 384], sizes = [8, 128], strides = [1, 1]} : vector<8x512xf32> to vector<8x128xf32>
    %cst_105 = arith.constant 5.000000e-01 : f32
    %270 = vector.broadcast %cst_105 : f32 to vector<8x128xf32>
    %271 = arith.mulf %270, %269 : vector<8x128xf32>
    %272 = math.tanh %271 : vector<8x128xf32>
    %cst_106 = arith.constant 5.000000e-01 : f32
    %273 = vector.broadcast %cst_106 : f32 to vector<8x128xf32>
    %274 = arith.mulf %273, %272 : vector<8x128xf32>
    %cst_107 = arith.constant 5.000000e-01 : f32
    %275 = vector.broadcast %cst_107 : f32 to vector<8x128xf32>
    %276 = arith.addf %274, %275 : vector<8x128xf32>
    %277 = arith.mulf %266, %204 : vector<8x128xf32>
    %278 = arith.mulf %258, %268 : vector<8x128xf32>
    %279 = arith.addf %277, %278 : vector<8x128xf32>
    %280 = math.tanh %279 : vector<8x128xf32>
    %281 = arith.mulf %276, %280 : vector<8x128xf32>
    %282 = arith.truncf %281 : vector<8x128xf32> to vector<8x128xbf16>
    %cst_108 = arith.constant dense<0.000000e+00> : vector<8x512xf32>
    %283 = tpu.matmul %282, %13, %cst_108 {dimension_numbers = #tpu.dot_dimension_numbers<[1], [0], [0], [1], [0, 0, 1, 1], [], []>} : vector<8x128xbf16>, vector<128x512xbf16>, vector<8x512xf32> -> vector<8x512xf32>
    %284 = arith.truncf %244 : vector<8x128xf32> to vector<8x128xbf16>
    %cst_109 = arith.constant dense<0.000000e+00> : vector<8x512xf32>
    %285 = tpu.matmul %284, %14, %cst_109 {dimension_numbers = #tpu.dot_dimension_numbers<[1], [0], [0], [1], [0, 0, 1, 1], [], []>} : vector<8x128xbf16>, vector<128x512xbf16>, vector<8x512xf32> -> vector<8x512xf32>
    %286 = arith.addf %283, %285 : vector<8x512xf32>
    %287 = vector.broadcast %15 : vector<1x512xf32> to vector<8x512xf32>
    %288 = arith.addf %286, %287 : vector<8x512xf32>
    %289 = vector.extract_strided_slice %288 {offsets = [0, 0], sizes = [8, 128], strides = [1, 1]} : vector<8x512xf32> to vector<8x128xf32>
    %cst_110 = arith.constant 5.000000e-01 : f32
    %290 = vector.broadcast %cst_110 : f32 to vector<8x128xf32>
    %291 = arith.mulf %290, %289 : vector<8x128xf32>
    %292 = math.tanh %291 : vector<8x128xf32>
    %cst_111 = arith.constant 5.000000e-01 : f32
    %293 = vector.broadcast %cst_111 : f32 to vector<8x128xf32>
    %294 = arith.mulf %293, %292 : vector<8x128xf32>
    %cst_112 = arith.constant 5.000000e-01 : f32
    %295 = vector.broadcast %cst_112 : f32 to vector<8x128xf32>
    %296 = arith.addf %294, %295 : vector<8x128xf32>
    %297 = vector.extract_strided_slice %288 {offsets = [0, 128], sizes = [8, 128], strides = [1, 1]} : vector<8x512xf32> to vector<8x128xf32>
    %cst_113 = arith.constant 5.000000e-01 : f32
    %298 = vector.broadcast %cst_113 : f32 to vector<8x128xf32>
    %299 = arith.mulf %298, %297 : vector<8x128xf32>
    %300 = math.tanh %299 : vector<8x128xf32>
    %cst_114 = arith.constant 5.000000e-01 : f32
    %301 = vector.broadcast %cst_114 : f32 to vector<8x128xf32>
    %302 = arith.mulf %301, %300 : vector<8x128xf32>
    %cst_115 = arith.constant 5.000000e-01 : f32
    %303 = vector.broadcast %cst_115 : f32 to vector<8x128xf32>
    %304 = arith.addf %302, %303 : vector<8x128xf32>
    %305 = vector.extract_strided_slice %288 {offsets = [0, 256], sizes = [8, 128], strides = [1, 1]} : vector<8x512xf32> to vector<8x128xf32>
    %306 = math.tanh %305 : vector<8x128xf32>
    %307 = vector.extract_strided_slice %288 {offsets = [0, 384], sizes = [8, 128], strides = [1, 1]} : vector<8x512xf32> to vector<8x128xf32>
    %cst_116 = arith.constant 5.000000e-01 : f32
    %308 = vector.broadcast %cst_116 : f32 to vector<8x128xf32>
    %309 = arith.mulf %308, %307 : vector<8x128xf32>
    %310 = math.tanh %309 : vector<8x128xf32>
    %cst_117 = arith.constant 5.000000e-01 : f32
    %311 = vector.broadcast %cst_117 : f32 to vector<8x128xf32>
    %312 = arith.mulf %311, %310 : vector<8x128xf32>
    %cst_118 = arith.constant 5.000000e-01 : f32
    %313 = vector.broadcast %cst_118 : f32 to vector<8x128xf32>
    %314 = arith.addf %312, %313 : vector<8x128xf32>
    %315 = arith.mulf %304, %242 : vector<8x128xf32>
    %316 = arith.mulf %296, %306 : vector<8x128xf32>
    %317 = arith.addf %315, %316 : vector<8x128xf32>
    %318 = math.tanh %317 : vector<8x128xf32>
    %319 = arith.mulf %314, %318 : vector<8x128xf32>
    %c4_i32 = arith.constant 4 : i32
    %c0_119 = arith.constant 0 : index
    %c0_120 = arith.constant 0 : index
    %320 = vector.load %arg13[%c0_119, %c0_120] : memref<8x128xf32, #tpu.memory_space<vmem>>, vector<8x128xf32>
    tpu.vector_store %arg13[%c0_119, %c0_120], %281 {strides = array<i32>} : memref<8x128xf32, #tpu.memory_space<vmem>>, vector<8x128xf32>,
    %c0_121 = arith.constant 0 : index
    %c0_122 = arith.constant 0 : index
    %321 = vector.load %arg14[%c0_121, %c0_122] : memref<8x128xf32, #tpu.memory_space<vmem>>, vector<8x128xf32>
    tpu.vector_store %arg14[%c0_121, %c0_122], %279 {strides = array<i32>} : memref<8x128xf32, #tpu.memory_space<vmem>>, vector<8x128xf32>,
    %c0_123 = arith.constant 0 : index
    %c0_124 = arith.constant 0 : index
    %322 = vector.load %arg15[%c0_123, %c0_124] : memref<8x128xf32, #tpu.memory_space<vmem>>, vector<8x128xf32>
    tpu.vector_store %arg15[%c0_123, %c0_124], %319 {strides = array<i32>} : memref<8x128xf32, #tpu.memory_space<vmem>>, vector<8x128xf32>,
    %c0_125 = arith.constant 0 : index
    %c0_126 = arith.constant 0 : index
    %323 = vector.load %arg16[%c0_125, %c0_126] : memref<8x128xf32, #tpu.memory_space<vmem>>, vector<8x128xf32>
    tpu.vector_store %arg16[%c0_125, %c0_126], %317 {strides = array<i32>} : memref<8x128xf32, #tpu.memory_space<vmem>>, vector<8x128xf32>,
    %c1_i32_127 = arith.constant 1 : i32
    %324 = arith.cmpi eq, %arg1, %c1_i32_127 : i32
    %325 = arith.extui %324 : i1 to i32
    %c0_i32_128 = arith.constant 0 : i32
    %326 = arith.cmpi ne, %325, %c0_i32_128 : i32
    scf.if %326 {
      %c0_129 = arith.constant 0 : index
      %c0_130 = arith.constant 0 : index
      %327 = vector.load %arg9[%c0_129, %c0_130] : memref<1x128xf32, #tpu.memory_space<vmem>>, vector<1x128xf32>
      %328 = vector.broadcast %327 : vector<1x128xf32> to vector<8x128xf32>
      %329 = arith.mulf %319, %328 : vector<8x128xf32>
      %cst_131 = arith.constant dense<0.000000e+00> : vector<8xf32>
      %330 = vector.multi_reduction <add>, %329, %cst_131 [1] : vector<8x128xf32> to vector<8xf32>
      %331 = vector.shape_cast %330 : vector<8xf32> to vector<8x1xf32>
      %c0_132 = arith.constant 0 : index
      %c0_133 = arith.constant 0 : index
      %332 = vector.load %arg10[%c0_132, %c0_133] : memref<1x1xf32, #tpu.memory_space<vmem>>, vector<1x1xf32>
      %333 = vector.broadcast %332 : vector<1x1xf32> to vector<8x1xf32>
      %334 = arith.addf %331, %333 : vector<8x1xf32>
      %c0_134 = arith.constant 0 : index
      %c0_135 = arith.constant 0 : index
      %335 = vector.load %arg11[%c0_134, %c0_135] : memref<8x1xf32, #tpu.memory_space<vmem>>, vector<8x1xf32>
      tpu.vector_store %arg11[%c0_134, %c0_135], %334 {strides = array<i32>} : memref<8x1xf32, #tpu.memory_space<vmem>>, vector<8x1xf32>,
    } else {
    }
    return
  }
  func.func @transform_0(%arg0: i32, %arg1: i32) -> (i32, i32, i32) {
    %c0_i32 = arith.constant 0 : i32
    %c0_i32_0 = arith.constant 0 : i32
    return %arg1, %arg0, %c0_i32 : i32, i32, i32
  }
  func.func @transform_1(%arg0: i32, %arg1: i32) -> (i32, i32) {
    %c0_i32 = arith.constant 0 : i32
    %c0_i32_0 = arith.constant 0 : i32
    %c0_i32_1 = arith.constant 0 : i32
    return %c0_i32, %c0_i32_0 : i32, i32
  }
  func.func @transform_2(%arg0: i32, %arg1: i32) -> (i32, i32) {
    %c0_i32 = arith.constant 0 : i32
    %c0_i32_0 = arith.constant 0 : i32
    %c0_i32_1 = arith.constant 0 : i32
    return %c0_i32, %c0_i32_0 : i32, i32
  }
  func.func @transform_3(%arg0: i32, %arg1: i32) -> (i32, i32) {
    %c0_i32 = arith.constant 0 : i32
    %c0_i32_0 = arith.constant 0 : i32
    %c0_i32_1 = arith.constant 0 : i32
    return %c0_i32, %c0_i32_0 : i32, i32
  }
  func.func @transform_4(%arg0: i32, %arg1: i32) -> (i32, i32) {
    %c0_i32 = arith.constant 0 : i32
    %c0_i32_0 = arith.constant 0 : i32
    %c0_i32_1 = arith.constant 0 : i32
    return %c0_i32, %c0_i32_0 : i32, i32
  }
  func.func @transform_5(%arg0: i32, %arg1: i32) -> (i32, i32) {
    %c0_i32 = arith.constant 0 : i32
    %c0_i32_0 = arith.constant 0 : i32
    %c0_i32_1 = arith.constant 0 : i32
    return %c0_i32, %c0_i32_0 : i32, i32
  }
  func.func @transform_6(%arg0: i32, %arg1: i32) -> (i32, i32) {
    %c0_i32 = arith.constant 0 : i32
    %c0_i32_0 = arith.constant 0 : i32
    %c0_i32_1 = arith.constant 0 : i32
    return %c0_i32, %c0_i32_0 : i32, i32
  }
  func.func @transform_7(%arg0: i32, %arg1: i32) -> (i32, i32) {
    %c0_i32 = arith.constant 0 : i32
    %c0_i32_0 = arith.constant 0 : i32
    %c0_i32_1 = arith.constant 0 : i32
    return %c0_i32, %c0_i32_0 : i32, i32
  }
  func.func @transform_8(%arg0: i32, %arg1: i32) -> (i32, i32) {
    %c0_i32 = arith.constant 0 : i32
    %c0_i32_0 = arith.constant 0 : i32
    %c0_i32_1 = arith.constant 0 : i32
    return %c0_i32, %c0_i32_0 : i32, i32
  }
  func.func @transform_9(%arg0: i32, %arg1: i32) -> (i32, i32) {
    %c0_i32 = arith.constant 0 : i32
    %c0_i32_0 = arith.constant 0 : i32
    return %arg0, %c0_i32 : i32, i32
  }
}

</mosaic_0001>

<llo_original>
// kernel: multi_lstm_forward.1
$region0: #{multi_lstm_forward.1}
  #allocation0 [shape = 'u32[]', space=smem, size = 0x4, offset = 0x4, fixed_abs, tag = 'smem constant byte address 0x4 - core index']
  #allocation1 [shape = 'u32[144,128]{1,0:T(1,128)}', space=vmem, size = 0x12000, scoped, tag = 'internal scratch']
  #allocation2 [shape = 'f32[4,8,512]{2,1,0:T(8,128)}', space=vmem, size = 0x10000, scoped, tag = 'scratch operand']
  #allocation3 [shape = 'f32[8,128]{1,0:T(8,128)}', space=vmem, size = 0x1000, scoped, tag = 'scratch operand']
  #allocation4 [shape = 'f32[8,128]{1,0:T(8,128)}', space=vmem, size = 0x1000, scoped, tag = 'scratch operand']
  #allocation5 [shape = 'f32[8,128]{1,0:T(8,128)}', space=vmem, size = 0x1000, scoped, tag = 'scratch operand']
  #allocation6 [shape = 'f32[8,128]{1,0:T(8,128)}', space=vmem, size = 0x1000, scoped, tag = 'scratch operand']
  #allocation7 [shape = 'f32[1,1]{1,0:T(1,128)S(1)}', space=vmem, size = 0x200, scoped, tag = 'scoped memory for multi_lstm_forward.1']
  %s0 = inlined_call_operand.vmem [shape: bf16[8,8,4], index: 0, kind: input, shape index: {}]
  %s1 = inlined_call_operand.vmem [shape: bf16[4,512], index: 1, kind: input, shape index: {}]
  %s2 = inlined_call_operand.hbm [shape: bf16[128,512], index: 2, kind: input, shape index: {}]
  %s3 = inlined_call_operand.vmem [shape: f32[1,512], index: 3, kind: input, shape index: {}]
  %s4 = inlined_call_operand.hbm [shape: bf16[128,512], index: 4, kind: input, shape index: {}]
  %s5 = inlined_call_operand.hbm [shape: bf16[128,512], index: 5, kind: input, shape index: {}]
  %s6 = inlined_call_operand.vmem [shape: f32[1,512], index: 6, kind: input, shape index: {}]
  %s7 = inlined_call_operand.vmem [shape: f32[1,128], index: 7, kind: input, shape index: {}]
  %s8 = inlined_call_operand.<no memory space> [shape: f32[1,1], index: 8, kind: input, shape index: {}]
  %s9 = inlined_call_operand.vmem [shape: f32[8,1], index: 9, kind: output, shape index: {}]
  %s10 = sld [smem:[#allocation0]]
  $region89: #{multi_lstm_forward.1} parent=0
    _
  %s12 = ssub.s32 1, %s10
  %s13 = scalar_select 0, %s12, %s10
  %v14 = vstv %s8
  %15 = vst [vmem:[#allocation7] sm:$0x1] %v14
  $region1: #{multi_lstm_forward.1} parent=0
    #allocation8 [shape = 'u8[131072]{0}', space=vmem, size = 0x20000, scoped, tag = 'input window, operand 2, single buffered']
    #allocation9 [shape = 's32[2]{0}', space=sflag, size = 0x8, scoped, tag = 'scoped memory for multi_lstm_forward.1']
    #allocation10 [shape = 'u8[131072]{0}', space=vmem, size = 0x20000, scoped, tag = 'input window, operand 4, single buffered']
    #allocation11 [shape = 's32[1]{0}', space=sflag, size = 0x4, scoped, tag = 'scoped memory for multi_lstm_forward.1']
    #allocation12 [shape = 'u8[131072]{0}', space=vmem, size = 0x20000, scoped, tag = 'input window, operand 5, single buffered']
    %16 = vsyncpa [#allocation9], 0
    %17 = vsyncpa [#allocation11], 0
    loop: start=0, step=1, limit=4
    $region2: #{multi_lstm_forward.1} parent=1 // loop_pre_header
      _
    $region3: #{multi_lstm_forward.1} parent=1 // loop_header
      %s19 = sphi 0, %s23
      %p20 = scmp.ge.s32.totalorder %s19, 4
      %s26 = sphi 0, %s38
      %s27 = sphi 0, %s34
      %s28 = sphi 0, %s26
      %s29 = sphi 0, %s27
      %s30 = sphi 0, %s28
      %s31 = sphi 0, %s29
      %s43 = sphi 0, %s45
      %s46 = sphi 0, %s43
      %s47 = sphi 0, %s46
      %s63 = sphi 0, %s47
      %s67 = sphi 0, %s67
      %s69 = sphi 0, %s67
      %s70 = sphi 0, %s69
      %s84 = sphi 0, %s70
      %s88 = sphi 0, %s88
      %s90 = sphi 0, %s88
      %s91 = sphi 0, %s90
      %s105 = sphi 0, %s91
      %s109 = sphi 0, %s109
      %s111 = sphi 0, %s109
      %s112 = sphi 0, %s111
      %s126 = sphi 0, %s112
      %s130 = sphi 0, %s130
      %s132 = sphi 0, %s130
      %s133 = sphi 0, %s132
      %s147 = sphi 0, %s133
      %s151 = sphi 0, %s151
      %s153 = sphi 0, %s151
      %s154 = sphi 0, %s153
      %s168 = sphi 0, %s154
      %s172 = sphi 0, %s172
      %s174 = sphi 0, %s172
      %s175 = sphi 0, %s174
      %s189 = sphi 0, %s175
      %s193 = sphi 0, %s193
      %s195 = sphi 0, %s193
      %s196 = sphi 0, %s195
      %s210 = sphi 0, %s196
      %s214 = sphi 0, %s214
      %s216 = sphi 0, %s214
      %s217 = sphi 0, %s216
      %s231 = sphi 0, %s217
      %s237 = sphi 0, %s239
      %s240 = sphi 0, %s237
      %s241 = sphi 0, %s240
      %s257 = sphi 0, %s241
    $region4: #{multi_lstm_forward.1} parent=1 // loop_header_branch
      %22 = sbr.rel (%p20) target = $region8
    $region5: #{multi_lstm_forward.1} parent=1 // loop_body
      %s24 = ssub.s32 %s19, 1
      %s25 = ssub.s32 %s19, 2
      %s32 = sadd.s32 1, %s27
      %p33 = scmp.ge.s32.totalorder %s32, 2
      %s34 = scalar_select %p33, 0, %s32
      %s35 = sadd.s32 1, %s26
      %s36 = scalar_select %p33, %s35, %s26
      %p37 = scmp.ge.s32.totalorder %s36, 1
      %s38 = scalar_select %p37, 0, %s36
      %s39 = ssub.s32 %s27, %s34
      %s40 = ssub.s32 %s26, %s38
      %s41 = sor.u32 %s39, %s40
      %p42 = scmp.eq.s32.totalorder %s41, 0
      %s44 = sadd.s32 %s43, 1
      %s45 = scalar_select %p42, %s43, %s44
      %p48 = pneg %p42
      %p49 = scmp.eq.s32.totalorder %s19, 1
      %p50 = por %p48, %p49
      %p51 = scmp.ne.s32.totalorder %s43, %s46
      %p52 = scmp.eq.s32.totalorder %s19, 0
      %p53 = por %p51, %p52
      %p54 = scmp.ne.s32.totalorder %s43, %s46
      %p55 = scmp.eq.s32.totalorder %s24, 1
      %p56 = por %p54, %p55
      %p57 = scmp.ne.s32.totalorder %s46, %s47
      %p58 = scmp.eq.s32.totalorder %s24, 0
      %p59 = por %p57, %p58
      %p60 = scmp.ne.s32.totalorder %s46, %s47
      %p61 = scmp.eq.s32.totalorder %s25, 1
      %p62 = por %p60, %p61
      %p64 = scmp.ne.s32.totalorder %s47, %s63
      %p65 = scmp.eq.s32.totalorder %s25, 0
      %p66 = por %p64, %p65
      %s68 = sadd.s32 %s67, 1
      %p71 = scmp.eq.s32.totalorder %s19, 1
      %p72 = scmp.ne.s32.totalorder %s67, %s69
      %p73 = scmp.eq.s32.totalorder %s19, 0
      %p74 = por %p72, %p73
      %p75 = scmp.ne.s32.totalorder %s67, %s69
      %p76 = scmp.eq.s32.totalorder %s24, 1
      %p77 = por %p75, %p76
      %p78 = scmp.ne.s32.totalorder %s69, %s70
      %p79 = scmp.eq.s32.totalorder %s24, 0
      %p80 = por %p78, %p79
      %p81 = scmp.ne.s32.totalorder %s69, %s70
      %p82 = scmp.eq.s32.totalorder %s25, 1
      %p83 = por %p81, %p82
      %p85 = scmp.ne.s32.totalorder %s70, %s84
      %p86 = scmp.eq.s32.totalorder %s25, 0
      %p87 = por %p85, %p86
      %s89 = sadd.s32 %s88, 1
      %p92 = scmp.eq.s32.totalorder %s19, 1
      %p93 = scmp.ne.s32.totalorder %s88, %s90
      %p94 = scmp.eq.s32.totalorder %s19, 0
      %p95 = por %p93, %p94
      %p96 = scmp.ne.s32.totalorder %s88, %s90
      %p97 = scmp.eq.s32.totalorder %s24, 1
      %p98 = por %p96, %p97
      %p99 = scmp.ne.s32.totalorder %s90, %s91
      %p100 = scmp.eq.s32.totalorder %s24, 0
      %p101 = por %p99, %p100
      %p102 = scmp.ne.s32.totalorder %s90, %s91
      %p103 = scmp.eq.s32.totalorder %s25, 1
      %p104 = por %p102, %p103
      %p106 = scmp.ne.s32.totalorder %s91, %s105
      %p107 = scmp.eq.s32.totalorder %s25, 0
      %p108 = por %p106, %p107
      %s110 = sadd.s32 %s109, 1
      %p113 = scmp.eq.s32.totalorder %s19, 1
      %p114 = scmp.ne.s32.totalorder %s109, %s111
      %p115 = scmp.eq.s32.totalorder %s19, 0
      %p116 = por %p114, %p115
      %p117 = scmp.ne.s32.totalorder %s109, %s111
      %p118 = scmp.eq.s32.totalorder %s24, 1
      %p119 = por %p117, %p118
      %p120 = scmp.ne.s32.totalorder %s111, %s112
      %p121 = scmp.eq.s32.totalorder %s24, 0
      %p122 = por %p120, %p121
      %p123 = scmp.ne.s32.totalorder %s111, %s112
      %p124 = scmp.eq.s32.totalorder %s25, 1
      %p125 = por %p123, %p124
      %p127 = scmp.ne.s32.totalorder %s112, %s126
      %p128 = scmp.eq.s32.totalorder %s25, 0
      %p129 = por %p127, %p128
      %s131 = sadd.s32 %s130, 1
      %p134 = scmp.eq.s32.totalorder %s19, 1
      %p135 = scmp.ne.s32.totalorder %s130, %s132
      %p136 = scmp.eq.s32.totalorder %s19, 0
      %p137 = por %p135, %p136
      %p138 = scmp.ne.s32.totalorder %s130, %s132
      %p139 = scmp.eq.s32.totalorder %s24, 1
      %p140 = por %p138, %p139
      %p141 = scmp.ne.s32.totalorder %s132, %s133
      %p142 = scmp.eq.s32.totalorder %s24, 0
      %p143 = por %p141, %p142
      %p144 = scmp.ne.s32.totalorder %s132, %s133
      %p145 = scmp.eq.s32.totalorder %s25, 1
      %p146 = por %p144, %p145
      %p148 = scmp.ne.s32.totalorder %s133, %s147
      %p149 = scmp.eq.s32.totalorder %s25, 0
      %p150 = por %p148, %p149
      %s152 = sadd.s32 %s151, 1
      %p155 = scmp.eq.s32.totalorder %s19, 1
      %p156 = scmp.ne.s32.totalorder %s151, %s153
      %p157 = scmp.eq.s32.totalorder %s19, 0
      %p158 = por %p156, %p157
      %p159 = scmp.ne.s32.totalorder %s151, %s153
      %p160 = scmp.eq.s32.totalorder %s24, 1
      %p161 = por %p159, %p160
      %p162 = scmp.ne.s32.totalorder %s153, %s154
      %p163 = scmp.eq.s32.totalorder %s24, 0
      %p164 = por %p162, %p163
      %p165 = scmp.ne.s32.totalorder %s153, %s154
      %p166 = scmp.eq.s32.totalorder %s25, 1
      %p167 = por %p165, %p166
      %p169 = scmp.ne.s32.totalorder %s154, %s168
      %p170 = scmp.eq.s32.totalorder %s25, 0
      %p171 = por %p169, %p170
      %s173 = sadd.s32 %s172, 1
      %p176 = scmp.eq.s32.totalorder %s19, 1
      %p177 = scmp.ne.s32.totalorder %s172, %s174
      %p178 = scmp.eq.s32.totalorder %s19, 0
      %p179 = por %p177, %p178
      %p180 = scmp.ne.s32.totalorder %s172, %s174
      %p181 = scmp.eq.s32.totalorder %s24, 1
      %p182 = por %p180, %p181
      %p183 = scmp.ne.s32.totalorder %s174, %s175
      %p184 = scmp.eq.s32.totalorder %s24, 0
      %p185 = por %p183, %p184
      %p186 = scmp.ne.s32.totalorder %s174, %s175
      %p187 = scmp.eq.s32.totalorder %s25, 1
      %p188 = por %p186, %p187
      %p190 = scmp.ne.s32.totalorder %s175, %s189
      %p191 = scmp.eq.s32.totalorder %s25, 0
      %p192 = por %p190, %p191
      %s194 = sadd.s32 %s193, 1
      %p197 = scmp.eq.s32.totalorder %s19, 1
      %p198 = scmp.ne.s32.totalorder %s193, %s195
      %p199 = scmp.eq.s32.totalorder %s19, 0
      %p200 = por %p198, %p199
      %p201 = scmp.ne.s32.totalorder %s193, %s195
      %p202 = scmp.eq.s32.totalorder %s24, 1
      %p203 = por %p201, %p202
      %p204 = scmp.ne.s32.totalorder %s195, %s196
      %p205 = scmp.eq.s32.totalorder %s24, 0
      %p206 = por %p204, %p205
      %p207 = scmp.ne.s32.totalorder %s195, %s196
      %p208 = scmp.eq.s32.totalorder %s25, 1
      %p209 = por %p207, %p208
      %p211 = scmp.ne.s32.totalorder %s196, %s210
      %p212 = scmp.eq.s32.totalorder %s25, 0
      %p213 = por %p211, %p212
      %s215 = sadd.s32 %s214, 1
      %p218 = scmp.eq.s32.totalorder %s19, 1
      %p219 = scmp.ne.s32.totalorder %s214, %s216
      %p220 = scmp.eq.s32.totalorder %s19, 0
      %p221 = por %p219, %p220
      %p222 = scmp.ne.s32.totalorder %s214, %s216
      %p223 = scmp.eq.s32.totalorder %s24, 1
      %p224 = por %p222, %p223
      %p225 = scmp.ne.s32.totalorder %s216, %s217
      %p226 = scmp.eq.s32.totalorder %s24, 0
      %p227 = por %p225, %p226
      %p228 = scmp.ne.s32.totalorder %s216, %s217
      %p229 = scmp.eq.s32.totalorder %s25, 1
      %p230 = por %p228, %p229
      %p232 = scmp.ne.s32.totalorder %s217, %s231
      %p233 = scmp.eq.s32.totalorder %s25, 0
      %p234 = por %p232, %p233
      %s235 = ssub.s32 %s26, %s38
      %p236 = scmp.eq.s32.totalorder %s235, 0
      %s238 = sadd.s32 %s237, 1
      %s239 = scalar_select %p236, %s237, %s238
      %p242 = pneg %p236
      %p243 = scmp.eq.s32.totalorder %s19, 1
      %p244 = por %p242, %p243
      %p245 = scmp.ne.s32.totalorder %s237, %s240
      %p246 = scmp.eq.s32.totalorder %s19, 0
      %p247 = por %p245, %p246
      %p248 = scmp.ne.s32.totalorder %s237, %s240
      %p249 = scmp.eq.s32.totalorder %s24, 1
      %p250 = por %p248, %p249
      %p251 = scmp.ne.s32.totalorder %s240, %s241
      %p252 = scmp.eq.s32.totalorder %s24, 0
      %p253 = por %p251, %p252
      %p254 = scmp.ne.s32.totalorder %s240, %s241
      %p255 = scmp.eq.s32.totalorder %s25, 1
      %p256 = por %p254, %p255
      %p258 = scmp.ne.s32.totalorder %s241, %s257
      %p259 = scmp.eq.s32.totalorder %s25, 0
      %p260 = por %p258, %p259
      %p261 = scmp.le.s32.totalorder 1, %s19
      %p262 = scmp.lt.s32.totalorder %s19, 3
      %p263 = pnand %p261, %p262
      %p264 = pneg %p263
      // Predicated region
      $region9: #{multi_lstm_forward.1} parent=5 // pred_check
        _
      $region10: #{multi_lstm_forward.1} parent=5 // pred_check_branch
        %266 = sbr.rel (%p263) target = $region12
      $region11: #{multi_lstm_forward.1} parent=5 // pred_region
        %s267 = ssub.s32 %s19, 1
        // Predicated region
        $region13: #{multi_lstm_forward.1} parent=11 // pred_check
          %p268 = pneg %p80
        $region14: #{multi_lstm_forward.1} parent=11 // pred_check_branch
          %270 = sbr.rel (%p268) target = $region16
        $region15: #{multi_lstm_forward.1} parent=11 // pred_region
          _
        $region16: #{multi_lstm_forward.1} parent=11 // pred_fallthru
          _
        // Predicated region
        $region17: #{multi_lstm_forward.1} parent=11 // pred_check
          %p271 = pneg %p101
        $region18: #{multi_lstm_forward.1} parent=11 // pred_check_branch
          %273 = sbr.rel (%p271) target = $region20
        $region19: #{multi_lstm_forward.1} parent=11 // pred_region
          %s275 = ssub.s32 4096, 4096
          %276 = vsyncadd [#allocation9], %s275
          %s277 = sshll.u32 [#allocation8], 4
          %s278 = int_to_ptr.vmem [resolvable:$true] %s277
          %283 = dma.hbm_to_vmem [thread:$0]  %s2, 4096, %s278, [#allocation9], 256, 256, 16
        $region20: #{multi_lstm_forward.1} parent=11 // pred_fallthru
          _
        // Predicated region
        $region21: #{multi_lstm_forward.1} parent=11 // pred_check
          %p284 = pneg %p122
        $region22: #{multi_lstm_forward.1} parent=11 // pred_check_branch
          %286 = sbr.rel (%p284) target = $region24
        $region23: #{multi_lstm_forward.1} parent=11 // pred_region
          _
        $region24: #{multi_lstm_forward.1} parent=11 // pred_fallthru
          _
        // Predicated region
        $region25: #{multi_lstm_forward.1} parent=11 // pred_check
          %p287 = pneg %p143
        $region26: #{multi_lstm_forward.1} parent=11 // pred_check_branch
          %289 = sbr.rel (%p287) target = $region28
        $region27: #{multi_lstm_forward.1} parent=11 // pred_region
          %s291 = ssub.s32 4096, 4096
          %292 = vsyncadd [#allocation11], %s291
          %s293 = sshll.u32 [#allocation10], 4
          %s294 = int_to_ptr.vmem [resolvable:$true] %s293
          %299 = dma.hbm_to_vmem [thread:$0]  %s4, 4096, %s294, [#allocation11], 256, 256, 16
        $region28: #{multi_lstm_forward.1} parent=11 // pred_fallthru
          _
        // Predicated region
        $region29: #{multi_lstm_forward.1} parent=11 // pred_check
          %p300 = pneg %p164
        $region30: #{multi_lstm_forward.1} parent=11 // pred_check_branch
          %302 = sbr.rel (%p300) target = $region32
        $region31: #{multi_lstm_forward.1} parent=11 // pred_region
          %s304 = ssub.s32 4096, 4096
          %305 = vsyncadd [#allocation11], %s304
          %s306 = sshll.u32 [#allocation12], 4
          %s307 = int_to_ptr.vmem [resolvable:$true] %s306
          %312 = dma.hbm_to_vmem [thread:$0]  %s5, 4096, %s307, [#allocation11], 256, 256, 16
        $region32: #{multi_lstm_forward.1} parent=11 // pred_fallthru
          _
        // Predicated region
        $region33: #{multi_lstm_forward.1} parent=11 // pred_check
          %p313 = pneg %p185
        $region34: #{multi_lstm_forward.1} parent=11 // pred_check_branch
          %315 = sbr.rel (%p313) target = $region36
        $region35: #{multi_lstm_forward.1} parent=11 // pred_region
          _
        $region36: #{multi_lstm_forward.1} parent=11 // pred_fallthru
          _
        // Predicated region
        $region37: #{multi_lstm_forward.1} parent=11 // pred_check
          %p316 = pneg %p206
        $region38: #{multi_lstm_forward.1} parent=11 // pred_check_branch
          %318 = sbr.rel (%p316) target = $region40
        $region39: #{multi_lstm_forward.1} parent=11 // pred_region
          _
        $region40: #{multi_lstm_forward.1} parent=11 // pred_fallthru
          _
        // Predicated region
        $region41: #{multi_lstm_forward.1} parent=11 // pred_check
          %p319 = pneg %p227
        $region42: #{multi_lstm_forward.1} parent=11 // pred_check_branch
          %321 = sbr.rel (%p319) target = $region44
        $region43: #{multi_lstm_forward.1} parent=11 // pred_region
          _
        $region44: #{multi_lstm_forward.1} parent=11 // pred_fallthru
          _
      $region12: #{multi_lstm_forward.1} parent=5 // pred_fallthru
        _
      %p322 = scmp.lt.s32.totalorder %s19, 2
      // Predicated region
      $region45: #{multi_lstm_forward.1} parent=5 // pred_check
        %p323 = pneg %p322
      $region46: #{multi_lstm_forward.1} parent=5 // pred_check_branch
        %325 = sbr.rel (%p323) target = $region48
      $region47: #{multi_lstm_forward.1} parent=5 // pred_region
        // Predicated region
        $region49: #{multi_lstm_forward.1} parent=47 // pred_check
          %p326 = pneg %p53
        $region50: #{multi_lstm_forward.1} parent=47 // pred_check_branch
          %328 = sbr.rel (%p326) target = $region52
        $region51: #{multi_lstm_forward.1} parent=47 // pred_region
          %s329 = smul.u32 4, %s27
          %p330 = scmp.lt.s32.totalorder %s329, 7
          %s331 = scalar_select %p330, %s329, 7
          %p332 = scmp.lt.s32.totalorder %s26, 0
          %s333 = scalar_select %p332, %s26, 0
          %s334 = sadd.s32 %s333, %s331
          %s335 = smul.addr %s334, 4
          %s336 = scalar_lea.vmem %s0, %s335
          %s337 = smul.u32 4, %s27
        $region52: #{multi_lstm_forward.1} parent=47 // pred_fallthru
          _
      $region48: #{multi_lstm_forward.1} parent=5 // pred_fallthru
        _
      %p338 = scmp.le.s32.totalorder 1, %s19
      %p339 = scmp.lt.s32.totalorder %s19, 3
      %p340 = pnand %p338, %p339
      %p341 = pneg %p340
      // Predicated region
      $region53: #{multi_lstm_forward.1} parent=5 // pred_check
        _
      $region54: #{multi_lstm_forward.1} parent=5 // pred_check_branch
        %343 = sbr.rel (%p340) target = $region56
      $region55: #{multi_lstm_forward.1} parent=5 // pred_region
        %s344 = ssub.s32 %s19, 1
        // Predicated region
        $region57: #{multi_lstm_forward.1} parent=55 // pred_check
          %p345 = pneg %p101
        $region58: #{multi_lstm_forward.1} parent=55 // pred_check_branch
          %347 = sbr.rel (%p345) target = $region60
        $region59: #{multi_lstm_forward.1} parent=55 // pred_region
          %348 = dma.done [#allocation9], 4096
        $region60: #{multi_lstm_forward.1} parent=55 // pred_fallthru
          _
        // Predicated region
        $region61: #{multi_lstm_forward.1} parent=55 // pred_check
          %p349 = pneg %p143
        $region62: #{multi_lstm_forward.1} parent=55 // pred_check_branch
          %351 = sbr.rel (%p349) target = $region64
        $region63: #{multi_lstm_forward.1} parent=55 // pred_region
          %352 = dma.done [#allocation11], 4096
        $region64: #{multi_lstm_forward.1} parent=55 // pred_fallthru
          _
        // Predicated region
        $region65: #{multi_lstm_forward.1} parent=55 // pred_check
          %p353 = pneg %p164
        $region66: #{multi_lstm_forward.1} parent=55 // pred_check_branch
          %355 = sbr.rel (%p353) target = $region68
        $region67: #{multi_lstm_forward.1} parent=55 // pred_region
          %356 = dma.done [#allocation11], 4096
        $region68: #{multi_lstm_forward.1} parent=55 // pred_fallthru
          _
        %s357 = smul.u32 4, %s29
        %p358 = scmp.lt.s32.totalorder %s357, 7
        %s359 = scalar_select %p358, %s357, 7
        %p360 = scmp.lt.s32.totalorder %s28, 0
        %s361 = scalar_select %p360, %s28, 0
        %s362 = sadd.s32 %s361, %s359
        %s363 = smul.addr %s362, 4
        %s364 = scalar_lea.vmem %s0, %s363
        %p365 = pneg %p59
        %p366 = pneg %p56
        %p367 = pneg %p80
        %p368 = pneg %p77
        %p369 = pneg %p101
        %p370 = pneg %p98
        %p371 = pneg %p122
        %p372 = pneg %p119
        %p373 = pneg %p143
        %p374 = pneg %p140
        %p375 = pneg %p164
        %p376 = pneg %p161
        %p377 = pneg %p185
        %p378 = pneg %p182
        %p379 = pneg %p206
        %p380 = pneg %p203
        %p381 = pneg %p227
        %p382 = pneg %p224
        %p383 = pneg %p253
        %p384 = pneg %p250
        %p385 = scmp.lt.s32.totalorder %s28, 0
        %s386 = scalar_select %p385, %s28, 0
        %s387 = smul.addr %s386, 8
        %s388 = scalar_lea.vmem %s9, %s387
        %s389 = smul.u32 4, %s29
        %p390 = scmp.lt.s32.totalorder %s389, 7
        %s391 = scalar_select %p390, %s389, 7
        %p392 = scmp.lt.s32.totalorder %s28, 0
        %s393 = scalar_select %p392, %s28, 0
        %s394 = sadd.s32 %s393, %s391
        %s395 = smul.addr %s394, 4
        %s396 = scalar_lea.vmem %s0, %s395
        %s397 = smul.u32 4, %s29
        %p398 = scmp.lt.s32.totalorder %s28, 0
        %s399 = scalar_select %p398, %s28, 0
        %s400 = smul.addr %s399, 8
        %s401 = scalar_lea.vmem %s9, %s400
        %p403 = scmp.eq.s32.totalorder %s29, 0
        // Predicated region
        $region69: #{multi_lstm_forward.1} parent=55 // pred_check
          %p404 = pneg %p403
        $region70: #{multi_lstm_forward.1} parent=55 // pred_check_branch
          %406 = sbr.rel (%p404) target = $region72
        $region71: #{multi_lstm_forward.1} parent=55 // pred_region
          %407 = vst [vmem:[#allocation3] sm:$0xff] 0.0
          %408 = vst [vmem:[#allocation4] sm:$0xff] 0.0
          %409 = vst [vmem:[#allocation5] sm:$0xff] 0.0
          %410 = vst [vmem:[#allocation6] sm:$0xff] 0.0
        $region72: #{multi_lstm_forward.1} parent=55 // pred_fallthru
          _
        %v411 = vld [vmem:[%s396] sm:$0xf]
        %v412 = vld [vmem:[%s396 + $0x4] sm:$0xf]
        %v413 = vld [vmem:[%s396 + $0x8] sm:$0xf]
        %v414 = vld [vmem:[%s396 + $0xc] sm:$0xf]
        %v415 = vld [vmem:[%s1] sm:$0xff]
        %v416 = vld [vmem:[%s3] sm:$0xf]
        %v418 = vlaneseq
        %v419 = vshrl.u32 %v418, 7
        %v420 = vsub.s32 0, %v419
        %v421 = vrot.slane %v416, %v420
        %v422 = vlaneseq
        %v423 = vshrl.u32 %v422, 7
        %v424 = vsub.s32 1, %v423
        %v425 = vrot.slane %v416, %v424
        %v426 = vlaneseq
        %v427 = vshrl.u32 %v426, 7
        %v428 = vsub.s32 2, %v427
        %v429 = vrot.slane %v416, %v428
        %v430 = vlaneseq
        %v431 = vshrl.u32 %v430, 7
        %v432 = vsub.s32 3, %v431
        %v433 = vrot.slane %v416, %v432
        %v442 = vunpack.c.l.b16 %v411
        %v443 = vunpack.c.l.b16 %v412
        %v444 = vunpack.c.l.b16 %v413
        %v445 = vunpack.c.l.b16 %v414
        %v446 = vpack.c.b16 %v443, %v442
        %v447 = vpack.c.b16 %v445, %v444
        %v449 = vcombine.high %v415, %v415
        %v451 = vunpack.c.l.s4 1983009808
        %v452 = vunpack.c.0.s8 %v451
        %v453 = vlaneseq
        %v454 = vshrl.u32 %v453, 7
        %v455 = vsub.s32 %v452, %v454
        %v456 = vrot.slane %v415, %v455
        %v458 = vunpack.c.l.s4 1983009808
        %v459 = vunpack.c.0.s8 %v458
        %v460 = vlaneseq
        %v461 = vshrl.u32 %v460, 7
        %v462 = vsub.s32 %v459, %v461
        %v463 = vrot.slane %v449, %v462
        %v464 = vcombine.high %v456, %v456
        %v465 = vcombine.high %v463, %v463
        %vm466 = vcmask 31744
        %v468 = vsel %vm466, %v446, 0
        %v471 = vsel %vm466, %v447, 0
        %vm473 = vcmask 1041408
        %v475 = vsel %vm473, %v456, 0
        %v478 = vsel %vm473, %v464, 0
        %v481 = vsel %vm473, %v463, 0
        %v484 = vsel %vm473, %v465, 0
        %486 = vmatprep.subr.bf16.mxu0 %v478
        %487 = vmatpush1.bf16.msra.mxu0 %v475
        %488 = vmatprep.subr.bf16.mxu0 0
        %489 = vmatpush1.bf16.msra.mxu0 0
        %490 = vmatprep.subr.bf16.mxu0 0
        %491 = vmatpush1.bf16.msra.mxu0 0
        %492 = vmatprep.subr.bf16.mxu0 0
        %493 = vmatpush1.bf16.msra.mxu0 0
        %494 = vmatprep.subr.bf16.mxu0 0
        %495 = vmatpush1.bf16.msra.mxu0 0
        %496 = vmatprep.subr.bf16.mxu0 0
        %497 = vmatpush1.bf16.msra.mxu0 0
        %498 = vmatprep.subr.bf16.mxu0 0
        %499 = vmatpush1.bf16.msra.mxu0 0
        %500 = vmatprep.subr.bf16.mxu0 0
        %501 = vmatpush1.bf16.msra.mxu0 0
        %502 = vmatprep.subr.bf16.mxu0 0
        %503 = vmatpush1.bf16.msra.mxu0 0
        %504 = vmatprep.subr.bf16.mxu0 0
        %505 = vmatpush1.bf16.msra.mxu0 0
        %506 = vmatprep.subr.bf16.mxu0 0
        %507 = vmatpush1.bf16.msra.mxu0 0
        %508 = vmatprep.subr.bf16.mxu0 0
        %509 = vmatpush1.bf16.msra.mxu0 0
        %510 = vmatprep.subr.bf16.mxu0 0
        %511 = vmatpush1.bf16.msra.mxu0 0
        %512 = vmatprep.subr.bf16.mxu0 0
        %513 = vmatpush1.bf16.msra.mxu0 0
        %514 = vmatprep.subr.bf16.mxu0 0
        %515 = vmatpush1.bf16.msra.mxu0 0
        %516 = vmatprep.subr.bf16.mxu0 0
        %517 = vmatpush1.bf16.msra.mxu0 0
        %518 = vmatprep.mubr.bf16.mxu0 0
        %519 = vmatmul.mubr.bf16.gmra.mrb[0].mxu0 %v468
        %v520 = vpop.f32.mrb[0].mxu0
        %v521 = vadd.f32 %v421, %v520
        %v522 = vpop.f32.mrb[0].mxu0
        %v523 = vadd.f32 %v425, %v522
        %v524 = vpop.f32.mrb[0].mxu0
        %v525 = vadd.f32 %v421, %v524
        %v526 = vpop.f32.mrb[0].mxu0
        %v527 = vadd.f32 %v425, %v526
        %528 = vmatprep.mubr.bf16.mxu0 0
        %529 = vmatmul.mubr.bf16.gmra.mrb[0].mxu0 %v471
        %v530 = vpop.f32.mrb[0].mxu0
        %v531 = vadd.f32 %v421, %v530
        %v532 = vpop.f32.mrb[0].mxu0
        %v533 = vadd.f32 %v425, %v532
        %v534 = vpop.f32.mrb[0].mxu0
        %v535 = vadd.f32 %v421, %v534
        %v536 = vpop.f32.mrb[0].mxu0
        %v537 = vadd.f32 %v425, %v536
        %538 = vdwg.mxu0
        %539 = vmatprep.subr.bf16.mxu0 %v484
        %540 = vmatpush1.bf16.msra.mxu0 %v481
        %541 = vmatprep.subr.bf16.mxu0 0
        %542 = vmatpush1.bf16.msra.mxu0 0
        %543 = vmatprep.subr.bf16.mxu0 0
        %544 = vmatpush1.bf16.msra.mxu0 0
        %545 = vmatprep.subr.bf16.mxu0 0
        %546 = vmatpush1.bf16.msra.mxu0 0
        %547 = vmatprep.subr.bf16.mxu0 0
        %548 = vmatpush1.bf16.msra.mxu0 0
        %549 = vmatprep.subr.bf16.mxu0 0
        %550 = vmatpush1.bf16.msra.mxu0 0
        %551 = vmatprep.subr.bf16.mxu0 0
        %552 = vmatpush1.bf16.msra.mxu0 0
        %553 = vmatprep.subr.bf16.mxu0 0
        %554 = vmatpush1.bf16.msra.mxu0 0
        %555 = vmatprep.subr.bf16.mxu0 0
        %556 = vmatpush1.bf16.msra.mxu0 0
        %557 = vmatprep.subr.bf16.mxu0 0
        %558 = vmatpush1.bf16.msra.mxu0 0
        %559 = vmatprep.subr.bf16.mxu0 0
        %560 = vmatpush1.bf16.msra.mxu0 0
        %561 = vmatprep.subr.bf16.mxu0 0
        %562 = vmatpush1.bf16.msra.mxu0 0
        %563 = vmatprep.subr.bf16.mxu0 0
        %564 = vmatpush1.bf16.msra.mxu0 0
        %565 = vmatprep.subr.bf16.mxu0 0
        %566 = vmatpush1.bf16.msra.mxu0 0
        %567 = vmatprep.subr.bf16.mxu0 0
        %568 = vmatpush1.bf16.msra.mxu0 0
        %569 = vmatprep.subr.bf16.mxu0 0
        %570 = vmatpush1.bf16.msra.mxu0 0
        %571 = vmatprep.mubr.bf16.mxu0 0
        %572 = vmatmul.mubr.bf16.gmra.mrb[0].mxu0 %v468
        %v573 = vpop.f32.mrb[0].mxu0
        %v574 = vadd.f32 %v429, %v573
        %v575 = vpop.f32.mrb[0].mxu0
        %v576 = vadd.f32 %v433, %v575
        %v577 = vpop.f32.mrb[0].mxu0
        %v578 = vadd.f32 %v429, %v577
        %v579 = vpop.f32.mrb[0].mxu0
        %v580 = vadd.f32 %v433, %v579
        %581 = vmatprep.mubr.bf16.mxu0 0
        %582 = vmatmul.mubr.bf16.gmra.mrb[0].mxu0 %v471
        %v583 = vpop.f32.mrb[0].mxu0
        %v584 = vadd.f32 %v429, %v583
        %v585 = vpop.f32.mrb[0].mxu0
        %v586 = vadd.f32 %v433, %v585
        %v587 = vpop.f32.mrb[0].mxu0
        %v588 = vadd.f32 %v429, %v587
        %v589 = vpop.f32.mrb[0].mxu0
        %v590 = vadd.f32 %v433, %v589
        %591 = vdwg.mxu0
        %592 = vst [vmem:[#allocation2] sm:$0xff] %v521
        %593 = vst [vmem:[#allocation2 + $0x8] sm:$0xff] %v523
        %594 = vst [vmem:[#allocation2 + $0x10] sm:$0xff] %v574
        %595 = vst [vmem:[#allocation2 + $0x18] sm:$0xff] %v576
        %596 = vst [vmem:[#allocation2 + $0x20] sm:$0xff] %v525
        %597 = vst [vmem:[#allocation2 + $0x28] sm:$0xff] %v527
        %598 = vst [vmem:[#allocation2 + $0x30] sm:$0xff] %v578
        %599 = vst [vmem:[#allocation2 + $0x38] sm:$0xff] %v580
        %600 = vst [vmem:[#allocation2 + $0x40] sm:$0xff] %v531
        %601 = vst [vmem:[#allocation2 + $0x48] sm:$0xff] %v533
        %602 = vst [vmem:[#allocation2 + $0x50] sm:$0xff] %v584
        %603 = vst [vmem:[#allocation2 + $0x58] sm:$0xff] %v586
        %604 = vst [vmem:[#allocation2 + $0x60] sm:$0xff] %v535
        %605 = vst [vmem:[#allocation2 + $0x68] sm:$0xff] %v537
        %606 = vst [vmem:[#allocation2 + $0x70] sm:$0xff] %v588
        %607 = vst [vmem:[#allocation2 + $0x78] sm:$0xff] %v590
        %v608 = vld [vmem:[#allocation8] sm:$0xff]
        %v609 = vld [vmem:[#allocation8 + $0x8] sm:$0xff]
        %v610 = vld [vmem:[#allocation8 + $0x10] sm:$0xff]
        %v611 = vld [vmem:[#allocation8 + $0x18] sm:$0xff]
        %v612 = vld [vmem:[#allocation8 + $0x20] sm:$0xff]
        %v613 = vld [vmem:[#allocation8 + $0x28] sm:$0xff]
        %v614 = vld [vmem:[#allocation8 + $0x30] sm:$0xff]
        %v615 = vld [vmem:[#allocation8 + $0x38] sm:$0xff]
        %v616 = vld [vmem:[#allocation8 + $0x40] sm:$0xff]
        %v617 = vld [vmem:[#allocation8 + $0x48] sm:$0xff]
        %v618 = vld [vmem:[#allocation8 + $0x50] sm:$0xff]
        %v619 = vld [vmem:[#allocation8 + $0x58] sm:$0xff]
        %v620 = vld [vmem:[#allocation8 + $0x60] sm:$0xff]
        %v621 = vld [vmem:[#allocation8 + $0x68] sm:$0xff]
        %v622 = vld [vmem:[#allocation8 + $0x70] sm:$0xff]
        %v623 = vld [vmem:[#allocation8 + $0x78] sm:$0xff]
        %v624 = vld [vmem:[#allocation8 + $0x80] sm:$0xff]
        %v625 = vld [vmem:[#allocation8 + $0x88] sm:$0xff]
        %v626 = vld [vmem:[#allocation8 + $0x90] sm:$0xff]
        %v627 = vld [vmem:[#allocation8 + $0x98] sm:$0xff]
        %v628 = vld [vmem:[#allocation8 + $0xa0] sm:$0xff]
        %v629 = vld [vmem:[#allocation8 + $0xa8] sm:$0xff]
        %v630 = vld [vmem:[#allocation8 + $0xb0] sm:$0xff]
        %v631 = vld [vmem:[#allocation8 + $0xb8] sm:$0xff]
        %v632 = vld [vmem:[#allocation8 + $0xc0] sm:$0xff]
        %v633 = vld [vmem:[#allocation8 + $0xc8] sm:$0xff]
        %v634 = vld [vmem:[#allocation8 + $0xd0] sm:$0xff]
        %v635 = vld [vmem:[#allocation8 + $0xd8] sm:$0xff]
        %v636 = vld [vmem:[#allocation8 + $0xe0] sm:$0xff]
        %v637 = vld [vmem:[#allocation8 + $0xe8] sm:$0xff]
        %v638 = vld [vmem:[#allocation8 + $0xf0] sm:$0xff]
        %v639 = vld [vmem:[#allocation8 + $0xf8] sm:$0xff]
        %v640 = vld [vmem:[#allocation10] sm:$0xff]
        %v641 = vld [vmem:[#allocation10 + $0x8] sm:$0xff]
        %v642 = vld [vmem:[#allocation10 + $0x10] sm:$0xff]
        %v643 = vld [vmem:[#allocation10 + $0x18] sm:$0xff]
        %v644 = vld [vmem:[#allocation10 + $0x20] sm:$0xff]
        %v645 = vld [vmem:[#allocation10 + $0x28] sm:$0xff]
        %v646 = vld [vmem:[#allocation10 + $0x30] sm:$0xff]
        %v647 = vld [vmem:[#allocation10 + $0x38] sm:$0xff]
        %v648 = vld [vmem:[#allocation10 + $0x40] sm:$0xff]
        %v649 = vld [vmem:[#allocation10 + $0x48] sm:$0xff]
        %v650 = vld [vmem:[#allocation10 + $0x50] sm:$0xff]
        %v651 = vld [vmem:[#allocation10 + $0x58] sm:$0xff]
        %v652 = vld [vmem:[#allocation10 + $0x60] sm:$0xff]
        %v653 = vld [vmem:[#allocation10 + $0x68] sm:$0xff]
        %v654 = vld [vmem:[#allocation10 + $0x70] sm:$0xff]
        %v655 = vld [vmem:[#allocation10 + $0x78] sm:$0xff]
        %v656 = vld [vmem:[#allocation10 + $0x80] sm:$0xff]
        %v657 = vld [vmem:[#allocation10 + $0x88] sm:$0xff]
        %v658 = vld [vmem:[#allocation10 + $0x90] sm:$0xff]
        %v659 = vld [vmem:[#allocation10 + $0x98] sm:$0xff]
        %v660 = vld [vmem:[#allocation10 + $0xa0] sm:$0xff]
        %v661 = vld [vmem:[#allocation10 + $0xa8] sm:$0xff]
        %v662 = vld [vmem:[#allocation10 + $0xb0] sm:$0xff]
        %v663 = vld [vmem:[#allocation10 + $0xb8] sm:$0xff]
        %v664 = vld [vmem:[#allocation10 + $0xc0] sm:$0xff]
        %v665 = vld [vmem:[#allocation10 + $0xc8] sm:$0xff]
        %v666 = vld [vmem:[#allocation10 + $0xd0] sm:$0xff]
        %v667 = vld [vmem:[#allocation10 + $0xd8] sm:$0xff]
        %v668 = vld [vmem:[#allocation10 + $0xe0] sm:$0xff]
        %v669 = vld [vmem:[#allocation10 + $0xe8] sm:$0xff]
        %v670 = vld [vmem:[#allocation10 + $0xf0] sm:$0xff]
        %v671 = vld [vmem:[#allocation10 + $0xf8] sm:$0xff]
        %v672 = vld [vmem:[#allocation12] sm:$0xff]
        %v673 = vld [vmem:[#allocation12 + $0x8] sm:$0xff]
        %v674 = vld [vmem:[#allocation12 + $0x10] sm:$0xff]
        %v675 = vld [vmem:[#allocation12 + $0x18] sm:$0xff]
        %v676 = vld [vmem:[#allocation12 + $0x20] sm:$0xff]
        %v677 = vld [vmem:[#allocation12 + $0x28] sm:$0xff]
        %v678 = vld [vmem:[#allocation12 + $0x30] sm:$0xff]
        %v679 = vld [vmem:[#allocation12 + $0x38] sm:$0xff]
        %v680 = vld [vmem:[#allocation12 + $0x40] sm:$0xff]
        %v681 = vld [vmem:[#allocation12 + $0x48] sm:$0xff]
        %v682 = vld [vmem:[#allocation12 + $0x50] sm:$0xff]
        %v683 = vld [vmem:[#allocation12 + $0x58] sm:$0xff]
        %v684 = vld [vmem:[#allocation12 + $0x60] sm:$0xff]
        %v685 = vld [vmem:[#allocation12 + $0x68] sm:$0xff]
        %v686 = vld [vmem:[#allocation12 + $0x70] sm:$0xff]
        %v687 = vld [vmem:[#allocation12 + $0x78] sm:$0xff]
        %v688 = vld [vmem:[#allocation12 + $0x80] sm:$0xff]
        %v689 = vld [vmem:[#allocation12 + $0x88] sm:$0xff]
        %v690 = vld [vmem:[#allocation12 + $0x90] sm:$0xff]
        %v691 = vld [vmem:[#allocation12 + $0x98] sm:$0xff]
        %v692 = vld [vmem:[#allocation12 + $0xa0] sm:$0xff]
        %v693 = vld [vmem:[#allocation12 + $0xa8] sm:$0xff]
        %v694 = vld [vmem:[#allocation12 + $0xb0] sm:$0xff]
        %v695 = vld [vmem:[#allocation12 + $0xb8] sm:$0xff]
        %v696 = vld [vmem:[#allocation12 + $0xc0] sm:$0xff]
        %v697 = vld [vmem:[#allocation12 + $0xc8] sm:$0xff]
        %v698 = vld [vmem:[#allocation12 + $0xd0] sm:$0xff]
        %v699 = vld [vmem:[#allocation12 + $0xd8] sm:$0xff]
        %v700 = vld [vmem:[#allocation12 + $0xe0] sm:$0xff]
        %v701 = vld [vmem:[#allocation12 + $0xe8] sm:$0xff]
        %v702 = vld [vmem:[#allocation12 + $0xf0] sm:$0xff]
        %v703 = vld [vmem:[#allocation12 + $0xf8] sm:$0xff]
        %v704 = vld [vmem:[%s6] sm:$0xf]
        %v705 = vld [vmem:[#allocation3] sm:$0xff]
        %v706 = vld [vmem:[#allocation4] sm:$0xff]
        %v707 = vld [vmem:[#allocation5] sm:$0xff]
        %v708 = vld [vmem:[#allocation6] sm:$0xff]
        %v709 = vld [vmem:[#allocation2] sm:$0xff]
        %v710 = vld [vmem:[#allocation2 + $0x8] sm:$0xff]
        %v711 = vld [vmem:[#allocation2 + $0x10] sm:$0xff]
        %v712 = vld [vmem:[#allocation2 + $0x18] sm:$0xff]
        %v713 = vpack.c.bf16 %v705, %v705
        %v746 = vunpack.c.l.b16 %v608
        %v747 = vunpack.c.h.b16 %v608
        %v748 = vunpack.c.l.b16 %v609
        %v749 = vunpack.c.h.b16 %v609
        %v750 = vunpack.c.l.b16 %v610
        %v751 = vunpack.c.h.b16 %v610
        %v752 = vunpack.c.l.b16 %v611
        %v753 = vunpack.c.h.b16 %v611
        %v754 = vunpack.c.l.b16 %v612
        %v755 = vunpack.c.h.b16 %v612
        %v756 = vunpack.c.l.b16 %v613
        %v757 = vunpack.c.h.b16 %v613
        %v758 = vunpack.c.l.b16 %v614
        %v759 = vunpack.c.h.b16 %v614
        %v760 = vunpack.c.l.b16 %v615
        %v761 = vunpack.c.h.b16 %v615
        %v762 = vunpack.c.l.b16 %v616
        %v763 = vunpack.c.h.b16 %v616
        %v764 = vunpack.c.l.b16 %v617
        %v765 = vunpack.c.h.b16 %v617
        %v766 = vunpack.c.l.b16 %v618
        %v767 = vunpack.c.h.b16 %v618
        %v768 = vunpack.c.l.b16 %v619
        %v769 = vunpack.c.h.b16 %v619
        %v770 = vunpack.c.l.b16 %v620
        %v771 = vunpack.c.h.b16 %v620
        %v772 = vunpack.c.l.b16 %v621
        %v773 = vunpack.c.h.b16 %v621
        %v774 = vunpack.c.l.b16 %v622
        %v775 = vunpack.c.h.b16 %v622
        %v776 = vunpack.c.l.b16 %v623
        %v777 = vunpack.c.h.b16 %v623
        %v778 = vunpack.c.l.b16 %v624
        %v779 = vunpack.c.h.b16 %v624
        %v780 = vunpack.c.l.b16 %v625
        %v781 = vunpack.c.h.b16 %v625
        %v782 = vunpack.c.l.b16 %v626
        %v783 = vunpack.c.h.b16 %v626
        %v784 = vunpack.c.l.b16 %v627
        %v785 = vunpack.c.h.b16 %v627
        %v786 = vunpack.c.l.b16 %v628
        %v787 = vunpack.c.h.b16 %v628
        %v788 = vunpack.c.l.b16 %v629
        %v789 = vunpack.c.h.b16 %v629
        %v790 = vunpack.c.l.b16 %v630
        %v791 = vunpack.c.h.b16 %v630
        %v792 = vunpack.c.l.b16 %v631
        %v793 = vunpack.c.h.b16 %v631
        %v794 = vunpack.c.l.b16 %v632
        %v795 = vunpack.c.h.b16 %v632
        %v796 = vunpack.c.l.b16 %v633
        %v797 = vunpack.c.h.b16 %v633
        %v798 = vunpack.c.l.b16 %v634
        %v799 = vunpack.c.h.b16 %v634
        %v800 = vunpack.c.l.b16 %v635
        %v801 = vunpack.c.h.b16 %v635
        %v802 = vunpack.c.l.b16 %v636
        %v803 = vunpack.c.h.b16 %v636
        %v804 = vunpack.c.l.b16 %v637
        %v805 = vunpack.c.h.b16 %v637
        %v806 = vunpack.c.l.b16 %v638
        %v807 = vunpack.c.h.b16 %v638
        %v808 = vunpack.c.l.b16 %v639
        %v809 = vunpack.c.h.b16 %v639
        %v810 = vpack.c.b16 %v750, %v746
        %v811 = vpack.c.b16 %v751, %v747
        %v812 = vpack.c.b16 %v752, %v748
        %v813 = vpack.c.b16 %v753, %v749
        %v814 = vpack.c.b16 %v758, %v754
        %v815 = vpack.c.b16 %v759, %v755
        %v816 = vpack.c.b16 %v760, %v756
        %v817 = vpack.c.b16 %v761, %v757
        %v818 = vpack.c.b16 %v766, %v762
        %v819 = vpack.c.b16 %v767, %v763
        %v820 = vpack.c.b16 %v768, %v764
        %v821 = vpack.c.b16 %v769, %v765
        %v822 = vpack.c.b16 %v774, %v770
        %v823 = vpack.c.b16 %v775, %v771
        %v824 = vpack.c.b16 %v776, %v772
        %v825 = vpack.c.b16 %v777, %v773
        %v826 = vpack.c.b16 %v782, %v778
        %v827 = vpack.c.b16 %v783, %v779
        %v828 = vpack.c.b16 %v784, %v780
        %v829 = vpack.c.b16 %v785, %v781
        %v830 = vpack.c.b16 %v790, %v786
        %v831 = vpack.c.b16 %v791, %v787
        %v832 = vpack.c.b16 %v792, %v788
        %v833 = vpack.c.b16 %v793, %v789
        %v834 = vpack.c.b16 %v798, %v794
        %v835 = vpack.c.b16 %v799, %v795
        %v836 = vpack.c.b16 %v800, %v796
        %v837 = vpack.c.b16 %v801, %v797
        %v838 = vpack.c.b16 %v806, %v802
        %v839 = vpack.c.b16 %v807, %v803
        %v840 = vpack.c.b16 %v808, %v804
        %v841 = vpack.c.b16 %v809, %v805
        %874 = vmatprep.subr.bf16.mxu0 %v811
        %875 = vmatpush1.bf16.msra.mxu0 %v810
        %876 = vmatprep.subr.bf16.mxu0 %v815
        %877 = vmatpush1.bf16.msra.mxu0 %v814
        %878 = vmatprep.subr.bf16.mxu0 %v819
        %879 = vmatpush1.bf16.msra.mxu0 %v818
        %880 = vmatprep.subr.bf16.mxu0 %v823
        %881 = vmatpush1.bf16.msra.mxu0 %v822
        %882 = vmatprep.subr.bf16.mxu0 %v827
        %883 = vmatpush1.bf16.msra.mxu0 %v826
        %884 = vmatprep.subr.bf16.mxu0 %v831
        %885 = vmatpush1.bf16.msra.mxu0 %v830
        %886 = vmatprep.subr.bf16.mxu0 %v835
        %887 = vmatpush1.bf16.msra.mxu0 %v834
        %888 = vmatprep.subr.bf16.mxu0 %v839
        %889 = vmatpush1.bf16.msra.mxu0 %v838
        %890 = vmatprep.subr.bf16.mxu0 0
        %891 = vmatpush1.bf16.msra.mxu0 0
        %892 = vmatprep.subr.bf16.mxu0 0
        %893 = vmatpush1.bf16.msra.mxu0 0
        %894 = vmatprep.subr.bf16.mxu0 0
        %895 = vmatpush1.bf16.msra.mxu0 0
        %896 = vmatprep.subr.bf16.mxu0 0
        %897 = vmatpush1.bf16.msra.mxu0 0
        %898 = vmatprep.subr.bf16.mxu0 0
        %899 = vmatpush1.bf16.msra.mxu0 0
        %900 = vmatprep.subr.bf16.mxu0 0
        %901 = vmatpush1.bf16.msra.mxu0 0
        %902 = vmatprep.subr.bf16.mxu0 0
        %903 = vmatpush1.bf16.msra.mxu0 0
        %904 = vmatprep.subr.bf16.mxu0 0
        %905 = vmatpush1.bf16.msra.mxu0 0
        %906 = vmatprep.mubr.bf16.mxu0 0
        %907 = vmatmul.mubr.bf16.gmra.mrb[0].mxu0 %v713
        %v908 = vpop.f32.mrb[0].mxu0
        %v909 = vadd.f32 0.0, %v908
        %v910 = vpop.f32.mrb[0].mxu0
        %v911 = vadd.f32 0.0, %v910
        %v912 = vpop.f32.mrb[0].mxu0
        %v913 = vpop.f32.mrb[0].mxu0
        %914 = vdwg.mxu0
        %915 = vmatprep.subr.bf16.mxu0 %v813
        %916 = vmatpush1.bf16.msra.mxu0 %v812
        %917 = vmatprep.subr.bf16.mxu0 %v817
        %918 = vmatpush1.bf16.msra.mxu0 %v816
        %919 = vmatprep.subr.bf16.mxu0 %v821
        %920 = vmatpush1.bf16.msra.mxu0 %v820
        %921 = vmatprep.subr.bf16.mxu0 %v825
        %922 = vmatpush1.bf16.msra.mxu0 %v824
        %923 = vmatprep.subr.bf16.mxu0 %v829
        %924 = vmatpush1.bf16.msra.mxu0 %v828
        %925 = vmatprep.subr.bf16.mxu0 %v833
        %926 = vmatpush1.bf16.msra.mxu0 %v832
        %927 = vmatprep.subr.bf16.mxu0 %v837
        %928 = vmatpush1.bf16.msra.mxu0 %v836
        %929 = vmatprep.subr.bf16.mxu0 %v841
        %930 = vmatpush1.bf16.msra.mxu0 %v840
        %931 = vmatprep.subr.bf16.mxu0 0
        %932 = vmatpush1.bf16.msra.mxu0 0
        %933 = vmatprep.subr.bf16.mxu0 0
        %934 = vmatpush1.bf16.msra.mxu0 0
        %935 = vmatprep.subr.bf16.mxu0 0
        %936 = vmatpush1.bf16.msra.mxu0 0
        %937 = vmatprep.subr.bf16.mxu0 0
        %938 = vmatpush1.bf16.msra.mxu0 0
        %939 = vmatprep.subr.bf16.mxu0 0
        %940 = vmatpush1.bf16.msra.mxu0 0
        %941 = vmatprep.subr.bf16.mxu0 0
        %942 = vmatpush1.bf16.msra.mxu0 0
        %943 = vmatprep.subr.bf16.mxu0 0
        %944 = vmatpush1.bf16.msra.mxu0 0
        %945 = vmatprep.subr.bf16.mxu0 0
        %946 = vmatpush1.bf16.msra.mxu0 0
        %947 = vmatprep.mubr.bf16.mxu0 0
        %948 = vmatmul.mubr.bf16.gmra.mrb[0].mxu0 %v713
        %v949 = vpop.f32.mrb[0].mxu0
        %v950 = vadd.f32 0.0, %v949
        %v951 = vpop.f32.mrb[0].mxu0
        %v952 = vadd.f32 0.0, %v951
        %v953 = vpop.f32.mrb[0].mxu0
        %v954 = vpop.f32.mrb[0].mxu0
        %955 = vdwg.mxu0
        %v956 = vadd.f32 %v709, %v909
        %v957 = vadd.f32 %v710, %v911
        %v958 = vadd.f32 %v711, %v950
        %v959 = vadd.f32 %v712, %v952
        %v960 = vmul.f32 %v956, 0.5
        %v961 = vtanh.pop %v960
        %v962 = vmul.f32 %v961, 0.5
        %v963 = vadd.f32 %v962, 0.5
        %v964 = vmul.f32 %v957, 0.5
        %v965 = vtanh.pop %v964
        %v966 = vmul.f32 %v965, 0.5
        %v967 = vadd.f32 %v966, 0.5
        %v968 = vtanh.pop %v958
        %v969 = vmul.f32 %v959, 0.5
        %v970 = vtanh.pop %v969
        %v971 = vmul.f32 %v970, 0.5
        %v972 = vadd.f32 %v971, 0.5
        %v973 = vmul.f32 %v967, %v706
        %v974 = vmul.f32 %v963, %v968
        %v975 = vadd.f32 %v973, %v974
        %v976 = vtanh.pop %v975
        %v977 = vmul.f32 %v972, %v976
        %v978 = vpack.c.bf16 %v977, %v977
        %v979 = vpack.c.bf16 %v707, %v707
        %v1012 = vunpack.c.l.b16 %v672
        %v1013 = vunpack.c.h.b16 %v672
        %v1014 = vunpack.c.l.b16 %v673
        %v1015 = vunpack.c.h.b16 %v673
        %v1016 = vunpack.c.l.b16 %v674
        %v1017 = vunpack.c.h.b16 %v674
        %v1018 = vunpack.c.l.b16 %v675
        %v1019 = vunpack.c.h.b16 %v675
        %v1020 = vunpack.c.l.b16 %v676
        %v1021 = vunpack.c.h.b16 %v676
        %v1022 = vunpack.c.l.b16 %v677
        %v1023 = vunpack.c.h.b16 %v677
        %v1024 = vunpack.c.l.b16 %v678
        %v1025 = vunpack.c.h.b16 %v678
        %v1026 = vunpack.c.l.b16 %v679
        %v1027 = vunpack.c.h.b16 %v679
        %v1028 = vunpack.c.l.b16 %v680
        %v1029 = vunpack.c.h.b16 %v680
        %v1030 = vunpack.c.l.b16 %v681
        %v1031 = vunpack.c.h.b16 %v681
        %v1032 = vunpack.c.l.b16 %v682
        %v1033 = vunpack.c.h.b16 %v682
        %v1034 = vunpack.c.l.b16 %v683
        %v1035 = vunpack.c.h.b16 %v683
        %v1036 = vunpack.c.l.b16 %v684
        %v1037 = vunpack.c.h.b16 %v684
        %v1038 = vunpack.c.l.b16 %v685
        %v1039 = vunpack.c.h.b16 %v685
        %v1040 = vunpack.c.l.b16 %v686
        %v1041 = vunpack.c.h.b16 %v686
        %v1042 = vunpack.c.l.b16 %v687
        %v1043 = vunpack.c.h.b16 %v687
        %v1044 = vunpack.c.l.b16 %v688
        %v1045 = vunpack.c.h.b16 %v688
        %v1046 = vunpack.c.l.b16 %v689
        %v1047 = vunpack.c.h.b16 %v689
        %v1048 = vunpack.c.l.b16 %v690
        %v1049 = vunpack.c.h.b16 %v690
        %v1050 = vunpack.c.l.b16 %v691
        %v1051 = vunpack.c.h.b16 %v691
        %v1052 = vunpack.c.l.b16 %v692
        %v1053 = vunpack.c.h.b16 %v692
        %v1054 = vunpack.c.l.b16 %v693
        %v1055 = vunpack.c.h.b16 %v693
        %v1056 = vunpack.c.l.b16 %v694
        %v1057 = vunpack.c.h.b16 %v694
        %v1058 = vunpack.c.l.b16 %v695
        %v1059 = vunpack.c.h.b16 %v695
        %v1060 = vunpack.c.l.b16 %v696
        %v1061 = vunpack.c.h.b16 %v696
        %v1062 = vunpack.c.l.b16 %v697
        %v1063 = vunpack.c.h.b16 %v697
        %v1064 = vunpack.c.l.b16 %v698
        %v1065 = vunpack.c.h.b16 %v698
        %v1066 = vunpack.c.l.b16 %v699
        %v1067 = vunpack.c.h.b16 %v699
        %v1068 = vunpack.c.l.b16 %v700
        %v1069 = vunpack.c.h.b16 %v700
        %v1070 = vunpack.c.l.b16 %v701
        %v1071 = vunpack.c.h.b16 %v701
        %v1072 = vunpack.c.l.b16 %v702
        %v1073 = vunpack.c.h.b16 %v702
        %v1074 = vunpack.c.l.b16 %v703
        %v1075 = vunpack.c.h.b16 %v703
        %v1076 = vpack.c.b16 %v1016, %v1012
        %v1077 = vpack.c.b16 %v1017, %v1013
        %v1078 = vpack.c.b16 %v1018, %v1014
        %v1079 = vpack.c.b16 %v1019, %v1015
        %v1080 = vpack.c.b16 %v1024, %v1020
        %v1081 = vpack.c.b16 %v1025, %v1021
        %v1082 = vpack.c.b16 %v1026, %v1022
        %v1083 = vpack.c.b16 %v1027, %v1023
        %v1084 = vpack.c.b16 %v1032, %v1028
        %v1085 = vpack.c.b16 %v1033, %v1029
        %v1086 = vpack.c.b16 %v1034, %v1030
        %v1087 = vpack.c.b16 %v1035, %v1031
        %v1088 = vpack.c.b16 %v1040, %v1036
        %v1089 = vpack.c.b16 %v1041, %v1037
        %v1090 = vpack.c.b16 %v1042, %v1038
        %v1091 = vpack.c.b16 %v1043, %v1039
        %v1092 = vpack.c.b16 %v1048, %v1044
        %v1093 = vpack.c.b16 %v1049, %v1045
        %v1094 = vpack.c.b16 %v1050, %v1046
        %v1095 = vpack.c.b16 %v1051, %v1047
        %v1096 = vpack.c.b16 %v1056, %v1052
        %v1097 = vpack.c.b16 %v1057, %v1053
        %v1098 = vpack.c.b16 %v1058, %v1054
        %v1099 = vpack.c.b16 %v1059, %v1055
        %v1100 = vpack.c.b16 %v1064, %v1060
        %v1101 = vpack.c.b16 %v1065, %v1061
        %v1102 = vpack.c.b16 %v1066, %v1062
        %v1103 = vpack.c.b16 %v1067, %v1063
        %v1104 = vpack.c.b16 %v1072, %v1068
        %v1105 = vpack.c.b16 %v1073, %v1069
        %v1106 = vpack.c.b16 %v1074, %v1070
        %v1107 = vpack.c.b16 %v1075, %v1071
        %1140 = vmatprep.subr.bf16.mxu0 %v1077
        %1141 = vmatpush1.bf16.msra.mxu0 %v1076
        %1142 = vmatprep.subr.bf16.mxu0 %v1081
        %1143 = vmatpush1.bf16.msra.mxu0 %v1080
        %1144 = vmatprep.subr.bf16.mxu0 %v1085
        %1145 = vmatpush1.bf16.msra.mxu0 %v1084
        %1146 = vmatprep.subr.bf16.mxu0 %v1089
        %1147 = vmatpush1.bf16.msra.mxu0 %v1088
        %1148 = vmatprep.subr.bf16.mxu0 %v1093
        %1149 = vmatpush1.bf16.msra.mxu0 %v1092
        %1150 = vmatprep.subr.bf16.mxu0 %v1097
        %1151 = vmatpush1.bf16.msra.mxu0 %v1096
        %1152 = vmatprep.subr.bf16.mxu0 %v1101
        %1153 = vmatpush1.bf16.msra.mxu0 %v1100
        %1154 = vmatprep.subr.bf16.mxu0 %v1105
        %1155 = vmatpush1.bf16.msra.mxu0 %v1104
        %1156 = vmatprep.subr.bf16.mxu0 0
        %1157 = vmatpush1.bf16.msra.mxu0 0
        %1158 = vmatprep.subr.bf16.mxu0 0
        %1159 = vmatpush1.bf16.msra.mxu0 0
        %1160 = vmatprep.subr.bf16.mxu0 0
        %1161 = vmatpush1.bf16.msra.mxu0 0
        %1162 = vmatprep.subr.bf16.mxu0 0
        %1163 = vmatpush1.bf16.msra.mxu0 0
        %1164 = vmatprep.subr.bf16.mxu0 0
        %1165 = vmatpush1.bf16.msra.mxu0 0
        %1166 = vmatprep.subr.bf16.mxu0 0
        %1167 = vmatpush1.bf16.msra.mxu0 0
        %1168 = vmatprep.subr.bf16.mxu0 0
        %1169 = vmatpush1.bf16.msra.mxu0 0
        %1170 = vmatprep.subr.bf16.mxu0 0
        %1171 = vmatpush1.bf16.msra.mxu0 0
        %1172 = vmatprep.mubr.bf16.mxu0 0
        %1173 = vmatmul.mubr.bf16.gmra.mrb[0].mxu0 %v979
        %v1174 = vpop.f32.mrb[0].mxu0
        %v1175 = vadd.f32 0.0, %v1174
        %v1176 = vpop.f32.mrb[0].mxu0
        %v1177 = vadd.f32 0.0, %v1176
        %v1178 = vpop.f32.mrb[0].mxu0
        %v1179 = vpop.f32.mrb[0].mxu0
        %1180 = vdwg.mxu0
        %1181 = vmatprep.subr.bf16.mxu0 %v1079
        %1182 = vmatpush1.bf16.msra.mxu0 %v1078
        %1183 = vmatprep.subr.bf16.mxu0 %v1083
        %1184 = vmatpush1.bf16.msra.mxu0 %v1082
        %1185 = vmatprep.subr.bf16.mxu0 %v1087
        %1186 = vmatpush1.bf16.msra.mxu0 %v1086
        %1187 = vmatprep.subr.bf16.mxu0 %v1091
        %1188 = vmatpush1.bf16.msra.mxu0 %v1090
        %1189 = vmatprep.subr.bf16.mxu0 %v1095
        %1190 = vmatpush1.bf16.msra.mxu0 %v1094
        %1191 = vmatprep.subr.bf16.mxu0 %v1099
        %1192 = vmatpush1.bf16.msra.mxu0 %v1098
        %1193 = vmatprep.subr.bf16.mxu0 %v1103
        %1194 = vmatpush1.bf16.msra.mxu0 %v1102
        %1195 = vmatprep.subr.bf16.mxu0 %v1107
        %1196 = vmatpush1.bf16.msra.mxu0 %v1106
        %1197 = vmatprep.subr.bf16.mxu0 0
        %1198 = vmatpush1.bf16.msra.mxu0 0
        %1199 = vmatprep.subr.bf16.mxu0 0
        %1200 = vmatpush1.bf16.msra.mxu0 0
        %1201 = vmatprep.subr.bf16.mxu0 0
        %1202 = vmatpush1.bf16.msra.mxu0 0
        %1203 = vmatprep.subr.bf16.mxu0 0
        %1204 = vmatpush1.bf16.msra.mxu0 0
        %1205 = vmatprep.subr.bf16.mxu0 0
        %1206 = vmatpush1.bf16.msra.mxu0 0
        %1207 = vmatprep.subr.bf16.mxu0 0
        %1208 = vmatpush1.bf16.msra.mxu0 0
        %1209 = vmatprep.subr.bf16.mxu0 0
        %1210 = vmatpush1.bf16.msra.mxu0 0
        %1211 = vmatprep.subr.bf16.mxu0 0
        %1212 = vmatpush1.bf16.msra.mxu0 0
        %1213 = vmatprep.mubr.bf16.mxu0 0
        %1214 = vmatmul.mubr.bf16.gmra.mrb[0].mxu0 %v979
        %v1215 = vpop.f32.mrb[0].mxu0
        %v1216 = vadd.f32 0.0, %v1215
        %v1217 = vpop.f32.mrb[0].mxu0
        %v1218 = vadd.f32 0.0, %v1217
        %v1219 = vpop.f32.mrb[0].mxu0
        %v1220 = vpop.f32.mrb[0].mxu0
        %1221 = vdwg.mxu0
        %v1254 = vunpack.c.l.b16 %v640
        %v1255 = vunpack.c.h.b16 %v640
        %v1256 = vunpack.c.l.b16 %v641
        %v1257 = vunpack.c.h.b16 %v641
        %v1258 = vunpack.c.l.b16 %v642
        %v1259 = vunpack.c.h.b16 %v642
        %v1260 = vunpack.c.l.b16 %v643
        %v1261 = vunpack.c.h.b16 %v643
        %v1262 = vunpack.c.l.b16 %v644
        %v1263 = vunpack.c.h.b16 %v644
        %v1264 = vunpack.c.l.b16 %v645
        %v1265 = vunpack.c.h.b16 %v645
        %v1266 = vunpack.c.l.b16 %v646
        %v1267 = vunpack.c.h.b16 %v646
        %v1268 = vunpack.c.l.b16 %v647
        %v1269 = vunpack.c.h.b16 %v647
        %v1270 = vunpack.c.l.b16 %v648
        %v1271 = vunpack.c.h.b16 %v648
        %v1272 = vunpack.c.l.b16 %v649
        %v1273 = vunpack.c.h.b16 %v649
        %v1274 = vunpack.c.l.b16 %v650
        %v1275 = vunpack.c.h.b16 %v650
        %v1276 = vunpack.c.l.b16 %v651
        %v1277 = vunpack.c.h.b16 %v651
        %v1278 = vunpack.c.l.b16 %v652
        %v1279 = vunpack.c.h.b16 %v652
        %v1280 = vunpack.c.l.b16 %v653
        %v1281 = vunpack.c.h.b16 %v653
        %v1282 = vunpack.c.l.b16 %v654
        %v1283 = vunpack.c.h.b16 %v654
        %v1284 = vunpack.c.l.b16 %v655
        %v1285 = vunpack.c.h.b16 %v655
        %v1286 = vunpack.c.l.b16 %v656
        %v1287 = vunpack.c.h.b16 %v656
        %v1288 = vunpack.c.l.b16 %v657
        %v1289 = vunpack.c.h.b16 %v657
        %v1290 = vunpack.c.l.b16 %v658
        %v1291 = vunpack.c.h.b16 %v658
        %v1292 = vunpack.c.l.b16 %v659
        %v1293 = vunpack.c.h.b16 %v659
        %v1294 = vunpack.c.l.b16 %v660
        %v1295 = vunpack.c.h.b16 %v660
        %v1296 = vunpack.c.l.b16 %v661
        %v1297 = vunpack.c.h.b16 %v661
        %v1298 = vunpack.c.l.b16 %v662
        %v1299 = vunpack.c.h.b16 %v662
        %v1300 = vunpack.c.l.b16 %v663
        %v1301 = vunpack.c.h.b16 %v663
        %v1302 = vunpack.c.l.b16 %v664
        %v1303 = vunpack.c.h.b16 %v664
        %v1304 = vunpack.c.l.b16 %v665
        %v1305 = vunpack.c.h.b16 %v665
        %v1306 = vunpack.c.l.b16 %v666
        %v1307 = vunpack.c.h.b16 %v666
        %v1308 = vunpack.c.l.b16 %v667
        %v1309 = vunpack.c.h.b16 %v667
        %v1310 = vunpack.c.l.b16 %v668
        %v1311 = vunpack.c.h.b16 %v668
        %v1312 = vunpack.c.l.b16 %v669
        %v1313 = vunpack.c.h.b16 %v669
        %v1314 = vunpack.c.l.b16 %v670
        %v1315 = vunpack.c.h.b16 %v670
        %v1316 = vunpack.c.l.b16 %v671
        %v1317 = vunpack.c.h.b16 %v671
        %v1318 = vpack.c.b16 %v1258, %v1254
        %v1319 = vpack.c.b16 %v1259, %v1255
        %v1320 = vpack.c.b16 %v1260, %v1256
        %v1321 = vpack.c.b16 %v1261, %v1257
        %v1322 = vpack.c.b16 %v1266, %v1262
        %v1323 = vpack.c.b16 %v1267, %v1263
        %v1324 = vpack.c.b16 %v1268, %v1264
        %v1325 = vpack.c.b16 %v1269, %v1265
        %v1326 = vpack.c.b16 %v1274, %v1270
        %v1327 = vpack.c.b16 %v1275, %v1271
        %v1328 = vpack.c.b16 %v1276, %v1272
        %v1329 = vpack.c.b16 %v1277, %v1273
        %v1330 = vpack.c.b16 %v1282, %v1278
        %v1331 = vpack.c.b16 %v1283, %v1279
        %v1332 = vpack.c.b16 %v1284, %v1280
        %v1333 = vpack.c.b16 %v1285, %v1281
        %v1334 = vpack.c.b16 %v1290, %v1286
        %v1335 = vpack.c.b16 %v1291, %v1287
        %v1336 = vpack.c.b16 %v1292, %v1288
        %v1337 = vpack.c.b16 %v1293, %v1289
        %v1338 = vpack.c.b16 %v1298, %v1294
        %v1339 = vpack.c.b16 %v1299, %v1295
        %v1340 = vpack.c.b16 %v1300, %v1296
        %v1341 = vpack.c.b16 %v1301, %v1297
        %v1342 = vpack.c.b16 %v1306, %v1302
        %v1343 = vpack.c.b16 %v1307, %v1303
        %v1344 = vpack.c.b16 %v1308, %v1304
        %v1345 = vpack.c.b16 %v1309, %v1305
        %v1346 = vpack.c.b16 %v1314, %v1310
        %v1347 = vpack.c.b16 %v1315, %v1311
        %v1348 = vpack.c.b16 %v1316, %v1312
        %v1349 = vpack.c.b16 %v1317, %v1313
        %1382 = vmatprep.subr.bf16.mxu0 %v1319
        %1383 = vmatpush1.bf16.msra.mxu0 %v1318
        %1384 = vmatprep.subr.bf16.mxu0 %v1323
        %1385 = vmatpush1.bf16.msra.mxu0 %v1322
        %1386 = vmatprep.subr.bf16.mxu0 %v1327
        %1387 = vmatpush1.bf16.msra.mxu0 %v1326
        %1388 = vmatprep.subr.bf16.mxu0 %v1331
        %1389 = vmatpush1.bf16.msra.mxu0 %v1330
        %1390 = vmatprep.subr.bf16.mxu0 %v1335
        %1391 = vmatpush1.bf16.msra.mxu0 %v1334
        %1392 = vmatprep.subr.bf16.mxu0 %v1339
        %1393 = vmatpush1.bf16.msra.mxu0 %v1338
        %1394 = vmatprep.subr.bf16.mxu0 %v1343
        %1395 = vmatpush1.bf16.msra.mxu0 %v1342
        %1396 = vmatprep.subr.bf16.mxu0 %v1347
        %1397 = vmatpush1.bf16.msra.mxu0 %v1346
        %1398 = vmatprep.subr.bf16.mxu0 0
        %1399 = vmatpush1.bf16.msra.mxu0 0
        %1400 = vmatprep.subr.bf16.mxu0 0
        %1401 = vmatpush1.bf16.msra.mxu0 0
        %1402 = vmatprep.subr.bf16.mxu0 0
        %1403 = vmatpush1.bf16.msra.mxu0 0
        %1404 = vmatprep.subr.bf16.mxu0 0
        %1405 = vmatpush1.bf16.msra.mxu0 0
        %1406 = vmatprep.subr.bf16.mxu0 0
        %1407 = vmatpush1.bf16.msra.mxu0 0
        %1408 = vmatprep.subr.bf16.mxu0 0
        %1409 = vmatpush1.bf16.msra.mxu0 0
        %1410 = vmatprep.subr.bf16.mxu0 0
        %1411 = vmatpush1.bf16.msra.mxu0 0
        %1412 = vmatprep.subr.bf16.mxu0 0
        %1413 = vmatpush1.bf16.msra.mxu0 0
        %1414 = vmatprep.mubr.bf16.mxu0 0
        %1415 = vmatmul.mubr.bf16.gmra.mrb[0].mxu0 %v978
        %v1416 = vpop.f32.mrb[0].mxu0
        %v1417 = vadd.f32 %v1175, %v1416
        %v1418 = vpop.f32.mrb[0].mxu0
        %v1419 = vadd.f32 %v1177, %v1418
        %v1420 = vpop.f32.mrb[0].mxu0
        %v1421 = vpop.f32.mrb[0].mxu0
        %1422 = vdwg.mxu0
        %1423 = vmatprep.subr.bf16.mxu0 %v1321
        %1424 = vmatpush1.bf16.msra.mxu0 %v1320
        %1425 = vmatprep.subr.bf16.mxu0 %v1325
        %1426 = vmatpush1.bf16.msra.mxu0 %v1324
        %1427 = vmatprep.subr.bf16.mxu0 %v1329
        %1428 = vmatpush1.bf16.msra.mxu0 %v1328
        %1429 = vmatprep.subr.bf16.mxu0 %v1333
        %1430 = vmatpush1.bf16.msra.mxu0 %v1332
        %1431 = vmatprep.subr.bf16.mxu0 %v1337
        %1432 = vmatpush1.bf16.msra.mxu0 %v1336
        %1433 = vmatprep.subr.bf16.mxu0 %v1341
        %1434 = vmatpush1.bf16.msra.mxu0 %v1340
        %1435 = vmatprep.subr.bf16.mxu0 %v1345
        %1436 = vmatpush1.bf16.msra.mxu0 %v1344
        %1437 = vmatprep.subr.bf16.mxu0 %v1349
        %1438 = vmatpush1.bf16.msra.mxu0 %v1348
        %1439 = vmatprep.subr.bf16.mxu0 0
        %1440 = vmatpush1.bf16.msra.mxu0 0
        %1441 = vmatprep.subr.bf16.mxu0 0
        %1442 = vmatpush1.bf16.msra.mxu0 0
        %1443 = vmatprep.subr.bf16.mxu0 0
        %1444 = vmatpush1.bf16.msra.mxu0 0
        %1445 = vmatprep.subr.bf16.mxu0 0
        %1446 = vmatpush1.bf16.msra.mxu0 0
        %1447 = vmatprep.subr.bf16.mxu0 0
        %1448 = vmatpush1.bf16.msra.mxu0 0
        %1449 = vmatprep.subr.bf16.mxu0 0
        %1450 = vmatpush1.bf16.msra.mxu0 0
        %1451 = vmatprep.subr.bf16.mxu0 0
        %1452 = vmatpush1.bf16.msra.mxu0 0
        %1453 = vmatprep.subr.bf16.mxu0 0
        %1454 = vmatpush1.bf16.msra.mxu0 0
        %1455 = vmatprep.mubr.bf16.mxu0 0
        %1456 = vmatmul.mubr.bf16.gmra.mrb[0].mxu0 %v978
        %v1457 = vpop.f32.mrb[0].mxu0
        %v1458 = vadd.f32 %v1216, %v1457
        %v1459 = vpop.f32.mrb[0].mxu0
        %v1460 = vadd.f32 %v1218, %v1459
        %v1461 = vpop.f32.mrb[0].mxu0
        %v1462 = vpop.f32.mrb[0].mxu0
        %1463 = vdwg.mxu0
        %v1465 = vlaneseq
        %v1466 = vshrl.u32 %v1465, 7
        %v1467 = vsub.s32 0, %v1466
        %v1468 = vrot.slane %v704, %v1467
        %v1469 = vlaneseq
        %v1470 = vshrl.u32 %v1469, 7
        %v1471 = vsub.s32 1, %v1470
        %v1472 = vrot.slane %v704, %v1471
        %v1473 = vlaneseq
        %v1474 = vshrl.u32 %v1473, 7
        %v1475 = vsub.s32 2, %v1474
        %v1476 = vrot.slane %v704, %v1475
        %v1477 = vlaneseq
        %v1478 = vshrl.u32 %v1477, 7
        %v1479 = vsub.s32 3, %v1478
        %v1480 = vrot.slane %v704, %v1479
        %v1485 = vadd.f32 %v1417, %v1468
        %v1486 = vadd.f32 %v1419, %v1472
        %v1487 = vadd.f32 %v1458, %v1476
        %v1488 = vadd.f32 %v1460, %v1480
        %v1489 = vmul.f32 %v1485, 0.5
        %v1490 = vtanh.pop %v1489
        %v1491 = vmul.f32 %v1490, 0.5
        %v1492 = vadd.f32 %v1491, 0.5
        %v1493 = vmul.f32 %v1486, 0.5
        %v1494 = vtanh.pop %v1493
        %v1495 = vmul.f32 %v1494, 0.5
        %v1496 = vadd.f32 %v1495, 0.5
        %v1497 = vtanh.pop %v1487
        %v1498 = vmul.f32 %v1488, 0.5
        %v1499 = vtanh.pop %v1498
        %v1500 = vmul.f32 %v1499, 0.5
        %v1501 = vadd.f32 %v1500, 0.5
        %v1502 = vmul.f32 %v1496, %v708
        %v1503 = vmul.f32 %v1492, %v1497
        %v1504 = vadd.f32 %v1502, %v1503
        %v1505 = vtanh.pop %v1504
        %v1506 = vmul.f32 %v1501, %v1505
        %s1507 = scalar_lea.vmem [#allocation2], 32
        %v1508 = vld [vmem:[%s1507] sm:$0xff]
        %v1509 = vld [vmem:[%s1507 + $0x8] sm:$0xff]
        %v1510 = vld [vmem:[%s1507 + $0x10] sm:$0xff]
        %v1511 = vld [vmem:[%s1507 + $0x18] sm:$0xff]
        %1512 = vmatprep.subr.bf16.mxu0 %v811
        %1513 = vmatpush1.bf16.msra.mxu0 %v810
        %1514 = vmatprep.subr.bf16.mxu0 %v815
        %1515 = vmatpush1.bf16.msra.mxu0 %v814
        %1516 = vmatprep.subr.bf16.mxu0 %v819
        %1517 = vmatpush1.bf16.msra.mxu0 %v818
        %1518 = vmatprep.subr.bf16.mxu0 %v823
        %1519 = vmatpush1.bf16.msra.mxu0 %v822
        %1520 = vmatprep.subr.bf16.mxu0 %v827
        %1521 = vmatpush1.bf16.msra.mxu0 %v826
        %1522 = vmatprep.subr.bf16.mxu0 %v831
        %1523 = vmatpush1.bf16.msra.mxu0 %v830
        %1524 = vmatprep.subr.bf16.mxu0 %v835
        %1525 = vmatpush1.bf16.msra.mxu0 %v834
        %1526 = vmatprep.subr.bf16.mxu0 %v839
        %1527 = vmatpush1.bf16.msra.mxu0 %v838
        %1528 = vmatprep.subr.bf16.mxu0 0
        %1529 = vmatpush1.bf16.msra.mxu0 0
        %1530 = vmatprep.subr.bf16.mxu0 0
        %1531 = vmatpush1.bf16.msra.mxu0 0
        %1532 = vmatprep.subr.bf16.mxu0 0
        %1533 = vmatpush1.bf16.msra.mxu0 0
        %1534 = vmatprep.subr.bf16.mxu0 0
        %1535 = vmatpush1.bf16.msra.mxu0 0
        %1536 = vmatprep.subr.bf16.mxu0 0
        %1537 = vmatpush1.bf16.msra.mxu0 0
        %1538 = vmatprep.subr.bf16.mxu0 0
        %1539 = vmatpush1.bf16.msra.mxu0 0
        %1540 = vmatprep.subr.bf16.mxu0 0
        %1541 = vmatpush1.bf16.msra.mxu0 0
        %1542 = vmatprep.subr.bf16.mxu0 0
        %1543 = vmatpush1.bf16.msra.mxu0 0
        %1544 = vmatprep.mubr.bf16.mxu0 0
        %1545 = vmatmul.mubr.bf16.gmra.mrb[0].mxu0 %v978
        %v1546 = vpop.f32.mrb[0].mxu0
        %v1547 = vadd.f32 0.0, %v1546
        %v1548 = vpop.f32.mrb[0].mxu0
        %v1549 = vadd.f32 0.0, %v1548
        %v1550 = vpop.f32.mrb[0].mxu0
        %v1551 = vpop.f32.mrb[0].mxu0
        %1552 = vdwg.mxu0
        %1553 = vmatprep.subr.bf16.mxu0 %v813
        %1554 = vmatpush1.bf16.msra.mxu0 %v812
        %1555 = vmatprep.subr.bf16.mxu0 %v817
        %1556 = vmatpush1.bf16.msra.mxu0 %v816
        %1557 = vmatprep.subr.bf16.mxu0 %v821
        %1558 = vmatpush1.bf16.msra.mxu0 %v820
        %1559 = vmatprep.subr.bf16.mxu0 %v825
        %1560 = vmatpush1.bf16.msra.mxu0 %v824
        %1561 = vmatprep.subr.bf16.mxu0 %v829
        %1562 = vmatpush1.bf16.msra.mxu0 %v828
        %1563 = vmatprep.subr.bf16.mxu0 %v833
        %1564 = vmatpush1.bf16.msra.mxu0 %v832
        %1565 = vmatprep.subr.bf16.mxu0 %v837
        %1566 = vmatpush1.bf16.msra.mxu0 %v836
        %1567 = vmatprep.subr.bf16.mxu0 %v841
        %1568 = vmatpush1.bf16.msra.mxu0 %v840
        %1569 = vmatprep.subr.bf16.mxu0 0
        %1570 = vmatpush1.bf16.msra.mxu0 0
        %1571 = vmatprep.subr.bf16.mxu0 0
        %1572 = vmatpush1.bf16.msra.mxu0 0
        %1573 = vmatprep.subr.bf16.mxu0 0
        %1574 = vmatpush1.bf16.msra.mxu0 0
        %1575 = vmatprep.subr.bf16.mxu0 0
        %1576 = vmatpush1.bf16.msra.mxu0 0
        %1577 = vmatprep.subr.bf16.mxu0 0
        %1578 = vmatpush1.bf16.msra.mxu0 0
        %1579 = vmatprep.subr.bf16.mxu0 0
        %1580 = vmatpush1.bf16.msra.mxu0 0
        %1581 = vmatprep.subr.bf16.mxu0 0
        %1582 = vmatpush1.bf16.msra.mxu0 0
        %1583 = vmatprep.subr.bf16.mxu0 0
        %1584 = vmatpush1.bf16.msra.mxu0 0
        %1585 = vmatprep.mubr.bf16.mxu0 0
        %1586 = vmatmul.mubr.bf16.gmra.mrb[0].mxu0 %v978
        %v1587 = vpop.f32.mrb[0].mxu0
        %v1588 = vadd.f32 0.0, %v1587
        %v1589 = vpop.f32.mrb[0].mxu0
        %v1590 = vadd.f32 0.0, %v1589
        %v1591 = vpop.f32.mrb[0].mxu0
        %v1592 = vpop.f32.mrb[0].mxu0
        %1593 = vdwg.mxu0
        %v1594 = vadd.f32 %v1508, %v1547
        %v1595 = vadd.f32 %v1509, %v1549
        %v1596 = vadd.f32 %v1510, %v1588
        %v1597 = vadd.f32 %v1511, %v1590
        %v1598 = vmul.f32 %v1594, 0.5
        %v1599 = vtanh.pop %v1598
        %v1600 = vmul.f32 %v1599, 0.5
        %v1601 = vadd.f32 %v1600, 0.5
        %v1602 = vmul.f32 %v1595, 0.5
        %v1603 = vtanh.pop %v1602
        %v1604 = vmul.f32 %v1603, 0.5
        %v1605 = vadd.f32 %v1604, 0.5
        %v1606 = vtanh.pop %v1596
        %v1607 = vmul.f32 %v1597, 0.5
        %v1608 = vtanh.pop %v1607
        %v1609 = vmul.f32 %v1608, 0.5
        %v1610 = vadd.f32 %v1609, 0.5
        %v1611 = vmul.f32 %v1605, %v975
        %v1612 = vmul.f32 %v1601, %v1606
        %v1613 = vadd.f32 %v1611, %v1612
        %v1614 = vtanh.pop %v1613
        %v1615 = vmul.f32 %v1610, %v1614
        %v1616 = vpack.c.bf16 %v1615, %v1615
        %v1617 = vpack.c.bf16 %v1506, %v1506
        %1618 = vmatprep.subr.bf16.mxu0 %v1077
        %1619 = vmatpush1.bf16.msra.mxu0 %v1076
        %1620 = vmatprep.subr.bf16.mxu0 %v1081
        %1621 = vmatpush1.bf16.msra.mxu0 %v1080
        %1622 = vmatprep.subr.bf16.mxu0 %v1085
        %1623 = vmatpush1.bf16.msra.mxu0 %v1084
        %1624 = vmatprep.subr.bf16.mxu0 %v1089
        %1625 = vmatpush1.bf16.msra.mxu0 %v1088
        %1626 = vmatprep.subr.bf16.mxu0 %v1093
        %1627 = vmatpush1.bf16.msra.mxu0 %v1092
        %1628 = vmatprep.subr.bf16.mxu0 %v1097
        %1629 = vmatpush1.bf16.msra.mxu0 %v1096
        %1630 = vmatprep.subr.bf16.mxu0 %v1101
        %1631 = vmatpush1.bf16.msra.mxu0 %v1100
        %1632 = vmatprep.subr.bf16.mxu0 %v1105
        %1633 = vmatpush1.bf16.msra.mxu0 %v1104
        %1634 = vmatprep.subr.bf16.mxu0 0
        %1635 = vmatpush1.bf16.msra.mxu0 0
        %1636 = vmatprep.subr.bf16.mxu0 0
        %1637 = vmatpush1.bf16.msra.mxu0 0
        %1638 = vmatprep.subr.bf16.mxu0 0
        %1639 = vmatpush1.bf16.msra.mxu0 0
        %1640 = vmatprep.subr.bf16.mxu0 0
        %1641 = vmatpush1.bf16.msra.mxu0 0
        %1642 = vmatprep.subr.bf16.mxu0 0
        %1643 = vmatpush1.bf16.msra.mxu0 0
        %1644 = vmatprep.subr.bf16.mxu0 0
        %1645 = vmatpush1.bf16.msra.mxu0 0
        %1646 = vmatprep.subr.bf16.mxu0 0
        %1647 = vmatpush1.bf16.msra.mxu0 0
        %1648 = vmatprep.subr.bf16.mxu0 0
        %1649 = vmatpush1.bf16.msra.mxu0 0
        %1650 = vmatprep.mubr.bf16.mxu0 0
        %1651 = vmatmul.mubr.bf16.gmra.mrb[0].mxu0 %v1617
        %v1652 = vpop.f32.mrb[0].mxu0
        %v1653 = vadd.f32 0.0, %v1652
        %v1654 = vpop.f32.mrb[0].mxu0
        %v1655 = vadd.f32 0.0, %v1654
        %v1656 = vpop.f32.mrb[0].mxu0
        %v1657 = vpop.f32.mrb[0].mxu0
        %1658 = vdwg.mxu0
        %1659 = vmatprep.subr.bf16.mxu0 %v1079
        %1660 = vmatpush1.bf16.msra.mxu0 %v1078
        %1661 = vmatprep.subr.bf16.mxu0 %v1083
        %1662 = vmatpush1.bf16.msra.mxu0 %v1082
        %1663 = vmatprep.subr.bf16.mxu0 %v1087
        %1664 = vmatpush1.bf16.msra.mxu0 %v1086
        %1665 = vmatprep.subr.bf16.mxu0 %v1091
        %1666 = vmatpush1.bf16.msra.mxu0 %v1090
        %1667 = vmatprep.subr.bf16.mxu0 %v1095
        %1668 = vmatpush1.bf16.msra.mxu0 %v1094
        %1669 = vmatprep.subr.bf16.mxu0 %v1099
        %1670 = vmatpush1.bf16.msra.mxu0 %v1098
        %1671 = vmatprep.subr.bf16.mxu0 %v1103
        %1672 = vmatpush1.bf16.msra.mxu0 %v1102
        %1673 = vmatprep.subr.bf16.mxu0 %v1107
        %1674 = vmatpush1.bf16.msra.mxu0 %v1106
        %1675 = vmatprep.subr.bf16.mxu0 0
        %1676 = vmatpush1.bf16.msra.mxu0 0
        %1677 = vmatprep.subr.bf16.mxu0 0
        %1678 = vmatpush1.bf16.msra.mxu0 0
        %1679 = vmatprep.subr.bf16.mxu0 0
        %1680 = vmatpush1.bf16.msra.mxu0 0
        %1681 = vmatprep.subr.bf16.mxu0 0
        %1682 = vmatpush1.bf16.msra.mxu0 0
        %1683 = vmatprep.subr.bf16.mxu0 0
        %1684 = vmatpush1.bf16.msra.mxu0 0
        %1685 = vmatprep.subr.bf16.mxu0 0
        %1686 = vmatpush1.bf16.msra.mxu0 0
        %1687 = vmatprep.subr.bf16.mxu0 0
        %1688 = vmatpush1.bf16.msra.mxu0 0
        %1689 = vmatprep.subr.bf16.mxu0 0
        %1690 = vmatpush1.bf16.msra.mxu0 0
        %1691 = vmatprep.mubr.bf16.mxu0 0
        %1692 = vmatmul.mubr.bf16.gmra.mrb[0].mxu0 %v1617
        %v1693 = vpop.f32.mrb[0].mxu0
        %v1694 = vadd.f32 0.0, %v1693
        %v1695 = vpop.f32.mrb[0].mxu0
        %v1696 = vadd.f32 0.0, %v1695
        %v1697 = vpop.f32.mrb[0].mxu0
        %v1698 = vpop.f32.mrb[0].mxu0
        %1699 = vdwg.mxu0
        %1700 = vmatprep.subr.bf16.mxu0 %v1319
        %1701 = vmatpush1.bf16.msra.mxu0 %v1318
        %1702 = vmatprep.subr.bf16.mxu0 %v1323
        %1703 = vmatpush1.bf16.msra.mxu0 %v1322
        %1704 = vmatprep.subr.bf16.mxu0 %v1327
        %1705 = vmatpush1.bf16.msra.mxu0 %v1326
        %1706 = vmatprep.subr.bf16.mxu0 %v1331
        %1707 = vmatpush1.bf16.msra.mxu0 %v1330
        %1708 = vmatprep.subr.bf16.mxu0 %v1335
        %1709 = vmatpush1.bf16.msra.mxu0 %v1334
        %1710 = vmatprep.subr.bf16.mxu0 %v1339
        %1711 = vmatpush1.bf16.msra.mxu0 %v1338
        %1712 = vmatprep.subr.bf16.mxu0 %v1343
        %1713 = vmatpush1.bf16.msra.mxu0 %v1342
        %1714 = vmatprep.subr.bf16.mxu0 %v1347
        %1715 = vmatpush1.bf16.msra.mxu0 %v1346
        %1716 = vmatprep.subr.bf16.mxu0 0
        %1717 = vmatpush1.bf16.msra.mxu0 0
        %1718 = vmatprep.subr.bf16.mxu0 0
        %1719 = vmatpush1.bf16.msra.mxu0 0
        %1720 = vmatprep.subr.bf16.mxu0 0
        %1721 = vmatpush1.bf16.msra.mxu0 0
        %1722 = vmatprep.subr.bf16.mxu0 0
        %1723 = vmatpush1.bf16.msra.mxu0 0
        %1724 = vmatprep.subr.bf16.mxu0 0
        %1725 = vmatpush1.bf16.msra.mxu0 0
        %1726 = vmatprep.subr.bf16.mxu0 0
        %1727 = vmatpush1.bf16.msra.mxu0 0
        %1728 = vmatprep.subr.bf16.mxu0 0
        %1729 = vmatpush1.bf16.msra.mxu0 0
        %1730 = vmatprep.subr.bf16.mxu0 0
        %1731 = vmatpush1.bf16.msra.mxu0 0
        %1732 = vmatprep.mubr.bf16.mxu0 0
        %1733 = vmatmul.mubr.bf16.gmra.mrb[0].mxu0 %v1616
        %v1734 = vpop.f32.mrb[0].mxu0
        %v1735 = vadd.f32 %v1653, %v1734
        %v1736 = vpop.f32.mrb[0].mxu0
        %v1737 = vadd.f32 %v1655, %v1736
        %v1738 = vpop.f32.mrb[0].mxu0
        %v1739 = vpop.f32.mrb[0].mxu0
        %1740 = vdwg.mxu0
        %1741 = vmatprep.subr.bf16.mxu0 %v1321
        %1742 = vmatpush1.bf16.msra.mxu0 %v1320
        %1743 = vmatprep.subr.bf16.mxu0 %v1325
        %1744 = vmatpush1.bf16.msra.mxu0 %v1324
        %1745 = vmatprep.subr.bf16.mxu0 %v1329
        %1746 = vmatpush1.bf16.msra.mxu0 %v1328
        %1747 = vmatprep.subr.bf16.mxu0 %v1333
        %1748 = vmatpush1.bf16.msra.mxu0 %v1332
        %1749 = vmatprep.subr.bf16.mxu0 %v1337
        %1750 = vmatpush1.bf16.msra.mxu0 %v1336
        %1751 = vmatprep.subr.bf16.mxu0 %v1341
        %1752 = vmatpush1.bf16.msra.mxu0 %v1340
        %1753 = vmatprep.subr.bf16.mxu0 %v1345
        %1754 = vmatpush1.bf16.msra.mxu0 %v1344
        %1755 = vmatprep.subr.bf16.mxu0 %v1349
        %1756 = vmatpush1.bf16.msra.mxu0 %v1348
        %1757 = vmatprep.subr.bf16.mxu0 0
        %1758 = vmatpush1.bf16.msra.mxu0 0
        %1759 = vmatprep.subr.bf16.mxu0 0
        %1760 = vmatpush1.bf16.msra.mxu0 0
        %1761 = vmatprep.subr.bf16.mxu0 0
        %1762 = vmatpush1.bf16.msra.mxu0 0
        %1763 = vmatprep.subr.bf16.mxu0 0
        %1764 = vmatpush1.bf16.msra.mxu0 0
        %1765 = vmatprep.subr.bf16.mxu0 0
        %1766 = vmatpush1.bf16.msra.mxu0 0
        %1767 = vmatprep.subr.bf16.mxu0 0
        %1768 = vmatpush1.bf16.msra.mxu0 0
        %1769 = vmatprep.subr.bf16.mxu0 0
        %1770 = vmatpush1.bf16.msra.mxu0 0
        %1771 = vmatprep.subr.bf16.mxu0 0
        %1772 = vmatpush1.bf16.msra.mxu0 0
        %1773 = vmatprep.mubr.bf16.mxu0 0
        %1774 = vmatmul.mubr.bf16.gmra.mrb[0].mxu0 %v1616
        %v1775 = vpop.f32.mrb[0].mxu0
        %v1776 = vadd.f32 %v1694, %v1775
        %v1777 = vpop.f32.mrb[0].mxu0
        %v1778 = vadd.f32 %v1696, %v1777
        %v1779 = vpop.f32.mrb[0].mxu0
        %v1780 = vpop.f32.mrb[0].mxu0
        %1781 = vdwg.mxu0
        %v1782 = vadd.f32 %v1735, %v1468
        %v1783 = vadd.f32 %v1737, %v1472
        %v1784 = vadd.f32 %v1776, %v1476
        %v1785 = vadd.f32 %v1778, %v1480
        %v1786 = vmul.f32 %v1782, 0.5
        %v1787 = vtanh.pop %v1786
        %v1788 = vmul.f32 %v1787, 0.5
        %v1789 = vadd.f32 %v1788, 0.5
        %v1790 = vmul.f32 %v1783, 0.5
        %v1791 = vtanh.pop %v1790
        %v1792 = vmul.f32 %v1791, 0.5
        %v1793 = vadd.f32 %v1792, 0.5
        %v1794 = vtanh.pop %v1784
        %v1795 = vmul.f32 %v1785, 0.5
        %v1796 = vtanh.pop %v1795
        %v1797 = vmul.f32 %v1796, 0.5
        %v1798 = vadd.f32 %v1797, 0.5
        %v1799 = vmul.f32 %v1793, %v1504
        %v1800 = vmul.f32 %v1789, %v1794
        %v1801 = vadd.f32 %v1799, %v1800
        %v1802 = vtanh.pop %v1801
        %v1803 = vmul.f32 %v1798, %v1802
        %s1804 = scalar_lea.vmem [#allocation2], 64
        %v1805 = vld [vmem:[%s1804] sm:$0xff]
        %v1806 = vld [vmem:[%s1804 + $0x8] sm:$0xff]
        %v1807 = vld [vmem:[%s1804 + $0x10] sm:$0xff]
        %v1808 = vld [vmem:[%s1804 + $0x18] sm:$0xff]
        %1809 = vmatprep.subr.bf16.mxu0 %v811
        %1810 = vmatpush1.bf16.msra.mxu0 %v810
        %1811 = vmatprep.subr.bf16.mxu0 %v815
        %1812 = vmatpush1.bf16.msra.mxu0 %v814
        %1813 = vmatprep.subr.bf16.mxu0 %v819
        %1814 = vmatpush1.bf16.msra.mxu0 %v818
        %1815 = vmatprep.subr.bf16.mxu0 %v823
        %1816 = vmatpush1.bf16.msra.mxu0 %v822
        %1817 = vmatprep.subr.bf16.mxu0 %v827
        %1818 = vmatpush1.bf16.msra.mxu0 %v826
        %1819 = vmatprep.subr.bf16.mxu0 %v831
        %1820 = vmatpush1.bf16.msra.mxu0 %v830
        %1821 = vmatprep.subr.bf16.mxu0 %v835
        %1822 = vmatpush1.bf16.msra.mxu0 %v834
        %1823 = vmatprep.subr.bf16.mxu0 %v839
        %1824 = vmatpush1.bf16.msra.mxu0 %v838
        %1825 = vmatprep.subr.bf16.mxu0 0
        %1826 = vmatpush1.bf16.msra.mxu0 0
        %1827 = vmatprep.subr.bf16.mxu0 0
        %1828 = vmatpush1.bf16.msra.mxu0 0
        %1829 = vmatprep.subr.bf16.mxu0 0
        %1830 = vmatpush1.bf16.msra.mxu0 0
        %1831 = vmatprep.subr.bf16.mxu0 0
        %1832 = vmatpush1.bf16.msra.mxu0 0
        %1833 = vmatprep.subr.bf16.mxu0 0
        %1834 = vmatpush1.bf16.msra.mxu0 0
        %1835 = vmatprep.subr.bf16.mxu0 0
        %1836 = vmatpush1.bf16.msra.mxu0 0
        %1837 = vmatprep.subr.bf16.mxu0 0
        %1838 = vmatpush1.bf16.msra.mxu0 0
        %1839 = vmatprep.subr.bf16.mxu0 0
        %1840 = vmatpush1.bf16.msra.mxu0 0
        %1841 = vmatprep.mubr.bf16.mxu0 0
        %1842 = vmatmul.mubr.bf16.gmra.mrb[0].mxu0 %v1616
        %v1843 = vpop.f32.mrb[0].mxu0
        %v1844 = vadd.f32 0.0, %v1843
        %v1845 = vpop.f32.mrb[0].mxu0
        %v1846 = vadd.f32 0.0, %v1845
        %v1847 = vpop.f32.mrb[0].mxu0
        %v1848 = vpop.f32.mrb[0].mxu0
        %1849 = vdwg.mxu0
        %1850 = vmatprep.subr.bf16.mxu0 %v813
        %1851 = vmatpush1.bf16.msra.mxu0 %v812
        %1852 = vmatprep.subr.bf16.mxu0 %v817
        %1853 = vmatpush1.bf16.msra.mxu0 %v816
        %1854 = vmatprep.subr.bf16.mxu0 %v821
        %1855 = vmatpush1.bf16.msra.mxu0 %v820
        %1856 = vmatprep.subr.bf16.mxu0 %v825
        %1857 = vmatpush1.bf16.msra.mxu0 %v824
        %1858 = vmatprep.subr.bf16.mxu0 %v829
        %1859 = vmatpush1.bf16.msra.mxu0 %v828
        %1860 = vmatprep.subr.bf16.mxu0 %v833
        %1861 = vmatpush1.bf16.msra.mxu0 %v832
        %1862 = vmatprep.subr.bf16.mxu0 %v837
        %1863 = vmatpush1.bf16.msra.mxu0 %v836
        %1864 = vmatprep.subr.bf16.mxu0 %v841
        %1865 = vmatpush1.bf16.msra.mxu0 %v840
        %1866 = vmatprep.subr.bf16.mxu0 0
        %1867 = vmatpush1.bf16.msra.mxu0 0
        %1868 = vmatprep.subr.bf16.mxu0 0
        %1869 = vmatpush1.bf16.msra.mxu0 0
        %1870 = vmatprep.subr.bf16.mxu0 0
        %1871 = vmatpush1.bf16.msra.mxu0 0
        %1872 = vmatprep.subr.bf16.mxu0 0
        %1873 = vmatpush1.bf16.msra.mxu0 0
        %1874 = vmatprep.subr.bf16.mxu0 0
        %1875 = vmatpush1.bf16.msra.mxu0 0
        %1876 = vmatprep.subr.bf16.mxu0 0
        %1877 = vmatpush1.bf16.msra.mxu0 0
        %1878 = vmatprep.subr.bf16.mxu0 0
        %1879 = vmatpush1.bf16.msra.mxu0 0
        %1880 = vmatprep.subr.bf16.mxu0 0
        %1881 = vmatpush1.bf16.msra.mxu0 0
        %1882 = vmatprep.mubr.bf16.mxu0 0
        %1883 = vmatmul.mubr.bf16.gmra.mrb[0].mxu0 %v1616
        %v1884 = vpop.f32.mrb[0].mxu0
        %v1885 = vadd.f32 0.0, %v1884
        %v1886 = vpop.f32.mrb[0].mxu0
        %v1887 = vadd.f32 0.0, %v1886
        %v1888 = vpop.f32.mrb[0].mxu0
        %v1889 = vpop.f32.mrb[0].mxu0
        %1890 = vdwg.mxu0
        %v1891 = vadd.f32 %v1805, %v1844
        %v1892 = vadd.f32 %v1806, %v1846
        %v1893 = vadd.f32 %v1807, %v1885
        %v1894 = vadd.f32 %v1808, %v1887
        %v1895 = vmul.f32 %v1891, 0.5
        %v1896 = vtanh.pop %v1895
        %v1897 = vmul.f32 %v1896, 0.5
        %v1898 = vadd.f32 %v1897, 0.5
        %v1899 = vmul.f32 %v1892, 0.5
        %v1900 = vtanh.pop %v1899
        %v1901 = vmul.f32 %v1900, 0.5
        %v1902 = vadd.f32 %v1901, 0.5
        %v1903 = vtanh.pop %v1893
        %v1904 = vmul.f32 %v1894, 0.5
        %v1905 = vtanh.pop %v1904
        %v1906 = vmul.f32 %v1905, 0.5
        %v1907 = vadd.f32 %v1906, 0.5
        %v1908 = vmul.f32 %v1902, %v1613
        %v1909 = vmul.f32 %v1898, %v1903
        %v1910 = vadd.f32 %v1908, %v1909
        %v1911 = vtanh.pop %v1910
        %v1912 = vmul.f32 %v1907, %v1911
        %v1913 = vpack.c.bf16 %v1912, %v1912
        %v1914 = vpack.c.bf16 %v1803, %v1803
        %1915 = vmatprep.subr.bf16.mxu0 %v1077
        %1916 = vmatpush1.bf16.msra.mxu0 %v1076
        %1917 = vmatprep.subr.bf16.mxu0 %v1081
        %1918 = vmatpush1.bf16.msra.mxu0 %v1080
        %1919 = vmatprep.subr.bf16.mxu0 %v1085
        %1920 = vmatpush1.bf16.msra.mxu0 %v1084
        %1921 = vmatprep.subr.bf16.mxu0 %v1089
        %1922 = vmatpush1.bf16.msra.mxu0 %v1088
        %1923 = vmatprep.subr.bf16.mxu0 %v1093
        %1924 = vmatpush1.bf16.msra.mxu0 %v1092
        %1925 = vmatprep.subr.bf16.mxu0 %v1097
        %1926 = vmatpush1.bf16.msra.mxu0 %v1096
        %1927 = vmatprep.subr.bf16.mxu0 %v1101
        %1928 = vmatpush1.bf16.msra.mxu0 %v1100
        %1929 = vmatprep.subr.bf16.mxu0 %v1105
        %1930 = vmatpush1.bf16.msra.mxu0 %v1104
        %1931 = vmatprep.subr.bf16.mxu0 0
        %1932 = vmatpush1.bf16.msra.mxu0 0
        %1933 = vmatprep.subr.bf16.mxu0 0
        %1934 = vmatpush1.bf16.msra.mxu0 0
        %1935 = vmatprep.subr.bf16.mxu0 0
        %1936 = vmatpush1.bf16.msra.mxu0 0
        %1937 = vmatprep.subr.bf16.mxu0 0
        %1938 = vmatpush1.bf16.msra.mxu0 0
        %1939 = vmatprep.subr.bf16.mxu0 0
        %1940 = vmatpush1.bf16.msra.mxu0 0
        %1941 = vmatprep.subr.bf16.mxu0 0
        %1942 = vmatpush1.bf16.msra.mxu0 0
        %1943 = vmatprep.subr.bf16.mxu0 0
        %1944 = vmatpush1.bf16.msra.mxu0 0
        %1945 = vmatprep.subr.bf16.mxu0 0
        %1946 = vmatpush1.bf16.msra.mxu0 0
        %1947 = vmatprep.mubr.bf16.mxu0 0
        %1948 = vmatmul.mubr.bf16.gmra.mrb[0].mxu0 %v1914
        %v1949 = vpop.f32.mrb[0].mxu0
        %v1950 = vadd.f32 0.0, %v1949
        %v1951 = vpop.f32.mrb[0].mxu0
        %v1952 = vadd.f32 0.0, %v1951
        %v1953 = vpop.f32.mrb[0].mxu0
        %v1954 = vpop.f32.mrb[0].mxu0
        %1955 = vdwg.mxu0
        %1956 = vmatprep.subr.bf16.mxu0 %v1079
        %1957 = vmatpush1.bf16.msra.mxu0 %v1078
        %1958 = vmatprep.subr.bf16.mxu0 %v1083
        %1959 = vmatpush1.bf16.msra.mxu0 %v1082
        %1960 = vmatprep.subr.bf16.mxu0 %v1087
        %1961 = vmatpush1.bf16.msra.mxu0 %v1086
        %1962 = vmatprep.subr.bf16.mxu0 %v1091
        %1963 = vmatpush1.bf16.msra.mxu0 %v1090
        %1964 = vmatprep.subr.bf16.mxu0 %v1095
        %1965 = vmatpush1.bf16.msra.mxu0 %v1094
        %1966 = vmatprep.subr.bf16.mxu0 %v1099
        %1967 = vmatpush1.bf16.msra.mxu0 %v1098
        %1968 = vmatprep.subr.bf16.mxu0 %v1103
        %1969 = vmatpush1.bf16.msra.mxu0 %v1102
        %1970 = vmatprep.subr.bf16.mxu0 %v1107
        %1971 = vmatpush1.bf16.msra.mxu0 %v1106
        %1972 = vmatprep.subr.bf16.mxu0 0
        %1973 = vmatpush1.bf16.msra.mxu0 0
        %1974 = vmatprep.subr.bf16.mxu0 0
        %1975 = vmatpush1.bf16.msra.mxu0 0
        %1976 = vmatprep.subr.bf16.mxu0 0
        %1977 = vmatpush1.bf16.msra.mxu0 0
        %1978 = vmatprep.subr.bf16.mxu0 0
        %1979 = vmatpush1.bf16.msra.mxu0 0
        %1980 = vmatprep.subr.bf16.mxu0 0
        %1981 = vmatpush1.bf16.msra.mxu0 0
        %1982 = vmatprep.subr.bf16.mxu0 0
        %1983 = vmatpush1.bf16.msra.mxu0 0
        %1984 = vmatprep.subr.bf16.mxu0 0
        %1985 = vmatpush1.bf16.msra.mxu0 0
        %1986 = vmatprep.subr.bf16.mxu0 0
        %1987 = vmatpush1.bf16.msra.mxu0 0
        %1988 = vmatprep.mubr.bf16.mxu0 0
        %1989 = vmatmul.mubr.bf16.gmra.mrb[0].mxu0 %v1914
        %v1990 = vpop.f32.mrb[0].mxu0
        %v1991 = vadd.f32 0.0, %v1990
        %v1992 = vpop.f32.mrb[0].mxu0
        %v1993 = vadd.f32 0.0, %v1992
        %v1994 = vpop.f32.mrb[0].mxu0
        %v1995 = vpop.f32.mrb[0].mxu0
        %1996 = vdwg.mxu0
        %1997 = vmatprep.subr.bf16.mxu0 %v1319
        %1998 = vmatpush1.bf16.msra.mxu0 %v1318
        %1999 = vmatprep.subr.bf16.mxu0 %v1323
        %2000 = vmatpush1.bf16.msra.mxu0 %v1322
        %2001 = vmatprep.subr.bf16.mxu0 %v1327
        %2002 = vmatpush1.bf16.msra.mxu0 %v1326
        %2003 = vmatprep.subr.bf16.mxu0 %v1331
        %2004 = vmatpush1.bf16.msra.mxu0 %v1330
        %2005 = vmatprep.subr.bf16.mxu0 %v1335
        %2006 = vmatpush1.bf16.msra.mxu0 %v1334
        %2007 = vmatprep.subr.bf16.mxu0 %v1339
        %2008 = vmatpush1.bf16.msra.mxu0 %v1338
        %2009 = vmatprep.subr.bf16.mxu0 %v1343
        %2010 = vmatpush1.bf16.msra.mxu0 %v1342
        %2011 = vmatprep.subr.bf16.mxu0 %v1347
        %2012 = vmatpush1.bf16.msra.mxu0 %v1346
        %2013 = vmatprep.subr.bf16.mxu0 0
        %2014 = vmatpush1.bf16.msra.mxu0 0
        %2015 = vmatprep.subr.bf16.mxu0 0
        %2016 = vmatpush1.bf16.msra.mxu0 0
        %2017 = vmatprep.subr.bf16.mxu0 0
        %2018 = vmatpush1.bf16.msra.mxu0 0
        %2019 = vmatprep.subr.bf16.mxu0 0
        %2020 = vmatpush1.bf16.msra.mxu0 0
        %2021 = vmatprep.subr.bf16.mxu0 0
        %2022 = vmatpush1.bf16.msra.mxu0 0
        %2023 = vmatprep.subr.bf16.mxu0 0
        %2024 = vmatpush1.bf16.msra.mxu0 0
        %2025 = vmatprep.subr.bf16.mxu0 0
        %2026 = vmatpush1.bf16.msra.mxu0 0
        %2027 = vmatprep.subr.bf16.mxu0 0
        %2028 = vmatpush1.bf16.msra.mxu0 0
        %2029 = vmatprep.mubr.bf16.mxu0 0
        %2030 = vmatmul.mubr.bf16.gmra.mrb[0].mxu0 %v1913
        %v2031 = vpop.f32.mrb[0].mxu0
        %v2032 = vadd.f32 %v1950, %v2031
        %v2033 = vpop.f32.mrb[0].mxu0
        %v2034 = vadd.f32 %v1952, %v2033
        %v2035 = vpop.f32.mrb[0].mxu0
        %v2036 = vpop.f32.mrb[0].mxu0
        %2037 = vdwg.mxu0
        %2038 = vmatprep.subr.bf16.mxu0 %v1321
        %2039 = vmatpush1.bf16.msra.mxu0 %v1320
        %2040 = vmatprep.subr.bf16.mxu0 %v1325
        %2041 = vmatpush1.bf16.msra.mxu0 %v1324
        %2042 = vmatprep.subr.bf16.mxu0 %v1329
        %2043 = vmatpush1.bf16.msra.mxu0 %v1328
        %2044 = vmatprep.subr.bf16.mxu0 %v1333
        %2045 = vmatpush1.bf16.msra.mxu0 %v1332
        %2046 = vmatprep.subr.bf16.mxu0 %v1337
        %2047 = vmatpush1.bf16.msra.mxu0 %v1336
        %2048 = vmatprep.subr.bf16.mxu0 %v1341
        %2049 = vmatpush1.bf16.msra.mxu0 %v1340
        %2050 = vmatprep.subr.bf16.mxu0 %v1345
        %2051 = vmatpush1.bf16.msra.mxu0 %v1344
        %2052 = vmatprep.subr.bf16.mxu0 %v1349
        %2053 = vmatpush1.bf16.msra.mxu0 %v1348
        %2054 = vmatprep.subr.bf16.mxu0 0
        %2055 = vmatpush1.bf16.msra.mxu0 0
        %2056 = vmatprep.subr.bf16.mxu0 0
        %2057 = vmatpush1.bf16.msra.mxu0 0
        %2058 = vmatprep.subr.bf16.mxu0 0
        %2059 = vmatpush1.bf16.msra.mxu0 0
        %2060 = vmatprep.subr.bf16.mxu0 0
        %2061 = vmatpush1.bf16.msra.mxu0 0
        %2062 = vmatprep.subr.bf16.mxu0 0
        %2063 = vmatpush1.bf16.msra.mxu0 0
        %2064 = vmatprep.subr.bf16.mxu0 0
        %2065 = vmatpush1.bf16.msra.mxu0 0
        %2066 = vmatprep.subr.bf16.mxu0 0
        %2067 = vmatpush1.bf16.msra.mxu0 0
        %2068 = vmatprep.subr.bf16.mxu0 0
        %2069 = vmatpush1.bf16.msra.mxu0 0
        %2070 = vmatprep.mubr.bf16.mxu0 0
        %2071 = vmatmul.mubr.bf16.gmra.mrb[0].mxu0 %v1913
        %v2072 = vpop.f32.mrb[0].mxu0
        %v2073 = vadd.f32 %v1991, %v2072
        %v2074 = vpop.f32.mrb[0].mxu0
        %v2075 = vadd.f32 %v1993, %v2074
        %v2076 = vpop.f32.mrb[0].mxu0
        %v2077 = vpop.f32.mrb[0].mxu0
        %2078 = vdwg.mxu0
        %v2079 = vadd.f32 %v2032, %v1468
        %v2080 = vadd.f32 %v2034, %v1472
        %v2081 = vadd.f32 %v2073, %v1476
        %v2082 = vadd.f32 %v2075, %v1480
        %v2083 = vmul.f32 %v2079, 0.5
        %v2084 = vtanh.pop %v2083
        %v2085 = vmul.f32 %v2084, 0.5
        %v2086 = vadd.f32 %v2085, 0.5
        %v2087 = vmul.f32 %v2080, 0.5
        %v2088 = vtanh.pop %v2087
        %v2089 = vmul.f32 %v2088, 0.5
        %v2090 = vadd.f32 %v2089, 0.5
        %v2091 = vtanh.pop %v2081
        %v2092 = vmul.f32 %v2082, 0.5
        %v2093 = vtanh.pop %v2092
        %v2094 = vmul.f32 %v2093, 0.5
        %v2095 = vadd.f32 %v2094, 0.5
        %v2096 = vmul.f32 %v2090, %v1801
        %v2097 = vmul.f32 %v2086, %v2091
        %v2098 = vadd.f32 %v2096, %v2097
        %v2099 = vtanh.pop %v2098
        %v2100 = vmul.f32 %v2095, %v2099
        %s2101 = scalar_lea.vmem [#allocation2], 96
        %v2102 = vld [vmem:[%s2101] sm:$0xff]
        %v2103 = vld [vmem:[%s2101 + $0x8] sm:$0xff]
        %v2104 = vld [vmem:[%s2101 + $0x10] sm:$0xff]
        %v2105 = vld [vmem:[%s2101 + $0x18] sm:$0xff]
        %2106 = vmatprep.subr.bf16.mxu0 %v811
        %2107 = vmatpush1.bf16.msra.mxu0 %v810
        %2108 = vmatprep.subr.bf16.mxu0 %v815
        %2109 = vmatpush1.bf16.msra.mxu0 %v814
        %2110 = vmatprep.subr.bf16.mxu0 %v819
        %2111 = vmatpush1.bf16.msra.mxu0 %v818
        %2112 = vmatprep.subr.bf16.mxu0 %v823
        %2113 = vmatpush1.bf16.msra.mxu0 %v822
        %2114 = vmatprep.subr.bf16.mxu0 %v827
        %2115 = vmatpush1.bf16.msra.mxu0 %v826
        %2116 = vmatprep.subr.bf16.mxu0 %v831
        %2117 = vmatpush1.bf16.msra.mxu0 %v830
        %2118 = vmatprep.subr.bf16.mxu0 %v835
        %2119 = vmatpush1.bf16.msra.mxu0 %v834
        %2120 = vmatprep.subr.bf16.mxu0 %v839
        %2121 = vmatpush1.bf16.msra.mxu0 %v838
        %2122 = vmatprep.subr.bf16.mxu0 0
        %2123 = vmatpush1.bf16.msra.mxu0 0
        %2124 = vmatprep.subr.bf16.mxu0 0
        %2125 = vmatpush1.bf16.msra.mxu0 0
        %2126 = vmatprep.subr.bf16.mxu0 0
        %2127 = vmatpush1.bf16.msra.mxu0 0
        %2128 = vmatprep.subr.bf16.mxu0 0
        %2129 = vmatpush1.bf16.msra.mxu0 0
        %2130 = vmatprep.subr.bf16.mxu0 0
        %2131 = vmatpush1.bf16.msra.mxu0 0
        %2132 = vmatprep.subr.bf16.mxu0 0
        %2133 = vmatpush1.bf16.msra.mxu0 0
        %2134 = vmatprep.subr.bf16.mxu0 0
        %2135 = vmatpush1.bf16.msra.mxu0 0
        %2136 = vmatprep.subr.bf16.mxu0 0
        %2137 = vmatpush1.bf16.msra.mxu0 0
        %2138 = vmatprep.mubr.bf16.mxu0 0
        %2139 = vmatmul.mubr.bf16.gmra.mrb[0].mxu0 %v1913
        %v2140 = vpop.f32.mrb[0].mxu0
        %v2141 = vadd.f32 0.0, %v2140
        %v2142 = vpop.f32.mrb[0].mxu0
        %v2143 = vadd.f32 0.0, %v2142
        %v2144 = vpop.f32.mrb[0].mxu0
        %v2145 = vpop.f32.mrb[0].mxu0
        %2146 = vdwg.mxu0
        %2147 = vmatprep.subr.bf16.mxu0 %v813
        %2148 = vmatpush1.bf16.msra.mxu0 %v812
        %2149 = vmatprep.subr.bf16.mxu0 %v817
        %2150 = vmatpush1.bf16.msra.mxu0 %v816
        %2151 = vmatprep.subr.bf16.mxu0 %v821
        %2152 = vmatpush1.bf16.msra.mxu0 %v820
        %2153 = vmatprep.subr.bf16.mxu0 %v825
        %2154 = vmatpush1.bf16.msra.mxu0 %v824
        %2155 = vmatprep.subr.bf16.mxu0 %v829
        %2156 = vmatpush1.bf16.msra.mxu0 %v828
        %2157 = vmatprep.subr.bf16.mxu0 %v833
        %2158 = vmatpush1.bf16.msra.mxu0 %v832
        %2159 = vmatprep.subr.bf16.mxu0 %v837
        %2160 = vmatpush1.bf16.msra.mxu0 %v836
        %2161 = vmatprep.subr.bf16.mxu0 %v841
        %2162 = vmatpush1.bf16.msra.mxu0 %v840
        %2163 = vmatprep.subr.bf16.mxu0 0
        %2164 = vmatpush1.bf16.msra.mxu0 0
        %2165 = vmatprep.subr.bf16.mxu0 0
        %2166 = vmatpush1.bf16.msra.mxu0 0
        %2167 = vmatprep.subr.bf16.mxu0 0
        %2168 = vmatpush1.bf16.msra.mxu0 0
        %2169 = vmatprep.subr.bf16.mxu0 0
        %2170 = vmatpush1.bf16.msra.mxu0 0
        %2171 = vmatprep.subr.bf16.mxu0 0
        %2172 = vmatpush1.bf16.msra.mxu0 0
        %2173 = vmatprep.subr.bf16.mxu0 0
        %2174 = vmatpush1.bf16.msra.mxu0 0
        %2175 = vmatprep.subr.bf16.mxu0 0
        %2176 = vmatpush1.bf16.msra.mxu0 0
        %2177 = vmatprep.subr.bf16.mxu0 0
        %2178 = vmatpush1.bf16.msra.mxu0 0
        %2179 = vmatprep.mubr.bf16.mxu0 0
        %2180 = vmatmul.mubr.bf16.gmra.mrb[0].mxu0 %v1913
        %v2181 = vpop.f32.mrb[0].mxu0
        %v2182 = vadd.f32 0.0, %v2181
        %v2183 = vpop.f32.mrb[0].mxu0
        %v2184 = vadd.f32 0.0, %v2183
        %v2185 = vpop.f32.mrb[0].mxu0
        %v2186 = vpop.f32.mrb[0].mxu0
        %2187 = vdwg.mxu0
        %v2188 = vadd.f32 %v2102, %v2141
        %v2189 = vadd.f32 %v2103, %v2143
        %v2190 = vadd.f32 %v2104, %v2182
        %v2191 = vadd.f32 %v2105, %v2184
        %v2192 = vmul.f32 %v2188, 0.5
        %v2193 = vtanh.pop %v2192
        %v2194 = vmul.f32 %v2193, 0.5
        %v2195 = vadd.f32 %v2194, 0.5
        %v2196 = vmul.f32 %v2189, 0.5
        %v2197 = vtanh.pop %v2196
        %v2198 = vmul.f32 %v2197, 0.5
        %v2199 = vadd.f32 %v2198, 0.5
        %v2200 = vtanh.pop %v2190
        %v2201 = vmul.f32 %v2191, 0.5
        %v2202 = vtanh.pop %v2201
        %v2203 = vmul.f32 %v2202, 0.5
        %v2204 = vadd.f32 %v2203, 0.5
        %v2205 = vmul.f32 %v2199, %v1910
        %v2206 = vmul.f32 %v2195, %v2200
        %v2207 = vadd.f32 %v2205, %v2206
        %v2208 = vtanh.pop %v2207
        %v2209 = vmul.f32 %v2204, %v2208
        %v2210 = vpack.c.bf16 %v2209, %v2209
        %v2211 = vpack.c.bf16 %v2100, %v2100
        %2212 = vmatprep.subr.bf16.mxu0 %v1077
        %2213 = vmatpush1.bf16.msra.mxu0 %v1076
        %2214 = vmatprep.subr.bf16.mxu0 %v1081
        %2215 = vmatpush1.bf16.msra.mxu0 %v1080
        %2216 = vmatprep.subr.bf16.mxu0 %v1085
        %2217 = vmatpush1.bf16.msra.mxu0 %v1084
        %2218 = vmatprep.subr.bf16.mxu0 %v1089
        %2219 = vmatpush1.bf16.msra.mxu0 %v1088
        %2220 = vmatprep.subr.bf16.mxu0 %v1093
        %2221 = vmatpush1.bf16.msra.mxu0 %v1092
        %2222 = vmatprep.subr.bf16.mxu0 %v1097
        %2223 = vmatpush1.bf16.msra.mxu0 %v1096
        %2224 = vmatprep.subr.bf16.mxu0 %v1101
        %2225 = vmatpush1.bf16.msra.mxu0 %v1100
        %2226 = vmatprep.subr.bf16.mxu0 %v1105
        %2227 = vmatpush1.bf16.msra.mxu0 %v1104
        %2228 = vmatprep.subr.bf16.mxu0 0
        %2229 = vmatpush1.bf16.msra.mxu0 0
        %2230 = vmatprep.subr.bf16.mxu0 0
        %2231 = vmatpush1.bf16.msra.mxu0 0
        %2232 = vmatprep.subr.bf16.mxu0 0
        %2233 = vmatpush1.bf16.msra.mxu0 0
        %2234 = vmatprep.subr.bf16.mxu0 0
        %2235 = vmatpush1.bf16.msra.mxu0 0
        %2236 = vmatprep.subr.bf16.mxu0 0
        %2237 = vmatpush1.bf16.msra.mxu0 0
        %2238 = vmatprep.subr.bf16.mxu0 0
        %2239 = vmatpush1.bf16.msra.mxu0 0
        %2240 = vmatprep.subr.bf16.mxu0 0
        %2241 = vmatpush1.bf16.msra.mxu0 0
        %2242 = vmatprep.subr.bf16.mxu0 0
        %2243 = vmatpush1.bf16.msra.mxu0 0
        %2244 = vmatprep.mubr.bf16.mxu0 0
        %2245 = vmatmul.mubr.bf16.gmra.mrb[0].mxu0 %v2211
        %v2246 = vpop.f32.mrb[0].mxu0
        %v2247 = vadd.f32 0.0, %v2246
        %v2248 = vpop.f32.mrb[0].mxu0
        %v2249 = vadd.f32 0.0, %v2248
        %v2250 = vpop.f32.mrb[0].mxu0
        %v2251 = vpop.f32.mrb[0].mxu0
        %2252 = vdwg.mxu0
        %2253 = vmatprep.subr.bf16.mxu0 %v1079
        %2254 = vmatpush1.bf16.msra.mxu0 %v1078
        %2255 = vmatprep.subr.bf16.mxu0 %v1083
        %2256 = vmatpush1.bf16.msra.mxu0 %v1082
        %2257 = vmatprep.subr.bf16.mxu0 %v1087
        %2258 = vmatpush1.bf16.msra.mxu0 %v1086
        %2259 = vmatprep.subr.bf16.mxu0 %v1091
        %2260 = vmatpush1.bf16.msra.mxu0 %v1090
        %2261 = vmatprep.subr.bf16.mxu0 %v1095
        %2262 = vmatpush1.bf16.msra.mxu0 %v1094
        %2263 = vmatprep.subr.bf16.mxu0 %v1099
        %2264 = vmatpush1.bf16.msra.mxu0 %v1098
        %2265 = vmatprep.subr.bf16.mxu0 %v1103
        %2266 = vmatpush1.bf16.msra.mxu0 %v1102
        %2267 = vmatprep.subr.bf16.mxu0 %v1107
        %2268 = vmatpush1.bf16.msra.mxu0 %v1106
        %2269 = vmatprep.subr.bf16.mxu0 0
        %2270 = vmatpush1.bf16.msra.mxu0 0
        %2271 = vmatprep.subr.bf16.mxu0 0
        %2272 = vmatpush1.bf16.msra.mxu0 0
        %2273 = vmatprep.subr.bf16.mxu0 0
        %2274 = vmatpush1.bf16.msra.mxu0 0
        %2275 = vmatprep.subr.bf16.mxu0 0
        %2276 = vmatpush1.bf16.msra.mxu0 0
        %2277 = vmatprep.subr.bf16.mxu0 0
        %2278 = vmatpush1.bf16.msra.mxu0 0
        %2279 = vmatprep.subr.bf16.mxu0 0
        %2280 = vmatpush1.bf16.msra.mxu0 0
        %2281 = vmatprep.subr.bf16.mxu0 0
        %2282 = vmatpush1.bf16.msra.mxu0 0
        %2283 = vmatprep.subr.bf16.mxu0 0
        %2284 = vmatpush1.bf16.msra.mxu0 0
        %2285 = vmatprep.mubr.bf16.mxu0 0
        %2286 = vmatmul.mubr.bf16.gmra.mrb[0].mxu0 %v2211
        %v2287 = vpop.f32.mrb[0].mxu0
        %v2288 = vadd.f32 0.0, %v2287
        %v2289 = vpop.f32.mrb[0].mxu0
        %v2290 = vadd.f32 0.0, %v2289
        %v2291 = vpop.f32.mrb[0].mxu0
        %v2292 = vpop.f32.mrb[0].mxu0
        %2293 = vdwg.mxu0
        %2294 = vmatprep.subr.bf16.mxu0 %v1319
        %2295 = vmatpush1.bf16.msra.mxu0 %v1318
        %2296 = vmatprep.subr.bf16.mxu0 %v1323
        %2297 = vmatpush1.bf16.msra.mxu0 %v1322
        %2298 = vmatprep.subr.bf16.mxu0 %v1327
        %2299 = vmatpush1.bf16.msra.mxu0 %v1326
        %2300 = vmatprep.subr.bf16.mxu0 %v1331
        %2301 = vmatpush1.bf16.msra.mxu0 %v1330
        %2302 = vmatprep.subr.bf16.mxu0 %v1335
        %2303 = vmatpush1.bf16.msra.mxu0 %v1334
        %2304 = vmatprep.subr.bf16.mxu0 %v1339
        %2305 = vmatpush1.bf16.msra.mxu0 %v1338
        %2306 = vmatprep.subr.bf16.mxu0 %v1343
        %2307 = vmatpush1.bf16.msra.mxu0 %v1342
        %2308 = vmatprep.subr.bf16.mxu0 %v1347
        %2309 = vmatpush1.bf16.msra.mxu0 %v1346
        %2310 = vmatprep.subr.bf16.mxu0 0
        %2311 = vmatpush1.bf16.msra.mxu0 0
        %2312 = vmatprep.subr.bf16.mxu0 0
        %2313 = vmatpush1.bf16.msra.mxu0 0
        %2314 = vmatprep.subr.bf16.mxu0 0
        %2315 = vmatpush1.bf16.msra.mxu0 0
        %2316 = vmatprep.subr.bf16.mxu0 0
        %2317 = vmatpush1.bf16.msra.mxu0 0
        %2318 = vmatprep.subr.bf16.mxu0 0
        %2319 = vmatpush1.bf16.msra.mxu0 0
        %2320 = vmatprep.subr.bf16.mxu0 0
        %2321 = vmatpush1.bf16.msra.mxu0 0
        %2322 = vmatprep.subr.bf16.mxu0 0
        %2323 = vmatpush1.bf16.msra.mxu0 0
        %2324 = vmatprep.subr.bf16.mxu0 0
        %2325 = vmatpush1.bf16.msra.mxu0 0
        %2326 = vmatprep.mubr.bf16.mxu0 0
        %2327 = vmatmul.mubr.bf16.gmra.mrb[0].mxu0 %v2210
        %v2328 = vpop.f32.mrb[0].mxu0
        %v2329 = vadd.f32 %v2247, %v2328
        %v2330 = vpop.f32.mrb[0].mxu0
        %v2331 = vadd.f32 %v2249, %v2330
        %v2332 = vpop.f32.mrb[0].mxu0
        %v2333 = vpop.f32.mrb[0].mxu0
        %2334 = vdwg.mxu0
        %2335 = vmatprep.subr.bf16.mxu0 %v1321
        %2336 = vmatpush1.bf16.msra.mxu0 %v1320
        %2337 = vmatprep.subr.bf16.mxu0 %v1325
        %2338 = vmatpush1.bf16.msra.mxu0 %v1324
        %2339 = vmatprep.subr.bf16.mxu0 %v1329
        %2340 = vmatpush1.bf16.msra.mxu0 %v1328
        %2341 = vmatprep.subr.bf16.mxu0 %v1333
        %2342 = vmatpush1.bf16.msra.mxu0 %v1332
        %2343 = vmatprep.subr.bf16.mxu0 %v1337
        %2344 = vmatpush1.bf16.msra.mxu0 %v1336
        %2345 = vmatprep.subr.bf16.mxu0 %v1341
        %2346 = vmatpush1.bf16.msra.mxu0 %v1340
        %2347 = vmatprep.subr.bf16.mxu0 %v1345
        %2348 = vmatpush1.bf16.msra.mxu0 %v1344
        %2349 = vmatprep.subr.bf16.mxu0 %v1349
        %2350 = vmatpush1.bf16.msra.mxu0 %v1348
        %2351 = vmatprep.subr.bf16.mxu0 0
        %2352 = vmatpush1.bf16.msra.mxu0 0
        %2353 = vmatprep.subr.bf16.mxu0 0
        %2354 = vmatpush1.bf16.msra.mxu0 0
        %2355 = vmatprep.subr.bf16.mxu0 0
        %2356 = vmatpush1.bf16.msra.mxu0 0
        %2357 = vmatprep.subr.bf16.mxu0 0
        %2358 = vmatpush1.bf16.msra.mxu0 0
        %2359 = vmatprep.subr.bf16.mxu0 0
        %2360 = vmatpush1.bf16.msra.mxu0 0
        %2361 = vmatprep.subr.bf16.mxu0 0
        %2362 = vmatpush1.bf16.msra.mxu0 0
        %2363 = vmatprep.subr.bf16.mxu0 0
        %2364 = vmatpush1.bf16.msra.mxu0 0
        %2365 = vmatprep.subr.bf16.mxu0 0
        %2366 = vmatpush1.bf16.msra.mxu0 0
        %2367 = vmatprep.mubr.bf16.mxu0 0
        %2368 = vmatmul.mubr.bf16.gmra.mrb[0].mxu0 %v2210
        %v2369 = vpop.f32.mrb[0].mxu0
        %v2370 = vadd.f32 %v2288, %v2369
        %v2371 = vpop.f32.mrb[0].mxu0
        %v2372 = vadd.f32 %v2290, %v2371
        %v2373 = vpop.f32.mrb[0].mxu0
        %v2374 = vpop.f32.mrb[0].mxu0
        %2375 = vdwg.mxu0
        %v2376 = vadd.f32 %v2329, %v1468
        %v2377 = vadd.f32 %v2331, %v1472
        %v2378 = vadd.f32 %v2370, %v1476
        %v2379 = vadd.f32 %v2372, %v1480
        %v2380 = vmul.f32 %v2376, 0.5
        %v2381 = vtanh.pop %v2380
        %v2382 = vmul.f32 %v2381, 0.5
        %v2383 = vadd.f32 %v2382, 0.5
        %v2384 = vmul.f32 %v2377, 0.5
        %v2385 = vtanh.pop %v2384
        %v2386 = vmul.f32 %v2385, 0.5
        %v2387 = vadd.f32 %v2386, 0.5
        %v2388 = vtanh.pop %v2378
        %v2389 = vmul.f32 %v2379, 0.5
        %v2390 = vtanh.pop %v2389
        %v2391 = vmul.f32 %v2390, 0.5
        %v2392 = vadd.f32 %v2391, 0.5
        %v2393 = vmul.f32 %v2387, %v2098
        %v2394 = vmul.f32 %v2383, %v2388
        %v2395 = vadd.f32 %v2393, %v2394
        %v2396 = vtanh.pop %v2395
        %v2397 = vmul.f32 %v2392, %v2396
        %2398 = vst [vmem:[#allocation3] sm:$0xff] %v2209
        %2399 = vst [vmem:[#allocation4] sm:$0xff] %v2207
        %2400 = vst [vmem:[#allocation5] sm:$0xff] %v2397
        %2401 = vst [vmem:[#allocation6] sm:$0xff] %v2395
        %p2402 = scmp.eq.s32.totalorder %s29, 1
        // Predicated region
        $region73: #{multi_lstm_forward.1} parent=55 // pred_check
          %p2403 = pneg %p2402
        $region74: #{multi_lstm_forward.1} parent=55 // pred_check_branch
          %2405 = sbr.rel (%p2403) target = $region76
        $region75: #{multi_lstm_forward.1} parent=55 // pred_region
          %v2406 = vld [vmem:[%s7] sm:$0x1]
          %v2408 = vlaneseq
          %v2409 = vshrl.u32 %v2408, 7
          %v2410 = vsub.s32 0, %v2409
          %v2411 = vrot.slane %v2406, %v2410
          %v2413 = vmul.f32 %v2397, %v2411
          %2414 = vadd.xlane.f32.xlu0 %v2413
          %v2415 = vpop.xlane.xlu0 %2414
          %v2416 = vld [vmem:[#allocation7] sm:$0x1]
          %v2418 = vlaneseq
          %v2419 = vshrl.u32 %v2418, 7
          %v2420 = vsub.s32 0, %v2419
          %v2421 = vrot.slane %v2416, %v2420
          %v2423 = vadd.f32 %v2415, %v2421
          %vm2424 = vcmask 7168
          %2425 = vst.msk [vmem:[%s401] sm:$0xff] %vm2424, %v2423
        $region76: #{multi_lstm_forward.1} parent=55 // pred_fallthru
          _
        %p2426 = scmp.lt.s32.totalorder %s28, 0
        %s2427 = scalar_select %p2426, %s28, 0
        %s2428 = smul.addr %s2427, 8
        %s2429 = scalar_lea.vmem %s9, %s2428
        // Predicated region
        $region77: #{multi_lstm_forward.1} parent=55 // pred_check
          %p2430 = pneg %p250
        $region78: #{multi_lstm_forward.1} parent=55 // pred_check_branch
          %2432 = sbr.rel (%p2430) target = $region80
        $region79: #{multi_lstm_forward.1} parent=55 // pred_region
          _
        $region80: #{multi_lstm_forward.1} parent=55 // pred_fallthru
          _
        // Predicated region
        $region81: #{multi_lstm_forward.1} parent=55 // pred_check
          %p2433 = pneg %p250
        $region82: #{multi_lstm_forward.1} parent=55 // pred_check_branch
          %2435 = sbr.rel (%p2433) target = $region84
        $region83: #{multi_lstm_forward.1} parent=55 // pred_region
          %p2436 = scmp.lt.s32.totalorder %s28, 0
          %s2437 = scalar_select %p2436, %s28, 0
          %s2438 = smul.addr %s2437, 8
          %s2439 = scalar_lea.vmem %s9, %s2438
        $region84: #{multi_lstm_forward.1} parent=55 // pred_fallthru
          _
      $region56: #{multi_lstm_forward.1} parent=5 // pred_fallthru
        _
      %p2440 = scmp.le.s32.totalorder 2, %s19
      // Predicated region
      $region85: #{multi_lstm_forward.1} parent=5 // pred_check
        %p2441 = pneg %p2440
      $region86: #{multi_lstm_forward.1} parent=5 // pred_check_branch
        %2443 = sbr.rel (%p2441) target = $region88
      $region87: #{multi_lstm_forward.1} parent=5 // pred_region
        %s2444 = ssub.s32 %s19, 2
      $region88: #{multi_lstm_forward.1} parent=5 // pred_fallthru
        _
    $region6: #{multi_lstm_forward.1} parent=1 // loop_footer
      %s23 = sadd.s32 1, %s19
    $region7: #{multi_lstm_forward.1} parent=1 // loop_footer_branch
      %18 = sbr.rel target = $region3
    $region8: #{multi_lstm_forward.1} parent=1 // loop_exit
      _
    %2445 = vsyncpa [#allocation9], 1
    %s2446 = scalar_lea.sflag [#allocation9], 1
    %2447 = vsyncpa %s2446, 1
    %2448 = vsyncpa [#allocation11], 1

</llo_original>
